<compile_context>
chip_gen: v5e
topology: v5e:2x2
jax: 0.10.0
libtpu: 0.0.40
codegen_flags: <defaults>
</compile_context>

<pallas_src>
import functools
import math

import jax
import jax.numpy as jnp
from jax.experimental import pallas as pl
from jax.experimental.pallas import tpu as pltpu


_VMEM_LIMIT = 32 * 1024 * 1024  # explicit scoped-VMEM budget; safe on v5e/v6e/v7x


def _round_up(n, m):
    return ((n + m - 1) // m) * m


def _pick_row_tile(rows):
    # M-tile for the row dimension: big enough to pipeline, multiple of 8.
    if rows >= 4096:
        return 1024
    if rows >= 512:
        return 512
    if rows >= 128:
        return 128
    return _round_up(rows, 8)


# ----------------------------- Pallas kernels -------------------------------

def _conv_rows_kernel(x_ref, w_ref, b_ref, o_ref, *, shifts, relu):
    """One (TM, Cout) row-tile of a kh x kw stride-1 conv.

    x_ref : (ROWS_TOT, Cin)  row-flattened, zero-padded image (resident per batch)
    w_ref : (kh*kw, Cin, Cout) resident weights
    b_ref : (1, Cout)          resident bias
    o_ref : (TM, Cout)         output rows [r*TM, (r+1)*TM) of this image

    im2col is fused into the kernel: tap (i, j) is the row-slice shifted by
    i*W + j, so the 9x patch slab is never materialized in HBM.
    """
    tm, cout = o_ref.shape
    r = pl.program_id(1)
    base = pl.multiple_of(r * tm, 8)
    acc = jnp.zeros((tm, cout), jnp.float32)
    for t, s in enumerate(shifts):
        xs = x_ref[pl.ds(base + s, tm), :]                       # (TM, Cin)
        acc = acc + jnp.dot(xs, w_ref[t], preferred_element_type=jnp.float32)
    acc = acc + b_ref[...]
    if relu:
        acc = jnp.maximum(acc, 0.0)
    o_ref[...] = acc.astype(o_ref.dtype)


def _bn_stats_kernel(x_ref, s_ref):
    """Single-pass per-channel sum / sum-of-squares, accumulated across M tiles."""
    @pl.when(pl.program_id(0) == 0)
    def _():
        s_ref[...] = jnp.zeros_like(s_ref)
    x = x_ref[...]
    s_ref[0:1, :] += jnp.sum(x, axis=0, keepdims=True)
    s_ref[1:2, :] += jnp.sum(x * x, axis=0, keepdims=True)


def _bn_apply_kernel(x_ref, scale_ref, shift_ref, o_ref):
    """x * scale + shift, then ReLU (per-channel scale/shift), tiled over M."""
    o_ref[...] = jnp.maximum(x_ref[...] * scale_ref[...] + shift_ref[...], 0.0)


# ------------------------------ wrappers -------------------------------------

def _conv2d_nhwc(x_nhwc, w_oihw, bias, *, padding, relu):
    """Stride-1 Conv2d on NHWC input; weights are PyTorch OIHW."""
    cout, cin, kh, kw = w_oihw.shape
    n = x_nhwc.shape[0]
    if padding > 0:
        x_nhwc = jnp.pad(
            x_nhwc, ((0, 0), (padding, padding), (padding, padding), (0, 0)))
    h, w = x_nhwc.shape[1], x_nhwc.shape[2]
    oh, ow = h - kh + 1, w - kw + 1

    rows = h * w                               # compute at every (padded) position,
    tm = _pick_row_tile(rows)                  # crop the valid window afterwards
    m_pad = _round_up(rows, tm)
    halo = (kh - 1) * w + (kw - 1)
    rows_tot = _round_up(m_pad + halo, 8)

    x_rows = x_nhwc.reshape(n, rows, cin)
    x_rows = jnp.pad(x_rows, ((0, 0), (0, rows_tot - rows), (0, 0)))

    # OIHW -> (kh*kw, Cin, Cout); tap t = i*kw + j holds a (Cin, Cout) slice.
    w3 = jnp.transpose(w_oihw, (2, 3, 1, 0)).reshape(kh * kw, cin, cout)
    b2 = bias.reshape(1, cout).astype(jnp.float32)

    shifts = tuple(i * w + j for i in range(kh) for j in range(kw))
    kernel = functools.partial(_conv_rows_kernel, shifts=shifts, relu=relu)

    out_full = pl.pallas_call(
        kernel,
        out_shape=jax.ShapeDtypeStruct((n, m_pad, cout), jnp.float32),
        grid=(n, m_pad // tm),
        in_specs=[
            pl.BlockSpec((None, rows_tot, cin), lambda b, r: (b, 0, 0)),
            pl.BlockSpec((kh * kw, cin, cout), lambda b, r: (0, 0, 0)),
            pl.BlockSpec((1, cout), lambda b, r: (0, 0)),
        ],
        out_specs=pl.BlockSpec((None, tm, cout), lambda b, r: (b, r, 0)),
        compiler_params=pltpu.CompilerParams(
            dimension_semantics=("parallel", "parallel"),
            vmem_limit_bytes=_VMEM_LIMIT),
    )(x_rows, w3, b2)

    out = out_full[:, :rows, :].reshape(n, h, w, cout)
    return out[:, :oh, :ow, :]


def _batchnorm_relu_rows(x2d, gamma, beta, m_true, *, eps=1e-5):
    """BatchNorm (training mode: biased batch stats) + ReLU on a [M, C] slab."""
    m, c = x2d.shape
    tb = _pick_row_tile(m)
    m_pad = _round_up(m, tb)
    if m_pad != m:
        # zero rows contribute 0 to sum / sum-of-squares -> stats stay exact.
        x2d = jnp.pad(x2d, ((0, m_pad - m), (0, 0)))

    stats = pl.pallas_call(
        _bn_stats_kernel,
        out_shape=jax.ShapeDtypeStruct((2, c), jnp.float32),
        grid=(m_pad // tb,),
        in_specs=[pl.BlockSpec((tb, c), lambda i: (i, 0))],
        out_specs=pl.BlockSpec((2, c), lambda i: (0, 0)),
        compiler_params=pltpu.CompilerParams(
            dimension_semantics=("arbitrary",),
            vmem_limit_bytes=_VMEM_LIMIT),
    )(x2d)

    # Tiny per-channel finalize in XLA (C elements).
    mean = stats[0] / m_true
    var = jnp.maximum(stats[1] / m_true - mean * mean, 0.0)
    scale = gamma * jax.lax.rsqrt(var + eps)
    shift = beta - mean * scale

    out = pl.pallas_call(
        _bn_apply_kernel,
        out_shape=jax.ShapeDtypeStruct((m_pad, c), jnp.float32),
        grid=(m_pad // tb,),
        in_specs=[
            pl.BlockSpec((tb, c), lambda i: (i, 0)),
            pl.BlockSpec((1, c), lambda i: (0, 0)),
            pl.BlockSpec((1, c), lambda i: (0, 0)),
        ],
        out_specs=pl.BlockSpec((tb, c), lambda i: (i, 0)),
        compiler_params=pltpu.CompilerParams(
            dimension_semantics=("parallel",),
            vmem_limit_bytes=_VMEM_LIMIT),
    )(x2d, scale.reshape(1, c), shift.reshape(1, c))
    return out[:m]


def expand_forward(x, left_tensor, params):
    """Mirror of Expand.forward (PyTorch).  NCHW in / NCHW out; NHWC inside."""
    xh = jnp.transpose(x, (0, 2, 3, 1))            # single layout change at entry
    lh = jnp.transpose(left_tensor, (0, 2, 3, 1))

    # F.interpolate(scale_factor=2, mode='nearest')
    up = jnp.repeat(jnp.repeat(xh, 2, axis=1), 2, axis=2)
    # TODO(synk): the 2x nearest upsample could be folded into the first conv's
    # row indexing to avoid materializing `up`; kept as XLA glue here.

    # self.conv: Conv2d(in, out, k, padding=1)
    out = _conv2d_nhwc(up, params["w0"], params["b0"], padding=1, relu=False)

    # center-crop the skip connection if spatial sizes differ (static shapes)
    if out.shape[1] != lh.shape[1] or out.shape[2] != lh.shape[2]:
        dx_s = math.floor((lh.shape[1] - out.shape[1]) / 2)
        dx_l = math.ceil((lh.shape[1] - out.shape[1]) / 2)
        dy_s = math.floor((lh.shape[2] - out.shape[2]) / 2)
        dy_l = math.ceil((lh.shape[2] - out.shape[2]) / 2)
        lh = lh[:, dx_s:lh.shape[1] - dx_l, dy_s:lh.shape[2] - dy_l, :]

    out = jnp.concatenate((out, lh), axis=-1)

    # self.conv1 (valid) + relu (relu fused into the conv kernel)
    out = _conv2d_nhwc(out, params["w1"], params["b1"], padding=0, relu=True)
    # self.conv2 (valid)
    out = _conv2d_nhwc(out, params["w2"], params["b2"], padding=0, relu=False)

    # BatchNorm2d (training mode: biased batch stats, eps=1e-5) + ReLU
    n, oh, ow, c = out.shape
    out2d = out.reshape(n * oh * ow, c)
    out2d = _batchnorm_relu_rows(out2d, params["gamma"], params["beta"],
                                 m_true=n * oh * ow)
    out = out2d.reshape(n, oh, ow, c)
    return jnp.transpose(out, (0, 3, 1, 2))        # single layout change at exit
    # TODO(synk): BatchNorm running_mean/running_var updates (training-time
    # module-state side effect) are not reproduced; only the forward output is.


# --------------------------- pure-XLA reference --------------------------------

def _reference_forward(x, left_tensor, params):
    def conv(v, wt, b, pad):
        o = jax.lax.conv_general_dilated(
            v, wt, window_strides=(1, 1), padding=[(pad, pad), (pad, pad)],
            dimension_numbers=("NCHW", "OIHW", "NCHW"),
            precision=jax.lax.Precision.HIGHEST)
        return o + b.reshape(1, -1, 1, 1)

    out = jnp.repeat(jnp.repeat(x, 2, axis=2), 2, axis=3)
    out = conv(out, params["w0"], params["b0"], 1)
    lt = left_tensor
    if out.shape[2] != lt.shape[2] or out.shape[3] != lt.shape[3]:
        dx_s = math.floor((lt.shape[2] - out.shape[2]) / 2)
        dx_l = math.ceil((lt.shape[2] - out.shape[2]) / 2)
        dy_s = math.floor((lt.shape[3] - out.shape[3]) / 2)
        dy_l = math.ceil((lt.shape[3] - out.shape[3]) / 2)
        lt = lt[:, :, dx_s:lt.shape[2] - dx_l, dy_s:lt.shape[3] - dy_l]
    out = jnp.concatenate((out, lt), axis=1)
    out = jnp.maximum(conv(out, params["w1"], params["b1"], 0), 0.0)
    out = conv(out, params["w2"], params["b2"], 0)
    mean = jnp.mean(out, axis=(0, 2, 3), keepdims=True)
    var = jnp.mean((out - mean) ** 2, axis=(0, 2, 3), keepdims=True)
    out = (out - mean) * jax.lax.rsqrt(var + 1e-5)
    out = out * params["gamma"].reshape(1, -1, 1, 1) + params["beta"].reshape(1, -1, 1, 1)
    return jnp.maximum(out, 0.0)


# -------------------------------- main ----------------------------------------

if __name__ == "__main__":
    in_channel, out_channel, ksize = 8, 4, 3
    N, H, W = 2, 8, 8                       # x spatial; upsampled -> 16x16

    key = jax.random.PRNGKey(0)
    kx, kl, k0, k1, k2, kb = jax.random.split(key, 6)

    x = jax.random.normal(kx, (N, in_channel, H, W), jnp.float32)
    # skip connection: channels = in_channel - out_channel so concat -> in_channel
    left = jax.random.normal(kl, (N, in_channel - out_channel, 2 * H, 2 * W),
                             jnp.float32)

    params = {
        "w0": 0.1 * jax.random.normal(k0, (out_channel, in_channel, ksize, ksize),
                                      jnp.float32),
        "b0": 0.01 * jnp.arange(out_channel, dtype=jnp.float32),
        "w1": 0.1 * jax.random.normal(k1, (out_channel, in_channel, ksize, ksize),
                                      jnp.float32),
        "b1": 0.01 * jnp.arange(out_channel, dtype=jnp.float32),
        "w2": 0.1 * jax.random.normal(k2, (out_channel, out_channel, ksize, ksize),
                                      jnp.float32),
        "b2": 0.01 * jax.random.normal(kb, (out_channel,), jnp.float32),
        "gamma": jnp.ones((out_channel,), jnp.float32),   # BN weight default
        "beta": jnp.zeros((out_channel,), jnp.float32),   # BN bias default
    }

    out = jax.jit(expand_forward)(x, left, params)
    out = jax.block_until_ready(out)

    expected_shape = (N, out_channel, 2 * H - 4, 2 * W - 4)   # 16x16 -> 14 -> 12
    assert out.shape == expected_shape, (out.shape, expected_shape)
    assert bool(jnp.all(jnp.isfinite(out)))
    assert bool(jnp.all(out >= 0.0))   # final ReLU

    ref = jax.jit(_reference_forward)(x, left, params)
    ref = jax.block_until_ready(ref)
    max_diff = float(jnp.max(jnp.abs(out - ref)))
    assert max_diff < 5e-2, ("mismatch vs XLA reference", max_diff)

    print("KERNEL_OK")
</pallas_src>

<mosaic_0001>
module attributes {stable_mosaic.version = 11 : i64} {
  func.func @_conv_rows_kernel(%arg0: i32, %arg1: i32, %arg2: memref<1x424x8xf32, #tpu.memory_space<vmem>>, %arg3: memref<9x8x4xf32, #tpu.memory_space<vmem>>, %arg4: memref<1x4xf32, #tpu.memory_space<vmem>>, %arg5: memref<1x128x4xf32, #tpu.memory_space<vmem>>) attributes {dimension_semantics = [#tpu.dimension_semantics<parallel>, #tpu.dimension_semantics<parallel>], iteration_bounds = array<i64: 2, 3>, scalar_prefetch = 0 : i64, scratch_operands = 0 : i64, tpu.core_type = #tpu.core_type<tc>, window_params = [{transform_indices = @transform_0, window_bounds = array<i64: 1, 424, 8>}, {pipeline_mode = #tpu.pipeline_mode<synchronous>, transform_indices = @transform_1, window_bounds = array<i64: 9, 8, 4>}, {pipeline_mode = #tpu.pipeline_mode<synchronous>, transform_indices = @transform_2, window_bounds = array<i64: 1, 4>}, {transform_indices = @transform_3, window_bounds = array<i64: 1, 128, 4>}]} {
    %c128_i32 = arith.constant 128 : i32
    %0 = arith.muli %arg1, %c128_i32 : i32
    %1 = tpu.assume_multiple %0, 8 : i32
    %cst = arith.constant 0.000000e+00 : f32
    %2 = vector.broadcast %cst : f32 to vector<128x4xf32>
    %c0_i32 = arith.constant 0 : i32
    %3 = arith.addi %1, %c0_i32 : i32
    %c0 = arith.constant 0 : index
    %4 = arith.index_cast %3 : i32 to index
    %c0_0 = arith.constant 0 : index
    %5 = vector.load %arg2[%c0, %4, %c0_0] : memref<1x424x8xf32, #tpu.memory_space<vmem>>, vector<1x128x8xf32>
    %6 = vector.shape_cast %5 : vector<1x128x8xf32> to vector<128x8xf32>
    %c0_1 = arith.constant 0 : index
    %c0_2 = arith.constant 0 : index
    %c0_3 = arith.constant 0 : index
    %7 = vector.load %arg3[%c0_1, %c0_2, %c0_3] : memref<9x8x4xf32, #tpu.memory_space<vmem>>, vector<1x8x4xf32>
    %8 = vector.shape_cast %7 : vector<1x8x4xf32> to vector<8x4xf32>
    %cst_4 = arith.constant dense<0.000000e+00> : vector<128x4xf32>
    %9 = tpu.matmul %6, %8, %cst_4 {dimension_numbers = #tpu.dot_dimension_numbers<[1], [0], [0], [1], [0, 0, 1, 1], [], []>} : vector<128x8xf32>, vector<8x4xf32>, vector<128x4xf32> -> vector<128x4xf32>
    %10 = arith.addf %2, %9 : vector<128x4xf32>
    %c1_i32 = arith.constant 1 : i32
    %11 = arith.addi %1, %c1_i32 : i32
    %c0_5 = arith.constant 0 : index
    %12 = arith.index_cast %11 : i32 to index
    %c0_6 = arith.constant 0 : index
    %13 = vector.load %arg2[%c0_5, %12, %c0_6] : memref<1x424x8xf32, #tpu.memory_space<vmem>>, vector<1x128x8xf32>
    %14 = vector.shape_cast %13 : vector<1x128x8xf32> to vector<128x8xf32>
    %c1 = arith.constant 1 : index
    %c0_7 = arith.constant 0 : index
    %c0_8 = arith.constant 0 : index
    %15 = vector.load %arg3[%c1, %c0_7, %c0_8] : memref<9x8x4xf32, #tpu.memory_space<vmem>>, vector<1x8x4xf32>
    %16 = vector.shape_cast %15 : vector<1x8x4xf32> to vector<8x4xf32>
    %cst_9 = arith.constant dense<0.000000e+00> : vector<128x4xf32>
    %17 = tpu.matmul %14, %16, %cst_9 {dimension_numbers = #tpu.dot_dimension_numbers<[1], [0], [0], [1], [0, 0, 1, 1], [], []>} : vector<128x8xf32>, vector<8x4xf32>, vector<128x4xf32> -> vector<128x4xf32>
    %18 = arith.addf %10, %17 : vector<128x4xf32>
    %c2_i32 = arith.constant 2 : i32
    %19 = arith.addi %1, %c2_i32 : i32
    %c0_10 = arith.constant 0 : index
    %20 = arith.index_cast %19 : i32 to index
    %c0_11 = arith.constant 0 : index
    %21 = vector.load %arg2[%c0_10, %20, %c0_11] : memref<1x424x8xf32, #tpu.memory_space<vmem>>, vector<1x128x8xf32>
    %22 = vector.shape_cast %21 : vector<1x128x8xf32> to vector<128x8xf32>
    %c2 = arith.constant 2 : index
    %c0_12 = arith.constant 0 : index
    %c0_13 = arith.constant 0 : index
    %23 = vector.load %arg3[%c2, %c0_12, %c0_13] : memref<9x8x4xf32, #tpu.memory_space<vmem>>, vector<1x8x4xf32>
    %24 = vector.shape_cast %23 : vector<1x8x4xf32> to vector<8x4xf32>
    %cst_14 = arith.constant dense<0.000000e+00> : vector<128x4xf32>
    %25 = tpu.matmul %22, %24, %cst_14 {dimension_numbers = #tpu.dot_dimension_numbers<[1], [0], [0], [1], [0, 0, 1, 1], [], []>} : vector<128x8xf32>, vector<8x4xf32>, vector<128x4xf32> -> vector<128x4xf32>
    %26 = arith.addf %18, %25 : vector<128x4xf32>
    %c18_i32 = arith.constant 18 : i32
    %27 = arith.addi %1, %c18_i32 : i32
    %c0_15 = arith.constant 0 : index
    %28 = arith.index_cast %27 : i32 to index
    %c0_16 = arith.constant 0 : index
    %29 = vector.load %arg2[%c0_15, %28, %c0_16] : memref<1x424x8xf32, #tpu.memory_space<vmem>>, vector<1x128x8xf32>
    %30 = vector.shape_cast %29 : vector<1x128x8xf32> to vector<128x8xf32>
    %c3 = arith.constant 3 : index
    %c0_17 = arith.constant 0 : index
    %c0_18 = arith.constant 0 : index
    %31 = vector.load %arg3[%c3, %c0_17, %c0_18] : memref<9x8x4xf32, #tpu.memory_space<vmem>>, vector<1x8x4xf32>
    %32 = vector.shape_cast %31 : vector<1x8x4xf32> to vector<8x4xf32>
    %cst_19 = arith.constant dense<0.000000e+00> : vector<128x4xf32>
    %33 = tpu.matmul %30, %32, %cst_19 {dimension_numbers = #tpu.dot_dimension_numbers<[1], [0], [0], [1], [0, 0, 1, 1], [], []>} : vector<128x8xf32>, vector<8x4xf32>, vector<128x4xf32> -> vector<128x4xf32>
    %34 = arith.addf %26, %33 : vector<128x4xf32>
    %c19_i32 = arith.constant 19 : i32
    %35 = arith.addi %1, %c19_i32 : i32
    %c0_20 = arith.constant 0 : index
    %36 = arith.index_cast %35 : i32 to index
    %c0_21 = arith.constant 0 : index
    %37 = vector.load %arg2[%c0_20, %36, %c0_21] : memref<1x424x8xf32, #tpu.memory_space<vmem>>, vector<1x128x8xf32>
    %38 = vector.shape_cast %37 : vector<1x128x8xf32> to vector<128x8xf32>
    %c4 = arith.constant 4 : index
    %c0_22 = arith.constant 0 : index
    %c0_23 = arith.constant 0 : index
    %39 = vector.load %arg3[%c4, %c0_22, %c0_23] : memref<9x8x4xf32, #tpu.memory_space<vmem>>, vector<1x8x4xf32>
    %40 = vector.shape_cast %39 : vector<1x8x4xf32> to vector<8x4xf32>
    %cst_24 = arith.constant dense<0.000000e+00> : vector<128x4xf32>
    %41 = tpu.matmul %38, %40, %cst_24 {dimension_numbers = #tpu.dot_dimension_numbers<[1], [0], [0], [1], [0, 0, 1, 1], [], []>} : vector<128x8xf32>, vector<8x4xf32>, vector<128x4xf32> -> vector<128x4xf32>
    %42 = arith.addf %34, %41 : vector<128x4xf32>
    %c20_i32 = arith.constant 20 : i32
    %43 = arith.addi %1, %c20_i32 : i32
    %c0_25 = arith.constant 0 : index
    %44 = arith.index_cast %43 : i32 to index
    %c0_26 = arith.constant 0 : index
    %45 = vector.load %arg2[%c0_25, %44, %c0_26] : memref<1x424x8xf32, #tpu.memory_space<vmem>>, vector<1x128x8xf32>
    %46 = vector.shape_cast %45 : vector<1x128x8xf32> to vector<128x8xf32>
    %c5 = arith.constant 5 : index
    %c0_27 = arith.constant 0 : index
    %c0_28 = arith.constant 0 : index
    %47 = vector.load %arg3[%c5, %c0_27, %c0_28] : memref<9x8x4xf32, #tpu.memory_space<vmem>>, vector<1x8x4xf32>
    %48 = vector.shape_cast %47 : vector<1x8x4xf32> to vector<8x4xf32>
    %cst_29 = arith.constant dense<0.000000e+00> : vector<128x4xf32>
    %49 = tpu.matmul %46, %48, %cst_29 {dimension_numbers = #tpu.dot_dimension_numbers<[1], [0], [0], [1], [0, 0, 1, 1], [], []>} : vector<128x8xf32>, vector<8x4xf32>, vector<128x4xf32> -> vector<128x4xf32>
    %50 = arith.addf %42, %49 : vector<128x4xf32>
    %c36_i32 = arith.constant 36 : i32
    %51 = arith.addi %1, %c36_i32 : i32
    %c0_30 = arith.constant 0 : index
    %52 = arith.index_cast %51 : i32 to index
    %c0_31 = arith.constant 0 : index
    %53 = vector.load %arg2[%c0_30, %52, %c0_31] : memref<1x424x8xf32, #tpu.memory_space<vmem>>, vector<1x128x8xf32>
    %54 = vector.shape_cast %53 : vector<1x128x8xf32> to vector<128x8xf32>
    %c6 = arith.constant 6 : index
    %c0_32 = arith.constant 0 : index
    %c0_33 = arith.constant 0 : index
    %55 = vector.load %arg3[%c6, %c0_32, %c0_33] : memref<9x8x4xf32, #tpu.memory_space<vmem>>, vector<1x8x4xf32>
    %56 = vector.shape_cast %55 : vector<1x8x4xf32> to vector<8x4xf32>
    %cst_34 = arith.constant dense<0.000000e+00> : vector<128x4xf32>
    %57 = tpu.matmul %54, %56, %cst_34 {dimension_numbers = #tpu.dot_dimension_numbers<[1], [0], [0], [1], [0, 0, 1, 1], [], []>} : vector<128x8xf32>, vector<8x4xf32>, vector<128x4xf32> -> vector<128x4xf32>
    %58 = arith.addf %50, %57 : vector<128x4xf32>
    %c37_i32 = arith.constant 37 : i32
    %59 = arith.addi %1, %c37_i32 : i32
    %c0_35 = arith.constant 0 : index
    %60 = arith.index_cast %59 : i32 to index
    %c0_36 = arith.constant 0 : index
    %61 = vector.load %arg2[%c0_35, %60, %c0_36] : memref<1x424x8xf32, #tpu.memory_space<vmem>>, vector<1x128x8xf32>
    %62 = vector.shape_cast %61 : vector<1x128x8xf32> to vector<128x8xf32>
    %c7 = arith.constant 7 : index
    %c0_37 = arith.constant 0 : index
    %c0_38 = arith.constant 0 : index
    %63 = vector.load %arg3[%c7, %c0_37, %c0_38] : memref<9x8x4xf32, #tpu.memory_space<vmem>>, vector<1x8x4xf32>
    %64 = vector.shape_cast %63 : vector<1x8x4xf32> to vector<8x4xf32>
    %cst_39 = arith.constant dense<0.000000e+00> : vector<128x4xf32>
    %65 = tpu.matmul %62, %64, %cst_39 {dimension_numbers = #tpu.dot_dimension_numbers<[1], [0], [0], [1], [0, 0, 1, 1], [], []>} : vector<128x8xf32>, vector<8x4xf32>, vector<128x4xf32> -> vector<128x4xf32>
    %66 = arith.addf %58, %65 : vector<128x4xf32>
    %c38_i32 = arith.constant 38 : i32
    %67 = arith.addi %1, %c38_i32 : i32
    %c0_40 = arith.constant 0 : index
    %68 = arith.index_cast %67 : i32 to index
    %c0_41 = arith.constant 0 : index
    %69 = vector.load %arg2[%c0_40, %68, %c0_41] : memref<1x424x8xf32, #tpu.memory_space<vmem>>, vector<1x128x8xf32>
    %70 = vector.shape_cast %69 : vector<1x128x8xf32> to vector<128x8xf32>
    %c8 = arith.constant 8 : index
    %c0_42 = arith.constant 0 : index
    %c0_43 = arith.constant 0 : index
    %71 = vector.load %arg3[%c8, %c0_42, %c0_43] : memref<9x8x4xf32, #tpu.memory_space<vmem>>, vector<1x8x4xf32>
    %72 = vector.shape_cast %71 : vector<1x8x4xf32> to vector<8x4xf32>
    %cst_44 = arith.constant dense<0.000000e+00> : vector<128x4xf32>
    %73 = tpu.matmul %70, %72, %cst_44 {dimension_numbers = #tpu.dot_dimension_numbers<[1], [0], [0], [1], [0, 0, 1, 1], [], []>} : vector<128x8xf32>, vector<8x4xf32>, vector<128x4xf32> -> vector<128x4xf32>
    %74 = arith.addf %66, %73 : vector<128x4xf32>
    %c0_45 = arith.constant 0 : index
    %c0_46 = arith.constant 0 : index
    %75 = vector.load %arg4[%c0_45, %c0_46] : memref<1x4xf32, #tpu.memory_space<vmem>>, vector<1x4xf32>
    %76 = vector.broadcast %75 : vector<1x4xf32> to vector<128x4xf32>
    %77 = arith.addf %74, %76 : vector<128x4xf32>
    %c0_47 = arith.constant 0 : index
    %c0_48 = arith.constant 0 : index
    %c0_49 = arith.constant 0 : index
    %78 = vector.load %arg5[%c0_47, %c0_48, %c0_49] : memref<1x128x4xf32, #tpu.memory_space<vmem>>, vector<1x128x4xf32>
    %79 = vector.shape_cast %78 : vector<1x128x4xf32> to vector<128x4xf32>
    %80 = vector.shape_cast %77 : vector<128x4xf32> to vector<1x128x4xf32>
    tpu.vector_store %arg5[%c0_47, %c0_48, %c0_49], %80 {strides = array<i32>} : memref<1x128x4xf32, #tpu.memory_space<vmem>>, vector<1x128x4xf32>,
    return
  }
  func.func @transform_0(%arg0: i32, %arg1: i32) -> (i32, i32, i32) {
    %c0_i32 = arith.constant 0 : i32
    %c0_i32_0 = arith.constant 0 : i32
    %c0_i32_1 = arith.constant 0 : i32
    return %arg0, %c0_i32, %c0_i32_0 : i32, i32, i32
  }
  func.func @transform_1(%arg0: i32, %arg1: i32) -> (i32, i32, i32) {
    %c0_i32 = arith.constant 0 : i32
    %c0_i32_0 = arith.constant 0 : i32
    %c0_i32_1 = arith.constant 0 : i32
    %c0_i32_2 = arith.constant 0 : i32
    return %c0_i32, %c0_i32_0, %c0_i32_1 : i32, i32, i32
  }
  func.func @transform_2(%arg0: i32, %arg1: i32) -> (i32, i32) {
    %c0_i32 = arith.constant 0 : i32
    %c0_i32_0 = arith.constant 0 : i32
    %c0_i32_1 = arith.constant 0 : i32
    return %c0_i32, %c0_i32_0 : i32, i32
  }
  func.func @transform_3(%arg0: i32, %arg1: i32) -> (i32, i32, i32) {
    %c0_i32 = arith.constant 0 : i32
    %c0_i32_0 = arith.constant 0 : i32
    return %arg0, %arg1, %c0_i32 : i32, i32, i32
  }
}

module attributes {stable_mosaic.version = 11 : i64} {
  func.func @_conv_rows_kernel(%arg0: i32, %arg1: i32, %arg2: memref<1x296x8xf32, #tpu.memory_space<vmem>>, %arg3: memref<9x8x4xf32, #tpu.memory_space<vmem>>, %arg4: memref<1x4xf32, #tpu.memory_space<vmem>>, %arg5: memref<1x128x4xf32, #tpu.memory_space<vmem>>) attributes {dimension_semantics = [#tpu.dimension_semantics<parallel>, #tpu.dimension_semantics<parallel>], iteration_bounds = array<i64: 2, 2>, scalar_prefetch = 0 : i64, scratch_operands = 0 : i64, tpu.core_type = #tpu.core_type<tc>, window_params = [{transform_indices = @transform_0, window_bounds = array<i64: 1, 296, 8>}, {pipeline_mode = #tpu.pipeline_mode<synchronous>, transform_indices = @transform_1, window_bounds = array<i64: 9, 8, 4>}, {pipeline_mode = #tpu.pipeline_mode<synchronous>, transform_indices = @transform_2, window_bounds = array<i64: 1, 4>}, {transform_indices = @transform_3, window_bounds = array<i64: 1, 128, 4>}]} {
    %c128_i32 = arith.constant 128 : i32
    %0 = arith.muli %arg1, %c128_i32 : i32
    %1 = tpu.assume_multiple %0, 8 : i32
    %cst = arith.constant 0.000000e+00 : f32
    %2 = vector.broadcast %cst : f32 to vector<128x4xf32>
    %c0_i32 = arith.constant 0 : i32
    %3 = arith.addi %1, %c0_i32 : i32
    %c0 = arith.constant 0 : index
    %4 = arith.index_cast %3 : i32 to index
    %c0_0 = arith.constant 0 : index
    %5 = vector.load %arg2[%c0, %4, %c0_0] : memref<1x296x8xf32, #tpu.memory_space<vmem>>, vector<1x128x8xf32>
    %6 = vector.shape_cast %5 : vector<1x128x8xf32> to vector<128x8xf32>
    %c0_1 = arith.constant 0 : index
    %c0_2 = arith.constant 0 : index
    %c0_3 = arith.constant 0 : index
    %7 = vector.load %arg3[%c0_1, %c0_2, %c0_3] : memref<9x8x4xf32, #tpu.memory_space<vmem>>, vector<1x8x4xf32>
    %8 = vector.shape_cast %7 : vector<1x8x4xf32> to vector<8x4xf32>
    %cst_4 = arith.constant dense<0.000000e+00> : vector<128x4xf32>
    %9 = tpu.matmul %6, %8, %cst_4 {dimension_numbers = #tpu.dot_dimension_numbers<[1], [0], [0], [1], [0, 0, 1, 1], [], []>} : vector<128x8xf32>, vector<8x4xf32>, vector<128x4xf32> -> vector<128x4xf32>
    %10 = arith.addf %2, %9 : vector<128x4xf32>
    %c1_i32 = arith.constant 1 : i32
    %11 = arith.addi %1, %c1_i32 : i32
    %c0_5 = arith.constant 0 : index
    %12 = arith.index_cast %11 : i32 to index
    %c0_6 = arith.constant 0 : index
    %13 = vector.load %arg2[%c0_5, %12, %c0_6] : memref<1x296x8xf32, #tpu.memory_space<vmem>>, vector<1x128x8xf32>
    %14 = vector.shape_cast %13 : vector<1x128x8xf32> to vector<128x8xf32>
    %c1 = arith.constant 1 : index
    %c0_7 = arith.constant 0 : index
    %c0_8 = arith.constant 0 : index
    %15 = vector.load %arg3[%c1, %c0_7, %c0_8] : memref<9x8x4xf32, #tpu.memory_space<vmem>>, vector<1x8x4xf32>
    %16 = vector.shape_cast %15 : vector<1x8x4xf32> to vector<8x4xf32>
    %cst_9 = arith.constant dense<0.000000e+00> : vector<128x4xf32>
    %17 = tpu.matmul %14, %16, %cst_9 {dimension_numbers = #tpu.dot_dimension_numbers<[1], [0], [0], [1], [0, 0, 1, 1], [], []>} : vector<128x8xf32>, vector<8x4xf32>, vector<128x4xf32> -> vector<128x4xf32>
    %18 = arith.addf %10, %17 : vector<128x4xf32>
    %c2_i32 = arith.constant 2 : i32
    %19 = arith.addi %1, %c2_i32 : i32
    %c0_10 = arith.constant 0 : index
    %20 = arith.index_cast %19 : i32 to index
    %c0_11 = arith.constant 0 : index
    %21 = vector.load %arg2[%c0_10, %20, %c0_11] : memref<1x296x8xf32, #tpu.memory_space<vmem>>, vector<1x128x8xf32>
    %22 = vector.shape_cast %21 : vector<1x128x8xf32> to vector<128x8xf32>
    %c2 = arith.constant 2 : index
    %c0_12 = arith.constant 0 : index
    %c0_13 = arith.constant 0 : index
    %23 = vector.load %arg3[%c2, %c0_12, %c0_13] : memref<9x8x4xf32, #tpu.memory_space<vmem>>, vector<1x8x4xf32>
    %24 = vector.shape_cast %23 : vector<1x8x4xf32> to vector<8x4xf32>
    %cst_14 = arith.constant dense<0.000000e+00> : vector<128x4xf32>
    %25 = tpu.matmul %22, %24, %cst_14 {dimension_numbers = #tpu.dot_dimension_numbers<[1], [0], [0], [1], [0, 0, 1, 1], [], []>} : vector<128x8xf32>, vector<8x4xf32>, vector<128x4xf32> -> vector<128x4xf32>
    %26 = arith.addf %18, %25 : vector<128x4xf32>
    %c16_i32 = arith.constant 16 : i32
    %27 = arith.addi %1, %c16_i32 : i32
    %c0_15 = arith.constant 0 : index
    %28 = arith.index_cast %27 : i32 to index
    %c0_16 = arith.constant 0 : index
    %29 = vector.load %arg2[%c0_15, %28, %c0_16] : memref<1x296x8xf32, #tpu.memory_space<vmem>>, vector<1x128x8xf32>
    %30 = vector.shape_cast %29 : vector<1x128x8xf32> to vector<128x8xf32>
    %c3 = arith.constant 3 : index
    %c0_17 = arith.constant 0 : index
    %c0_18 = arith.constant 0 : index
    %31 = vector.load %arg3[%c3, %c0_17, %c0_18] : memref<9x8x4xf32, #tpu.memory_space<vmem>>, vector<1x8x4xf32>
    %32 = vector.shape_cast %31 : vector<1x8x4xf32> to vector<8x4xf32>
    %cst_19 = arith.constant dense<0.000000e+00> : vector<128x4xf32>
    %33 = tpu.matmul %30, %32, %cst_19 {dimension_numbers = #tpu.dot_dimension_numbers<[1], [0], [0], [1], [0, 0, 1, 1], [], []>} : vector<128x8xf32>, vector<8x4xf32>, vector<128x4xf32> -> vector<128x4xf32>
    %34 = arith.addf %26, %33 : vector<128x4xf32>
    %c17_i32 = arith.constant 17 : i32
    %35 = arith.addi %1, %c17_i32 : i32
    %c0_20 = arith.constant 0 : index
    %36 = arith.index_cast %35 : i32 to index
    %c0_21 = arith.constant 0 : index
    %37 = vector.load %arg2[%c0_20, %36, %c0_21] : memref<1x296x8xf32, #tpu.memory_space<vmem>>, vector<1x128x8xf32>
    %38 = vector.shape_cast %37 : vector<1x128x8xf32> to vector<128x8xf32>
    %c4 = arith.constant 4 : index
    %c0_22 = arith.constant 0 : index
    %c0_23 = arith.constant 0 : index
    %39 = vector.load %arg3[%c4, %c0_22, %c0_23] : memref<9x8x4xf32, #tpu.memory_space<vmem>>, vector<1x8x4xf32>
    %40 = vector.shape_cast %39 : vector<1x8x4xf32> to vector<8x4xf32>
    %cst_24 = arith.constant dense<0.000000e+00> : vector<128x4xf32>
    %41 = tpu.matmul %38, %40, %cst_24 {dimension_numbers = #tpu.dot_dimension_numbers<[1], [0], [0], [1], [0, 0, 1, 1], [], []>} : vector<128x8xf32>, vector<8x4xf32>, vector<128x4xf32> -> vector<128x4xf32>
    %42 = arith.addf %34, %41 : vector<128x4xf32>
    %c18_i32 = arith.constant 18 : i32
    %43 = arith.addi %1, %c18_i32 : i32
    %c0_25 = arith.constant 0 : index
    %44 = arith.index_cast %43 : i32 to index
    %c0_26 = arith.constant 0 : index
    %45 = vector.load %arg2[%c0_25, %44, %c0_26] : memref<1x296x8xf32, #tpu.memory_space<vmem>>, vector<1x128x8xf32>
    %46 = vector.shape_cast %45 : vector<1x128x8xf32> to vector<128x8xf32>
    %c5 = arith.constant 5 : index
    %c0_27 = arith.constant 0 : index
    %c0_28 = arith.constant 0 : index
    %47 = vector.load %arg3[%c5, %c0_27, %c0_28] : memref<9x8x4xf32, #tpu.memory_space<vmem>>, vector<1x8x4xf32>
    %48 = vector.shape_cast %47 : vector<1x8x4xf32> to vector<8x4xf32>
    %cst_29 = arith.constant dense<0.000000e+00> : vector<128x4xf32>
    %49 = tpu.matmul %46, %48, %cst_29 {dimension_numbers = #tpu.dot_dimension_numbers<[1], [0], [0], [1], [0, 0, 1, 1], [], []>} : vector<128x8xf32>, vector<8x4xf32>, vector<128x4xf32> -> vector<128x4xf32>
    %50 = arith.addf %42, %49 : vector<128x4xf32>
    %c32_i32 = arith.constant 32 : i32
    %51 = arith.addi %1, %c32_i32 : i32
    %c0_30 = arith.constant 0 : index
    %52 = arith.index_cast %51 : i32 to index
    %c0_31 = arith.constant 0 : index
    %53 = vector.load %arg2[%c0_30, %52, %c0_31] : memref<1x296x8xf32, #tpu.memory_space<vmem>>, vector<1x128x8xf32>
    %54 = vector.shape_cast %53 : vector<1x128x8xf32> to vector<128x8xf32>
    %c6 = arith.constant 6 : index
    %c0_32 = arith.constant 0 : index
    %c0_33 = arith.constant 0 : index
    %55 = vector.load %arg3[%c6, %c0_32, %c0_33] : memref<9x8x4xf32, #tpu.memory_space<vmem>>, vector<1x8x4xf32>
    %56 = vector.shape_cast %55 : vector<1x8x4xf32> to vector<8x4xf32>
    %cst_34 = arith.constant dense<0.000000e+00> : vector<128x4xf32>
    %57 = tpu.matmul %54, %56, %cst_34 {dimension_numbers = #tpu.dot_dimension_numbers<[1], [0], [0], [1], [0, 0, 1, 1], [], []>} : vector<128x8xf32>, vector<8x4xf32>, vector<128x4xf32> -> vector<128x4xf32>
    %58 = arith.addf %50, %57 : vector<128x4xf32>
    %c33_i32 = arith.constant 33 : i32
    %59 = arith.addi %1, %c33_i32 : i32
    %c0_35 = arith.constant 0 : index
    %60 = arith.index_cast %59 : i32 to index
    %c0_36 = arith.constant 0 : index
    %61 = vector.load %arg2[%c0_35, %60, %c0_36] : memref<1x296x8xf32, #tpu.memory_space<vmem>>, vector<1x128x8xf32>
    %62 = vector.shape_cast %61 : vector<1x128x8xf32> to vector<128x8xf32>
    %c7 = arith.constant 7 : index
    %c0_37 = arith.constant 0 : index
    %c0_38 = arith.constant 0 : index
    %63 = vector.load %arg3[%c7, %c0_37, %c0_38] : memref<9x8x4xf32, #tpu.memory_space<vmem>>, vector<1x8x4xf32>
    %64 = vector.shape_cast %63 : vector<1x8x4xf32> to vector<8x4xf32>
    %cst_39 = arith.constant dense<0.000000e+00> : vector<128x4xf32>
    %65 = tpu.matmul %62, %64, %cst_39 {dimension_numbers = #tpu.dot_dimension_numbers<[1], [0], [0], [1], [0, 0, 1, 1], [], []>} : vector<128x8xf32>, vector<8x4xf32>, vector<128x4xf32> -> vector<128x4xf32>
    %66 = arith.addf %58, %65 : vector<128x4xf32>
    %c34_i32 = arith.constant 34 : i32
    %67 = arith.addi %1, %c34_i32 : i32
    %c0_40 = arith.constant 0 : index
    %68 = arith.index_cast %67 : i32 to index
    %c0_41 = arith.constant 0 : index
    %69 = vector.load %arg2[%c0_40, %68, %c0_41] : memref<1x296x8xf32, #tpu.memory_space<vmem>>, vector<1x128x8xf32>
    %70 = vector.shape_cast %69 : vector<1x128x8xf32> to vector<128x8xf32>
    %c8 = arith.constant 8 : index
    %c0_42 = arith.constant 0 : index
    %c0_43 = arith.constant 0 : index
    %71 = vector.load %arg3[%c8, %c0_42, %c0_43] : memref<9x8x4xf32, #tpu.memory_space<vmem>>, vector<1x8x4xf32>
    %72 = vector.shape_cast %71 : vector<1x8x4xf32> to vector<8x4xf32>
    %cst_44 = arith.constant dense<0.000000e+00> : vector<128x4xf32>
    %73 = tpu.matmul %70, %72, %cst_44 {dimension_numbers = #tpu.dot_dimension_numbers<[1], [0], [0], [1], [0, 0, 1, 1], [], []>} : vector<128x8xf32>, vector<8x4xf32>, vector<128x4xf32> -> vector<128x4xf32>
    %74 = arith.addf %66, %73 : vector<128x4xf32>
    %c0_45 = arith.constant 0 : index
    %c0_46 = arith.constant 0 : index
    %75 = vector.load %arg4[%c0_45, %c0_46] : memref<1x4xf32, #tpu.memory_space<vmem>>, vector<1x4xf32>
    %76 = vector.broadcast %75 : vector<1x4xf32> to vector<128x4xf32>
    %77 = arith.addf %74, %76 : vector<128x4xf32>
    %cst_47 = arith.constant 0.000000e+00 : f32
    %78 = vector.broadcast %cst_47 : f32 to vector<128x4xf32>
    %79 = arith.maximumf %77, %78 : vector<128x4xf32>
    %c0_48 = arith.constant 0 : index
    %c0_49 = arith.constant 0 : index
    %c0_50 = arith.constant 0 : index
    %80 = vector.load %arg5[%c0_48, %c0_49, %c0_50] : memref<1x128x4xf32, #tpu.memory_space<vmem>>, vector<1x128x4xf32>
    %81 = vector.shape_cast %80 : vector<1x128x4xf32> to vector<128x4xf32>
    %82 = vector.shape_cast %79 : vector<128x4xf32> to vector<1x128x4xf32>
    tpu.vector_store %arg5[%c0_48, %c0_49, %c0_50], %82 {strides = array<i32>} : memref<1x128x4xf32, #tpu.memory_space<vmem>>, vector<1x128x4xf32>,
    return
  }
  func.func @transform_0(%arg0: i32, %arg1: i32) -> (i32, i32, i32) {
    %c0_i32 = arith.constant 0 : i32
    %c0_i32_0 = arith.constant 0 : i32
    %c0_i32_1 = arith.constant 0 : i32
    return %arg0, %c0_i32, %c0_i32_0 : i32, i32, i32
  }
  func.func @transform_1(%arg0: i32, %arg1: i32) -> (i32, i32, i32) {
    %c0_i32 = arith.constant 0 : i32
    %c0_i32_0 = arith.constant 0 : i32
    %c0_i32_1 = arith.constant 0 : i32
    %c0_i32_2 = arith.constant 0 : i32
    return %c0_i32, %c0_i32_0, %c0_i32_1 : i32, i32, i32
  }
  func.func @transform_2(%arg0: i32, %arg1: i32) -> (i32, i32) {
    %c0_i32 = arith.constant 0 : i32
    %c0_i32_0 = arith.constant 0 : i32
    %c0_i32_1 = arith.constant 0 : i32
    return %c0_i32, %c0_i32_0 : i32, i32
  }
  func.func @transform_3(%arg0: i32, %arg1: i32) -> (i32, i32, i32) {
    %c0_i32 = arith.constant 0 : i32
    %c0_i32_0 = arith.constant 0 : i32
    return %arg0, %arg1, %c0_i32 : i32, i32, i32
  }
}

module attributes {stable_mosaic.version = 11 : i64} {
  func.func @_conv_rows_kernel(%arg0: i32, %arg1: i32, %arg2: memref<1x288x4xf32, #tpu.memory_space<vmem>>, %arg3: memref<9x4x4xf32, #tpu.memory_space<vmem>>, %arg4: memref<1x4xf32, #tpu.memory_space<vmem>>, %arg5: memref<1x128x4xf32, #tpu.memory_space<vmem>>) attributes {dimension_semantics = [#tpu.dimension_semantics<parallel>, #tpu.dimension_semantics<parallel>], iteration_bounds = array<i64: 2, 2>, scalar_prefetch = 0 : i64, scratch_operands = 0 : i64, tpu.core_type = #tpu.core_type<tc>, window_params = [{transform_indices = @transform_0, window_bounds = array<i64: 1, 288, 4>}, {pipeline_mode = #tpu.pipeline_mode<synchronous>, transform_indices = @transform_1, window_bounds = array<i64: 9, 4, 4>}, {pipeline_mode = #tpu.pipeline_mode<synchronous>, transform_indices = @transform_2, window_bounds = array<i64: 1, 4>}, {transform_indices = @transform_3, window_bounds = array<i64: 1, 128, 4>}]} {
    %c128_i32 = arith.constant 128 : i32
    %0 = arith.muli %arg1, %c128_i32 : i32
    %1 = tpu.assume_multiple %0, 8 : i32
    %cst = arith.constant 0.000000e+00 : f32
    %2 = vector.broadcast %cst : f32 to vector<128x4xf32>
    %c0_i32 = arith.constant 0 : i32
    %3 = arith.addi %1, %c0_i32 : i32
    %c0 = arith.constant 0 : index
    %4 = arith.index_cast %3 : i32 to index
    %c0_0 = arith.constant 0 : index
    %5 = vector.load %arg2[%c0, %4, %c0_0] : memref<1x288x4xf32, #tpu.memory_space<vmem>>, vector<1x128x4xf32>
    %6 = vector.shape_cast %5 : vector<1x128x4xf32> to vector<128x4xf32>
    %c0_1 = arith.constant 0 : index
    %c0_2 = arith.constant 0 : index
    %c0_3 = arith.constant 0 : index
    %7 = vector.load %arg3[%c0_1, %c0_2, %c0_3] : memref<9x4x4xf32, #tpu.memory_space<vmem>>, vector<1x4x4xf32>
    %8 = vector.shape_cast %7 : vector<1x4x4xf32> to vector<4x4xf32>
    %cst_4 = arith.constant dense<0.000000e+00> : vector<128x4xf32>
    %9 = tpu.matmul %6, %8, %cst_4 {dimension_numbers = #tpu.dot_dimension_numbers<[1], [0], [0], [1], [0, 0, 1, 1], [], []>} : vector<128x4xf32>, vector<4x4xf32>, vector<128x4xf32> -> vector<128x4xf32>
    %10 = arith.addf %2, %9 : vector<128x4xf32>
    %c1_i32 = arith.constant 1 : i32
    %11 = arith.addi %1, %c1_i32 : i32
    %c0_5 = arith.constant 0 : index
    %12 = arith.index_cast %11 : i32 to index
    %c0_6 = arith.constant 0 : index
    %13 = vector.load %arg2[%c0_5, %12, %c0_6] : memref<1x288x4xf32, #tpu.memory_space<vmem>>, vector<1x128x4xf32>
    %14 = vector.shape_cast %13 : vector<1x128x4xf32> to vector<128x4xf32>
    %c1 = arith.constant 1 : index
    %c0_7 = arith.constant 0 : index
    %c0_8 = arith.constant 0 : index
    %15 = vector.load %arg3[%c1, %c0_7, %c0_8] : memref<9x4x4xf32, #tpu.memory_space<vmem>>, vector<1x4x4xf32>
    %16 = vector.shape_cast %15 : vector<1x4x4xf32> to vector<4x4xf32>
    %cst_9 = arith.constant dense<0.000000e+00> : vector<128x4xf32>
    %17 = tpu.matmul %14, %16, %cst_9 {dimension_numbers = #tpu.dot_dimension_numbers<[1], [0], [0], [1], [0, 0, 1, 1], [], []>} : vector<128x4xf32>, vector<4x4xf32>, vector<128x4xf32> -> vector<128x4xf32>
    %18 = arith.addf %10, %17 : vector<128x4xf32>
    %c2_i32 = arith.constant 2 : i32
    %19 = arith.addi %1, %c2_i32 : i32
    %c0_10 = arith.constant 0 : index
    %20 = arith.index_cast %19 : i32 to index
    %c0_11 = arith.constant 0 : index
    %21 = vector.load %arg2[%c0_10, %20, %c0_11] : memref<1x288x4xf32, #tpu.memory_space<vmem>>, vector<1x128x4xf32>
    %22 = vector.shape_cast %21 : vector<1x128x4xf32> to vector<128x4xf32>
    %c2 = arith.constant 2 : index
    %c0_12 = arith.constant 0 : index
    %c0_13 = arith.constant 0 : index
    %23 = vector.load %arg3[%c2, %c0_12, %c0_13] : memref<9x4x4xf32, #tpu.memory_space<vmem>>, vector<1x4x4xf32>
    %24 = vector.shape_cast %23 : vector<1x4x4xf32> to vector<4x4xf32>
    %cst_14 = arith.constant dense<0.000000e+00> : vector<128x4xf32>
    %25 = tpu.matmul %22, %24, %cst_14 {dimension_numbers = #tpu.dot_dimension_numbers<[1], [0], [0], [1], [0, 0, 1, 1], [], []>} : vector<128x4xf32>, vector<4x4xf32>, vector<128x4xf32> -> vector<128x4xf32>
    %26 = arith.addf %18, %25 : vector<128x4xf32>
    %c14_i32 = arith.constant 14 : i32
    %27 = arith.addi %1, %c14_i32 : i32
    %c0_15 = arith.constant 0 : index
    %28 = arith.index_cast %27 : i32 to index
    %c0_16 = arith.constant 0 : index
    %29 = vector.load %arg2[%c0_15, %28, %c0_16] : memref<1x288x4xf32, #tpu.memory_space<vmem>>, vector<1x128x4xf32>
    %30 = vector.shape_cast %29 : vector<1x128x4xf32> to vector<128x4xf32>
    %c3 = arith.constant 3 : index
    %c0_17 = arith.constant 0 : index
    %c0_18 = arith.constant 0 : index
    %31 = vector.load %arg3[%c3, %c0_17, %c0_18] : memref<9x4x4xf32, #tpu.memory_space<vmem>>, vector<1x4x4xf32>
    %32 = vector.shape_cast %31 : vector<1x4x4xf32> to vector<4x4xf32>
    %cst_19 = arith.constant dense<0.000000e+00> : vector<128x4xf32>
    %33 = tpu.matmul %30, %32, %cst_19 {dimension_numbers = #tpu.dot_dimension_numbers<[1], [0], [0], [1], [0, 0, 1, 1], [], []>} : vector<128x4xf32>, vector<4x4xf32>, vector<128x4xf32> -> vector<128x4xf32>
    %34 = arith.addf %26, %33 : vector<128x4xf32>
    %c15_i32 = arith.constant 15 : i32
    %35 = arith.addi %1, %c15_i32 : i32
    %c0_20 = arith.constant 0 : index
    %36 = arith.index_cast %35 : i32 to index
    %c0_21 = arith.constant 0 : index
    %37 = vector.load %arg2[%c0_20, %36, %c0_21] : memref<1x288x4xf32, #tpu.memory_space<vmem>>, vector<1x128x4xf32>
    %38 = vector.shape_cast %37 : vector<1x128x4xf32> to vector<128x4xf32>
    %c4 = arith.constant 4 : index
    %c0_22 = arith.constant 0 : index
    %c0_23 = arith.constant 0 : index
    %39 = vector.load %arg3[%c4, %c0_22, %c0_23] : memref<9x4x4xf32, #tpu.memory_space<vmem>>, vector<1x4x4xf32>
    %40 = vector.shape_cast %39 : vector<1x4x4xf32> to vector<4x4xf32>
    %cst_24 = arith.constant dense<0.000000e+00> : vector<128x4xf32>
    %41 = tpu.matmul %38, %40, %cst_24 {dimension_numbers = #tpu.dot_dimension_numbers<[1], [0], [0], [1], [0, 0, 1, 1], [], []>} : vector<128x4xf32>, vector<4x4xf32>, vector<128x4xf32> -> vector<128x4xf32>
    %42 = arith.addf %34, %41 : vector<128x4xf32>
    %c16_i32 = arith.constant 16 : i32
    %43 = arith.addi %1, %c16_i32 : i32
    %c0_25 = arith.constant 0 : index
    %44 = arith.index_cast %43 : i32 to index
    %c0_26 = arith.constant 0 : index
    %45 = vector.load %arg2[%c0_25, %44, %c0_26] : memref<1x288x4xf32, #tpu.memory_space<vmem>>, vector<1x128x4xf32>
    %46 = vector.shape_cast %45 : vector<1x128x4xf32> to vector<128x4xf32>
    %c5 = arith.constant 5 : index
    %c0_27 = arith.constant 0 : index
    %c0_28 = arith.constant 0 : index
    %47 = vector.load %arg3[%c5, %c0_27, %c0_28] : memref<9x4x4xf32, #tpu.memory_space<vmem>>, vector<1x4x4xf32>
    %48 = vector.shape_cast %47 : vector<1x4x4xf32> to vector<4x4xf32>
    %cst_29 = arith.constant dense<0.000000e+00> : vector<128x4xf32>
    %49 = tpu.matmul %46, %48, %cst_29 {dimension_numbers = #tpu.dot_dimension_numbers<[1], [0], [0], [1], [0, 0, 1, 1], [], []>} : vector<128x4xf32>, vector<4x4xf32>, vector<128x4xf32> -> vector<128x4xf32>
    %50 = arith.addf %42, %49 : vector<128x4xf32>
    %c28_i32 = arith.constant 28 : i32
    %51 = arith.addi %1, %c28_i32 : i32
    %c0_30 = arith.constant 0 : index
    %52 = arith.index_cast %51 : i32 to index
    %c0_31 = arith.constant 0 : index
    %53 = vector.load %arg2[%c0_30, %52, %c0_31] : memref<1x288x4xf32, #tpu.memory_space<vmem>>, vector<1x128x4xf32>
    %54 = vector.shape_cast %53 : vector<1x128x4xf32> to vector<128x4xf32>
    %c6 = arith.constant 6 : index
    %c0_32 = arith.constant 0 : index
    %c0_33 = arith.constant 0 : index
    %55 = vector.load %arg3[%c6, %c0_32, %c0_33] : memref<9x4x4xf32, #tpu.memory_space<vmem>>, vector<1x4x4xf32>
    %56 = vector.shape_cast %55 : vector<1x4x4xf32> to vector<4x4xf32>
    %cst_34 = arith.constant dense<0.000000e+00> : vector<128x4xf32>
    %57 = tpu.matmul %54, %56, %cst_34 {dimension_numbers = #tpu.dot_dimension_numbers<[1], [0], [0], [1], [0, 0, 1, 1], [], []>} : vector<128x4xf32>, vector<4x4xf32>, vector<128x4xf32> -> vector<128x4xf32>
    %58 = arith.addf %50, %57 : vector<128x4xf32>
    %c29_i32 = arith.constant 29 : i32
    %59 = arith.addi %1, %c29_i32 : i32
    %c0_35 = arith.constant 0 : index
    %60 = arith.index_cast %59 : i32 to index
    %c0_36 = arith.constant 0 : index
    %61 = vector.load %arg2[%c0_35, %60, %c0_36] : memref<1x288x4xf32, #tpu.memory_space<vmem>>, vector<1x128x4xf32>
    %62 = vector.shape_cast %61 : vector<1x128x4xf32> to vector<128x4xf32>
    %c7 = arith.constant 7 : index
    %c0_37 = arith.constant 0 : index
    %c0_38 = arith.constant 0 : index
    %63 = vector.load %arg3[%c7, %c0_37, %c0_38] : memref<9x4x4xf32, #tpu.memory_space<vmem>>, vector<1x4x4xf32>
    %64 = vector.shape_cast %63 : vector<1x4x4xf32> to vector<4x4xf32>
    %cst_39 = arith.constant dense<0.000000e+00> : vector<128x4xf32>
    %65 = tpu.matmul %62, %64, %cst_39 {dimension_numbers = #tpu.dot_dimension_numbers<[1], [0], [0], [1], [0, 0, 1, 1], [], []>} : vector<128x4xf32>, vector<4x4xf32>, vector<128x4xf32> -> vector<128x4xf32>
    %66 = arith.addf %58, %65 : vector<128x4xf32>
    %c30_i32 = arith.constant 30 : i32
    %67 = arith.addi %1, %c30_i32 : i32
    %c0_40 = arith.constant 0 : index
    %68 = arith.index_cast %67 : i32 to index
    %c0_41 = arith.constant 0 : index
    %69 = vector.load %arg2[%c0_40, %68, %c0_41] : memref<1x288x4xf32, #tpu.memory_space<vmem>>, vector<1x128x4xf32>
    %70 = vector.shape_cast %69 : vector<1x128x4xf32> to vector<128x4xf32>
    %c8 = arith.constant 8 : index
    %c0_42 = arith.constant 0 : index
    %c0_43 = arith.constant 0 : index
    %71 = vector.load %arg3[%c8, %c0_42, %c0_43] : memref<9x4x4xf32, #tpu.memory_space<vmem>>, vector<1x4x4xf32>
    %72 = vector.shape_cast %71 : vector<1x4x4xf32> to vector<4x4xf32>
    %cst_44 = arith.constant dense<0.000000e+00> : vector<128x4xf32>
    %73 = tpu.matmul %70, %72, %cst_44 {dimension_numbers = #tpu.dot_dimension_numbers<[1], [0], [0], [1], [0, 0, 1, 1], [], []>} : vector<128x4xf32>, vector<4x4xf32>, vector<128x4xf32> -> vector<128x4xf32>
    %74 = arith.addf %66, %73 : vector<128x4xf32>
    %c0_45 = arith.constant 0 : index
    %c0_46 = arith.constant 0 : index
    %75 = vector.load %arg4[%c0_45, %c0_46] : memref<1x4xf32, #tpu.memory_space<vmem>>, vector<1x4xf32>
    %76 = vector.broadcast %75 : vector<1x4xf32> to vector<128x4xf32>
    %77 = arith.addf %74, %76 : vector<128x4xf32>
    %c0_47 = arith.constant 0 : index
    %c0_48 = arith.constant 0 : index
    %c0_49 = arith.constant 0 : index
    %78 = vector.load %arg5[%c0_47, %c0_48, %c0_49] : memref<1x128x4xf32, #tpu.memory_space<vmem>>, vector<1x128x4xf32>
    %79 = vector.shape_cast %78 : vector<1x128x4xf32> to vector<128x4xf32>
    %80 = vector.shape_cast %77 : vector<128x4xf32> to vector<1x128x4xf32>
    tpu.vector_store %arg5[%c0_47, %c0_48, %c0_49], %80 {strides = array<i32>} : memref<1x128x4xf32, #tpu.memory_space<vmem>>, vector<1x128x4xf32>,
    return
  }
  func.func @transform_0(%arg0: i32, %arg1: i32) -> (i32, i32, i32) {
    %c0_i32 = arith.constant 0 : i32
    %c0_i32_0 = arith.constant 0 : i32
    %c0_i32_1 = arith.constant 0 : i32
    return %arg0, %c0_i32, %c0_i32_0 : i32, i32, i32
  }
  func.func @transform_1(%arg0: i32, %arg1: i32) -> (i32, i32, i32) {
    %c0_i32 = arith.constant 0 : i32
    %c0_i32_0 = arith.constant 0 : i32
    %c0_i32_1 = arith.constant 0 : i32
    %c0_i32_2 = arith.constant 0 : i32
    return %c0_i32, %c0_i32_0, %c0_i32_1 : i32, i32, i32
  }
  func.func @transform_2(%arg0: i32, %arg1: i32) -> (i32, i32) {
    %c0_i32 = arith.constant 0 : i32
    %c0_i32_0 = arith.constant 0 : i32
    %c0_i32_1 = arith.constant 0 : i32
    return %c0_i32, %c0_i32_0 : i32, i32
  }
  func.func @transform_3(%arg0: i32, %arg1: i32) -> (i32, i32, i32) {
    %c0_i32 = arith.constant 0 : i32
    %c0_i32_0 = arith.constant 0 : i32
    return %arg0, %arg1, %c0_i32 : i32, i32, i32
  }
}

module attributes {stable_mosaic.version = 11 : i64} {
  func.func @_bn_stats_kernel(%arg0: i32, %arg1: memref<128x4xf32, #tpu.memory_space<vmem>>, %arg2: memref<2x4xf32, #tpu.memory_space<vmem>>) attributes {dimension_semantics = [#tpu.dimension_semantics<arbitrary>], iteration_bounds = array<i64: 3>, scalar_prefetch = 0 : i64, scratch_operands = 0 : i64, tpu.core_type = #tpu.core_type<tc>, window_params = [{transform_indices = @transform_0, window_bounds = array<i64: 128, 4>}, {pipeline_mode = #tpu.pipeline_mode<synchronous>, transform_indices = @transform_1, window_bounds = array<i64: 2, 4>}]} {
    %c0_i32 = arith.constant 0 : i32
    %0 = arith.cmpi eq, %arg0, %c0_i32 : i32
    %1 = arith.extui %0 : i1 to i32
    %c0_i32_0 = arith.constant 0 : i32
    %2 = arith.cmpi ne, %1, %c0_i32_0 : i32
    scf.if %2 {
      %cst_10 = arith.constant 0.000000e+00 : f32
      %15 = vector.broadcast %cst_10 : f32 to vector<2x4xf32>
      %c0_11 = arith.constant 0 : index
      %c0_12 = arith.constant 0 : index
      %16 = vector.load %arg2[%c0_11, %c0_12] : memref<2x4xf32, #tpu.memory_space<vmem>>, vector<2x4xf32>
      tpu.vector_store %arg2[%c0_11, %c0_12], %15 {strides = array<i32>} : memref<2x4xf32, #tpu.memory_space<vmem>>, vector<2x4xf32>,
    } else {
    }
    %c0 = arith.constant 0 : index
    %c0_1 = arith.constant 0 : index
    %3 = vector.load %arg1[%c0, %c0_1] : memref<128x4xf32, #tpu.memory_space<vmem>>, vector<128x4xf32>
    %c0_2 = arith.constant 0 : index
    %c0_3 = arith.constant 0 : index
    %4 = vector.load %arg2[%c0_2, %c0_3] : memref<2x4xf32, #tpu.memory_space<vmem>>, vector<1x4xf32>
    %cst = arith.constant dense<0.000000e+00> : vector<4xf32>
    %5 = vector.multi_reduction <add>, %3, %cst [0] : vector<128x4xf32> to vector<4xf32>
    %6 = vector.shape_cast %5 : vector<4xf32> to vector<1x4xf32>
    %7 = arith.addf %4, %6 : vector<1x4xf32>
    %c0_4 = arith.constant 0 : index
    %c0_5 = arith.constant 0 : index
    %8 = vector.load %arg2[%c0_4, %c0_5] : memref<2x4xf32, #tpu.memory_space<vmem>>, vector<1x4xf32>
    tpu.vector_store %arg2[%c0_4, %c0_5], %7 {strides = array<i32>} : memref<2x4xf32, #tpu.memory_space<vmem>>, vector<1x4xf32>,
    %c1 = arith.constant 1 : index
    %c0_6 = arith.constant 0 : index
    %9 = vector.load %arg2[%c1, %c0_6] : memref<2x4xf32, #tpu.memory_space<vmem>>, vector<1x4xf32>
    %10 = arith.mulf %3, %3 : vector<128x4xf32>
    %cst_7 = arith.constant dense<0.000000e+00> : vector<4xf32>
    %11 = vector.multi_reduction <add>, %10, %cst_7 [0] : vector<128x4xf32> to vector<4xf32>
    %12 = vector.shape_cast %11 : vector<4xf32> to vector<1x4xf32>
    %13 = arith.addf %9, %12 : vector<1x4xf32>
    %c1_8 = arith.constant 1 : index
    %c0_9 = arith.constant 0 : index
    %14 = vector.load %arg2[%c1_8, %c0_9] : memref<2x4xf32, #tpu.memory_space<vmem>>, vector<1x4xf32>
    tpu.vector_store %arg2[%c1_8, %c0_9], %13 {strides = array<i32>} : memref<2x4xf32, #tpu.memory_space<vmem>>, vector<1x4xf32>,
    return
  }
  func.func @transform_0(%arg0: i32) -> (i32, i32) {
    %c0_i32 = arith.constant 0 : i32
    %c0_i32_0 = arith.constant 0 : i32
    return %arg0, %c0_i32 : i32, i32
  }
  func.func @transform_1(%arg0: i32) -> (i32, i32) {
    %c0_i32 = arith.constant 0 : i32
    %c0_i32_0 = arith.constant 0 : i32
    %c0_i32_1 = arith.constant 0 : i32
    return %c0_i32, %c0_i32_0 : i32, i32
  }
}

module attributes {stable_mosaic.version = 11 : i64} {
  func.func @_bn_apply_kernel(%arg0: i32, %arg1: memref<128x4xf32, #tpu.memory_space<vmem>>, %arg2: memref<1x4xf32, #tpu.memory_space<vmem>>, %arg3: memref<1x4xf32, #tpu.memory_space<vmem>>, %arg4: memref<128x4xf32, #tpu.memory_space<vmem>>) attributes {dimension_semantics = [#tpu.dimension_semantics<parallel>], iteration_bounds = array<i64: 3>, scalar_prefetch = 0 : i64, scratch_operands = 0 : i64, tpu.core_type = #tpu.core_type<tc>, window_params = [{transform_indices = @transform_0, window_bounds = array<i64: 128, 4>}, {pipeline_mode = #tpu.pipeline_mode<synchronous>, transform_indices = @transform_1, window_bounds = array<i64: 1, 4>}, {pipeline_mode = #tpu.pipeline_mode<synchronous>, transform_indices = @transform_2, window_bounds = array<i64: 1, 4>}, {transform_indices = @transform_3, window_bounds = array<i64: 128, 4>}]} {
    %c0 = arith.constant 0 : index
    %c0_0 = arith.constant 0 : index
    %0 = vector.load %arg1[%c0, %c0_0] : memref<128x4xf32, #tpu.memory_space<vmem>>, vector<128x4xf32>
    %c0_1 = arith.constant 0 : index
    %c0_2 = arith.constant 0 : index
    %1 = vector.load %arg2[%c0_1, %c0_2] : memref<1x4xf32, #tpu.memory_space<vmem>>, vector<1x4xf32>
    %2 = vector.broadcast %1 : vector<1x4xf32> to vector<128x4xf32>
    %3 = arith.mulf %0, %2 : vector<128x4xf32>
    %c0_3 = arith.constant 0 : index
    %c0_4 = arith.constant 0 : index
    %4 = vector.load %arg3[%c0_3, %c0_4] : memref<1x4xf32, #tpu.memory_space<vmem>>, vector<1x4xf32>
    %5 = vector.broadcast %4 : vector<1x4xf32> to vector<128x4xf32>
    %6 = arith.addf %3, %5 : vector<128x4xf32>
    %cst = arith.constant 0.000000e+00 : f32
    %7 = vector.broadcast %cst : f32 to vector<128x4xf32>
    %8 = arith.maximumf %6, %7 : vector<128x4xf32>
    %c0_5 = arith.constant 0 : index
    %c0_6 = arith.constant 0 : index
    %9 = vector.load %arg4[%c0_5, %c0_6] : memref<128x4xf32, #tpu.memory_space<vmem>>, vector<128x4xf32>
    tpu.vector_store %arg4[%c0_5, %c0_6], %8 {strides = array<i32>} : memref<128x4xf32, #tpu.memory_space<vmem>>, vector<128x4xf32>,
    return
  }
  func.func @transform_0(%arg0: i32) -> (i32, i32) {
    %c0_i32 = arith.constant 0 : i32
    %c0_i32_0 = arith.constant 0 : i32
    return %arg0, %c0_i32 : i32, i32
  }
  func.func @transform_1(%arg0: i32) -> (i32, i32) {
    %c0_i32 = arith.constant 0 : i32
    %c0_i32_0 = arith.constant 0 : i32
    %c0_i32_1 = arith.constant 0 : i32
    return %c0_i32, %c0_i32_0 : i32, i32
  }
  func.func @transform_2(%arg0: i32) -> (i32, i32) {
    %c0_i32 = arith.constant 0 : i32
    %c0_i32_0 = arith.constant 0 : i32
    %c0_i32_1 = arith.constant 0 : i32
    return %c0_i32, %c0_i32_0 : i32, i32
  }
  func.func @transform_3(%arg0: i32) -> (i32, i32) {
    %c0_i32 = arith.constant 0 : i32
    %c0_i32_0 = arith.constant 0 : i32
    return %arg0, %c0_i32 : i32, i32
  }
}

</mosaic_0001>

<llo_original>
// kernel: expand_forward.6
$region0: #{expand_forward.6}
  #allocation0 [shape = 'u32[]', space=smem, size = 0x4, offset = 0x4, fixed_abs, tag = 'smem constant byte address 0x4 - core index']
  #allocation1 [shape = 'u32[72,128]{1,0:T(1,128)}', space=vmem, size = 0x9000, scoped, tag = 'internal scratch']
  %s0 = inlined_call_operand.vmem [shape: f32[2,296,8], index: 0, kind: input, shape index: {}]
  %s1 = inlined_call_operand.vmem [shape: f32[9,8,4], index: 1, kind: input, shape index: {}]
  %s2 = inlined_call_operand.vmem [shape: f32[1,4], index: 2, kind: input, shape index: {}]
  %s3 = inlined_call_operand.vmem [shape: f32[2,256,4], index: 3, kind: output, shape index: {}]
  %s4 = sld [smem:[#allocation0]]
  $region45: #{expand_forward.6} parent=0
    _
  %s6 = ssub.s32 1, %s4
  %s7 = scalar_select 0, %s6, %s4
  loop: start=0, step=1, limit=6
  $region2: #{expand_forward.6} parent=0 // loop_pre_header
    _
  $region3: #{expand_forward.6} parent=0 // loop_header
    %s9 = sphi 0, %s13
    %p10 = scmp.ge.s32.totalorder %s9, 6
    %s16 = sphi 0, %s28
    %s17 = sphi 0, %s24
    %s18 = sphi 0, %s16
    %s19 = sphi 0, %s17
    %s20 = sphi 0, %s18
    %s21 = sphi 0, %s19
    %s31 = sphi 0, %s33
    %s34 = sphi 0, %s31
    %s35 = sphi 0, %s34
    %s51 = sphi 0, %s35
    %s55 = sphi 0, %s55
    %s57 = sphi 0, %s55
    %s58 = sphi 0, %s57
    %s72 = sphi 0, %s58
    %s76 = sphi 0, %s76
    %s78 = sphi 0, %s76
    %s79 = sphi 0, %s78
    %s93 = sphi 0, %s79
    %s101 = sphi 0, %s103
    %s104 = sphi 0, %s101
    %s105 = sphi 0, %s104
    %s121 = sphi 0, %s105
  $region4: #{expand_forward.6} parent=0 // loop_header_branch
    %12 = sbr.rel (%p10) target = $region8
  $region5: #{expand_forward.6} parent=0 // loop_body
    %s14 = ssub.s32 %s9, 1
    %s15 = ssub.s32 %s9, 2
    %s22 = sadd.s32 1, %s17
    %p23 = scmp.ge.s32.totalorder %s22, 2
    %s24 = scalar_select %p23, 0, %s22
    %s25 = sadd.s32 1, %s16
    %s26 = scalar_select %p23, %s25, %s16
    %p27 = scmp.ge.s32.totalorder %s26, 2
    %s28 = scalar_select %p27, 0, %s26
    %s29 = ssub.s32 %s16, %s28
    %p30 = scmp.eq.s32.totalorder %s29, 0
    %s32 = sadd.s32 %s31, 1
    %s33 = scalar_select %p30, %s31, %s32
    %p36 = pneg %p30
    %p37 = scmp.eq.s32.totalorder %s9, 3
    %p38 = por %p36, %p37
    %p39 = scmp.ne.s32.totalorder %s31, %s34
    %p40 = scmp.eq.s32.totalorder %s9, 0
    %p41 = por %p39, %p40
    %p42 = scmp.ne.s32.totalorder %s31, %s34
    %p43 = scmp.eq.s32.totalorder %s14, 3
    %p44 = por %p42, %p43
    %p45 = scmp.ne.s32.totalorder %s34, %s35
    %p46 = scmp.eq.s32.totalorder %s14, 0
    %p47 = por %p45, %p46
    %p48 = scmp.ne.s32.totalorder %s34, %s35
    %p49 = scmp.eq.s32.totalorder %s15, 3
    %p50 = por %p48, %p49
    %p52 = scmp.ne.s32.totalorder %s35, %s51
    %p53 = scmp.eq.s32.totalorder %s15, 0
    %p54 = por %p52, %p53
    %s56 = sadd.s32 %s55, 1
    %p59 = scmp.eq.s32.totalorder %s9, 3
    %p60 = scmp.ne.s32.totalorder %s55, %s57
    %p61 = scmp.eq.s32.totalorder %s9, 0
    %p62 = por %p60, %p61
    %p63 = scmp.ne.s32.totalorder %s55, %s57
    %p64 = scmp.eq.s32.totalorder %s14, 3
    %p65 = por %p63, %p64
    %p66 = scmp.ne.s32.totalorder %s57, %s58
    %p67 = scmp.eq.s32.totalorder %s14, 0
    %p68 = por %p66, %p67
    %p69 = scmp.ne.s32.totalorder %s57, %s58
    %p70 = scmp.eq.s32.totalorder %s15, 3
    %p71 = por %p69, %p70
    %p73 = scmp.ne.s32.totalorder %s58, %s72
    %p74 = scmp.eq.s32.totalorder %s15, 0
    %p75 = por %p73, %p74
    %s77 = sadd.s32 %s76, 1
    %p80 = scmp.eq.s32.totalorder %s9, 3
    %p81 = scmp.ne.s32.totalorder %s76, %s78
    %p82 = scmp.eq.s32.totalorder %s9, 0
    %p83 = por %p81, %p82
    %p84 = scmp.ne.s32.totalorder %s76, %s78
    %p85 = scmp.eq.s32.totalorder %s14, 3
    %p86 = por %p84, %p85
    %p87 = scmp.ne.s32.totalorder %s78, %s79
    %p88 = scmp.eq.s32.totalorder %s14, 0
    %p89 = por %p87, %p88
    %p90 = scmp.ne.s32.totalorder %s78, %s79
    %p91 = scmp.eq.s32.totalorder %s15, 3
    %p92 = por %p90, %p91
    %p94 = scmp.ne.s32.totalorder %s79, %s93
    %p95 = scmp.eq.s32.totalorder %s15, 0
    %p96 = por %p94, %p95
    %s97 = ssub.s32 %s16, %s28
    %s98 = ssub.s32 %s17, %s24
    %s99 = sor.u32 %s97, %s98
    %p100 = scmp.eq.s32.totalorder %s99, 0
    %s102 = sadd.s32 %s101, 1
    %s103 = scalar_select %p100, %s101, %s102
    %p106 = pneg %p100
    %p107 = scmp.eq.s32.totalorder %s9, 3
    %p108 = por %p106, %p107
    %p109 = scmp.ne.s32.totalorder %s101, %s104
    %p110 = scmp.eq.s32.totalorder %s9, 0
    %p111 = por %p109, %p110
    %p112 = scmp.ne.s32.totalorder %s101, %s104
    %p113 = scmp.eq.s32.totalorder %s14, 3
    %p114 = por %p112, %p113
    %p115 = scmp.ne.s32.totalorder %s104, %s105
    %p116 = scmp.eq.s32.totalorder %s14, 0
    %p117 = por %p115, %p116
    %p118 = scmp.ne.s32.totalorder %s104, %s105
    %p119 = scmp.eq.s32.totalorder %s15, 3
    %p120 = por %p118, %p119
    %p122 = scmp.ne.s32.totalorder %s105, %s121
    %p123 = scmp.eq.s32.totalorder %s15, 0
    %p124 = por %p122, %p123
    %p125 = scmp.le.s32.totalorder 1, %s9
    %p126 = scmp.lt.s32.totalorder %s9, 5
    %p127 = pnand %p125, %p126
    %p128 = pneg %p127
    // Predicated region
    $region9: #{expand_forward.6} parent=5 // pred_check
      _
    $region10: #{expand_forward.6} parent=5 // pred_check_branch
      %130 = sbr.rel (%p127) target = $region12
    $region11: #{expand_forward.6} parent=5 // pred_region
      %s131 = ssub.s32 %s9, 1
      // Predicated region
      $region13: #{expand_forward.6} parent=11 // pred_check
        %p132 = pneg %p68
      $region14: #{expand_forward.6} parent=11 // pred_check_branch
        %134 = sbr.rel (%p132) target = $region16
      $region15: #{expand_forward.6} parent=11 // pred_region
        _
      $region16: #{expand_forward.6} parent=11 // pred_fallthru
        _
      // Predicated region
      $region17: #{expand_forward.6} parent=11 // pred_check
        %p135 = pneg %p89
      $region18: #{expand_forward.6} parent=11 // pred_check_branch
        %137 = sbr.rel (%p135) target = $region20
      $region19: #{expand_forward.6} parent=11 // pred_region
        _
      $region20: #{expand_forward.6} parent=11 // pred_fallthru
        _
    $region12: #{expand_forward.6} parent=5 // pred_fallthru
      _
    %p138 = scmp.lt.s32.totalorder %s9, 4
    // Predicated region
    $region21: #{expand_forward.6} parent=5 // pred_check
      %p139 = pneg %p138
    $region22: #{expand_forward.6} parent=5 // pred_check_branch
      %141 = sbr.rel (%p139) target = $region24
    $region23: #{expand_forward.6} parent=5 // pred_region
      // Predicated region
      $region25: #{expand_forward.6} parent=23 // pred_check
        %p142 = pneg %p41
      $region26: #{expand_forward.6} parent=23 // pred_check_branch
        %144 = sbr.rel (%p142) target = $region28
      $region27: #{expand_forward.6} parent=23 // pred_region
        %p145 = scmp.lt.s32.totalorder %s16, 1
        %s146 = scalar_select %p145, %s16, 1
        %s147 = smul.addr %s146, 37
        %s148 = smul.addr %s147, 8
        %s149 = scalar_lea.vmem %s0, %s148
      $region28: #{expand_forward.6} parent=23 // pred_fallthru
        _
    $region24: #{expand_forward.6} parent=5 // pred_fallthru
      _
    %p150 = scmp.le.s32.totalorder 1, %s9
    %p151 = scmp.lt.s32.totalorder %s9, 5
    %p152 = pnand %p150, %p151
    %p153 = pneg %p152
    // Predicated region
    $region29: #{expand_forward.6} parent=5 // pred_check
      _
    $region30: #{expand_forward.6} parent=5 // pred_check_branch
      %155 = sbr.rel (%p152) target = $region32
    $region31: #{expand_forward.6} parent=5 // pred_region
      %s156 = ssub.s32 %s9, 1
      %p157 = scmp.lt.s32.totalorder %s18, 1
      %s158 = scalar_select %p157, %s18, 1
      %s159 = smul.addr %s158, 37
      %s160 = smul.addr %s159, 8
      %s161 = scalar_lea.vmem %s0, %s160
      %p162 = pneg %p47
      %p163 = pneg %p44
      %p164 = pneg %p68
      %p165 = pneg %p65
      %p166 = pneg %p89
      %p167 = pneg %p86
      %p168 = pneg %p117
      %p169 = pneg %p114
      %s170 = smul.u32 16, %s19
      %p171 = scmp.lt.s32.totalorder %s18, 1
      %s172 = scalar_select %p171, %s18, 1
      %p173 = scmp.lt.s32.totalorder %s170, 31
      %s174 = scalar_select %p173, %s170, 31
      %s175 = smul.addr %s172, 32
      %s176 = sadd.s32 %s174, %s175
      %s177 = smul.addr %s176, 8
      %s178 = scalar_lea.vmem %s3, %s177
      %p179 = scmp.lt.s32.totalorder %s18, 1
      %s180 = scalar_select %p179, %s18, 1
      %s181 = smul.addr %s180, 37
      %s182 = smul.addr %s181, 8
      %s183 = scalar_lea.vmem %s0, %s182
      %s184 = smul.u32 16, %s19
      %p185 = scmp.lt.s32.totalorder %s18, 1
      %s186 = scalar_select %p185, %s18, 1
      %p187 = scmp.lt.s32.totalorder %s184, 31
      %s188 = scalar_select %p187, %s184, 31
      %s189 = smul.addr %s186, 32
      %s190 = sadd.s32 %s188, %s189
      %s191 = smul.addr %s190, 8
      %s192 = scalar_lea.vmem %s3, %s191
      %s193 = smul.u32 16, %s19
      %s194 = smul.u32 %s19, 128
      %s195 = scalar_lea.vmem %s183, %s194
      %v196 = vld [vmem:[%s195] sm:$0xff]
      %v197 = vld [vmem:[%s195 + $0x8] sm:$0xff]
      %v198 = vld [vmem:[%s195 + $0x10] sm:$0xff]
      %v199 = vld [vmem:[%s195 + $0x18] sm:$0xff]
      %v200 = vld [vmem:[%s195 + $0x20] sm:$0xff]
      %v201 = vld [vmem:[%s195 + $0x28] sm:$0xff]
      %v202 = vld [vmem:[%s195 + $0x30] sm:$0xff]
      %v203 = vld [vmem:[%s195 + $0x38] sm:$0xff]
      %v204 = vld [vmem:[%s195 + $0x40] sm:$0xff]
      %v205 = vld [vmem:[%s195 + $0x48] sm:$0xff]
      %v206 = vld [vmem:[%s195 + $0x50] sm:$0xff]
      %v207 = vld [vmem:[%s195 + $0x58] sm:$0xff]
      %v208 = vld [vmem:[%s195 + $0x60] sm:$0xff]
      %v209 = vld [vmem:[%s195 + $0x68] sm:$0xff]
      %v210 = vld [vmem:[%s195 + $0x70] sm:$0xff]
      %v211 = vld [vmem:[%s195 + $0x78] sm:$0xff]
      %v212 = vld [vmem:[%s1] sm:$0xff]
      %s213 = sadd.s32 %s194, 1
      %s214 = scalar_lea.vmem %s183, %s213
      %v215 = vld [vmem:[%s214] sm:$0xff]
      %v216 = vld [vmem:[%s214 + $0x8] sm:$0xff]
      %v217 = vld [vmem:[%s214 + $0x10] sm:$0xff]
      %v218 = vld [vmem:[%s214 + $0x18] sm:$0xff]
      %v219 = vld [vmem:[%s214 + $0x20] sm:$0xff]
      %v220 = vld [vmem:[%s214 + $0x28] sm:$0xff]
      %v221 = vld [vmem:[%s214 + $0x30] sm:$0xff]
      %v222 = vld [vmem:[%s214 + $0x38] sm:$0xff]
      %v223 = vld [vmem:[%s214 + $0x40] sm:$0xff]
      %v224 = vld [vmem:[%s214 + $0x48] sm:$0xff]
      %v225 = vld [vmem:[%s214 + $0x50] sm:$0xff]
      %v226 = vld [vmem:[%s214 + $0x58] sm:$0xff]
      %v227 = vld [vmem:[%s214 + $0x60] sm:$0xff]
      %v228 = vld [vmem:[%s214 + $0x68] sm:$0xff]
      %v229 = vld [vmem:[%s214 + $0x70] sm:$0xff]
      %v230 = vld [vmem:[%s214 + $0x78] sm:$0xff]
      %s231 = scalar_lea.vmem %s1, 8
      %v232 = vld [vmem:[%s231] sm:$0xff]
      %vm233 = vcmask 64512
      %v235 = vsel %vm233, %v215, 0
      %v238 = vsel %vm233, %v216, 0
      %v241 = vsel %vm233, %v217, 0
      %v244 = vsel %vm233, %v218, 0
      %v247 = vsel %vm233, %v219, 0
      %v250 = vsel %vm233, %v220, 0
      %v253 = vsel %vm233, %v221, 0
      %v256 = vsel %vm233, %v222, 0
      %v259 = vsel %vm233, %v223, 0
      %v262 = vsel %vm233, %v224, 0
      %v265 = vsel %vm233, %v225, 0
      %v268 = vsel %vm233, %v226, 0
      %v271 = vsel %vm233, %v227, 0
      %v274 = vsel %vm233, %v228, 0
      %v277 = vsel %vm233, %v229, 0
      %v280 = vsel %vm233, %v230, 0
      %282 = vmatpush.msra.mxu0 0.0
      %283 = vmatpush.msra.mxu0 0.0
      %284 = vmatpush.msra.mxu0 0.0
      %285 = vmatpush.msra.mxu0 0.0
      %286 = vmatpush.msra.mxu0 0.0
      %287 = vmatpush.msra.mxu0 0.0
      %288 = vmatpush.msra.mxu0 0.0
      %289 = vmatpush.msra.mxu0 0.0
      %290 = vmatpush.msra.mxu0 0.0
      %291 = vmatpush.msra.mxu0 0.0
      %292 = vmatpush.msra.mxu0 0.0
      %293 = vmatpush.msra.mxu0 0.0
      %294 = vmatpush.msra.mxu0 0.0
      %295 = vmatpush.msra.mxu0 0.0
      %296 = vmatpush.msra.mxu0 0.0
      %297 = vmatpush.msra.mxu0 %v232
      %298 = vmatmul.f32.gmra.mxu0 %v235
      %v299 = vpop.f32.mrf.mxu0
      %v300 = vadd.f32 0.0, %v299
      %301 = vmatmul.f32.gmra.mxu0 %v238
      %v302 = vpop.f32.mrf.mxu0
      %v303 = vadd.f32 0.0, %v302
      %304 = vmatmul.f32.gmra.mxu0 %v241
      %v305 = vpop.f32.mrf.mxu0
      %v306 = vadd.f32 0.0, %v305
      %307 = vmatmul.f32.gmra.mxu0 %v244
      %v308 = vpop.f32.mrf.mxu0
      %v309 = vadd.f32 0.0, %v308
      %310 = vmatmul.f32.gmra.mxu0 %v247
      %v311 = vpop.f32.mrf.mxu0
      %v312 = vadd.f32 0.0, %v311
      %313 = vmatmul.f32.gmra.mxu0 %v250
      %v314 = vpop.f32.mrf.mxu0
      %v315 = vadd.f32 0.0, %v314
      %316 = vmatmul.f32.gmra.mxu0 %v253
      %v317 = vpop.f32.mrf.mxu0
      %v318 = vadd.f32 0.0, %v317
      %319 = vmatmul.f32.gmra.mxu0 %v256
      %v320 = vpop.f32.mrf.mxu0
      %v321 = vadd.f32 0.0, %v320
      %322 = vmatmul.f32.gmra.mxu0 %v259
      %v323 = vpop.f32.mrf.mxu0
      %v324 = vadd.f32 0.0, %v323
      %325 = vmatmul.f32.gmra.mxu0 %v262
      %v326 = vpop.f32.mrf.mxu0
      %v327 = vadd.f32 0.0, %v326
      %328 = vmatmul.f32.gmra.mxu0 %v265
      %v329 = vpop.f32.mrf.mxu0
      %v330 = vadd.f32 0.0, %v329
      %331 = vmatmul.f32.gmra.mxu0 %v268
      %v332 = vpop.f32.mrf.mxu0
      %v333 = vadd.f32 0.0, %v332
      %334 = vmatmul.f32.gmra.mxu0 %v271
      %v335 = vpop.f32.mrf.mxu0
      %v336 = vadd.f32 0.0, %v335
      %337 = vmatmul.f32.gmra.mxu0 %v274
      %v338 = vpop.f32.mrf.mxu0
      %v339 = vadd.f32 0.0, %v338
      %340 = vmatmul.f32.gmra.mxu0 %v277
      %v341 = vpop.f32.mrf.mxu0
      %v342 = vadd.f32 0.0, %v341
      %343 = vmatmul.f32.gmra.mxu0 %v280
      %v344 = vpop.f32.mrf.mxu0
      %v345 = vadd.f32 0.0, %v344
      %346 = vdwg.mxu0
      %v348 = vsel %vm233, %v196, 0
      %v351 = vsel %vm233, %v197, 0
      %v354 = vsel %vm233, %v198, 0
      %v357 = vsel %vm233, %v199, 0
      %v360 = vsel %vm233, %v200, 0
      %v363 = vsel %vm233, %v201, 0
      %v366 = vsel %vm233, %v202, 0
      %v369 = vsel %vm233, %v203, 0
      %v372 = vsel %vm233, %v204, 0
      %v375 = vsel %vm233, %v205, 0
      %v378 = vsel %vm233, %v206, 0
      %v381 = vsel %vm233, %v207, 0
      %v384 = vsel %vm233, %v208, 0
      %v387 = vsel %vm233, %v209, 0
      %v390 = vsel %vm233, %v210, 0
      %v393 = vsel %vm233, %v211, 0
      %395 = vmatpush.msra.mxu0 0.0
      %396 = vmatpush.msra.mxu0 0.0
      %397 = vmatpush.msra.mxu0 0.0
      %398 = vmatpush.msra.mxu0 0.0
      %399 = vmatpush.msra.mxu0 0.0
      %400 = vmatpush.msra.mxu0 0.0
      %401 = vmatpush.msra.mxu0 0.0
      %402 = vmatpush.msra.mxu0 0.0
      %403 = vmatpush.msra.mxu0 0.0
      %404 = vmatpush.msra.mxu0 0.0
      %405 = vmatpush.msra.mxu0 0.0
      %406 = vmatpush.msra.mxu0 0.0
      %407 = vmatpush.msra.mxu0 0.0
      %408 = vmatpush.msra.mxu0 0.0
      %409 = vmatpush.msra.mxu0 0.0
      %410 = vmatpush.msra.mxu0 %v212
      %411 = vmatmul.f32.gmra.mxu0 %v348
      %v412 = vpop.f32.mrf.mxu0
      %v413 = vadd.f32 %v300, %v412
      %414 = vmatmul.f32.gmra.mxu0 %v351
      %v415 = vpop.f32.mrf.mxu0
      %v416 = vadd.f32 %v303, %v415
      %417 = vmatmul.f32.gmra.mxu0 %v354
      %v418 = vpop.f32.mrf.mxu0
      %v419 = vadd.f32 %v306, %v418
      %420 = vmatmul.f32.gmra.mxu0 %v357
      %v421 = vpop.f32.mrf.mxu0
      %v422 = vadd.f32 %v309, %v421
      %423 = vmatmul.f32.gmra.mxu0 %v360
      %v424 = vpop.f32.mrf.mxu0
      %v425 = vadd.f32 %v312, %v424
      %426 = vmatmul.f32.gmra.mxu0 %v363
      %v427 = vpop.f32.mrf.mxu0
      %v428 = vadd.f32 %v315, %v427
      %429 = vmatmul.f32.gmra.mxu0 %v366
      %v430 = vpop.f32.mrf.mxu0
      %v431 = vadd.f32 %v318, %v430
      %432 = vmatmul.f32.gmra.mxu0 %v369
      %v433 = vpop.f32.mrf.mxu0
      %v434 = vadd.f32 %v321, %v433
      %435 = vmatmul.f32.gmra.mxu0 %v372
      %v436 = vpop.f32.mrf.mxu0
      %v437 = vadd.f32 %v324, %v436
      %438 = vmatmul.f32.gmra.mxu0 %v375
      %v439 = vpop.f32.mrf.mxu0
      %v440 = vadd.f32 %v327, %v439
      %441 = vmatmul.f32.gmra.mxu0 %v378
      %v442 = vpop.f32.mrf.mxu0
      %v443 = vadd.f32 %v330, %v442
      %444 = vmatmul.f32.gmra.mxu0 %v381
      %v445 = vpop.f32.mrf.mxu0
      %v446 = vadd.f32 %v333, %v445
      %447 = vmatmul.f32.gmra.mxu0 %v384
      %v448 = vpop.f32.mrf.mxu0
      %v449 = vadd.f32 %v336, %v448
      %450 = vmatmul.f32.gmra.mxu0 %v387
      %v451 = vpop.f32.mrf.mxu0
      %v452 = vadd.f32 %v339, %v451
      %453 = vmatmul.f32.gmra.mxu0 %v390
      %v454 = vpop.f32.mrf.mxu0
      %v455 = vadd.f32 %v342, %v454
      %456 = vmatmul.f32.gmra.mxu0 %v393
      %v457 = vpop.f32.mrf.mxu0
      %v458 = vadd.f32 %v345, %v457
      %459 = vdwg.mxu0
      %s460 = sadd.s32 %s194, 2
      %s461 = scalar_lea.vmem %s183, %s460
      %v462 = vld [vmem:[%s461] sm:$0xff]
      %v463 = vld [vmem:[%s461 + $0x8] sm:$0xff]
      %v464 = vld [vmem:[%s461 + $0x10] sm:$0xff]
      %v465 = vld [vmem:[%s461 + $0x18] sm:$0xff]
      %v466 = vld [vmem:[%s461 + $0x20] sm:$0xff]
      %v467 = vld [vmem:[%s461 + $0x28] sm:$0xff]
      %v468 = vld [vmem:[%s461 + $0x30] sm:$0xff]
      %v469 = vld [vmem:[%s461 + $0x38] sm:$0xff]
      %v470 = vld [vmem:[%s461 + $0x40] sm:$0xff]
      %v471 = vld [vmem:[%s461 + $0x48] sm:$0xff]
      %v472 = vld [vmem:[%s461 + $0x50] sm:$0xff]
      %v473 = vld [vmem:[%s461 + $0x58] sm:$0xff]
      %v474 = vld [vmem:[%s461 + $0x60] sm:$0xff]
      %v475 = vld [vmem:[%s461 + $0x68] sm:$0xff]
      %v476 = vld [vmem:[%s461 + $0x70] sm:$0xff]
      %v477 = vld [vmem:[%s461 + $0x78] sm:$0xff]
      %s478 = scalar_lea.vmem %s1, 16
      %v479 = vld [vmem:[%s478] sm:$0xff]
      %v481 = vsel %vm233, %v462, 0
      %v484 = vsel %vm233, %v463, 0
      %v487 = vsel %vm233, %v464, 0
      %v490 = vsel %vm233, %v465, 0
      %v493 = vsel %vm233, %v466, 0
      %v496 = vsel %vm233, %v467, 0
      %v499 = vsel %vm233, %v468, 0
      %v502 = vsel %vm233, %v469, 0
      %v505 = vsel %vm233, %v470, 0
      %v508 = vsel %vm233, %v471, 0
      %v511 = vsel %vm233, %v472, 0
      %v514 = vsel %vm233, %v473, 0
      %v517 = vsel %vm233, %v474, 0
      %v520 = vsel %vm233, %v475, 0
      %v523 = vsel %vm233, %v476, 0
      %v526 = vsel %vm233, %v477, 0
      %528 = vmatpush.msra.mxu0 0.0
      %529 = vmatpush.msra.mxu0 0.0
      %530 = vmatpush.msra.mxu0 0.0
      %531 = vmatpush.msra.mxu0 0.0
      %532 = vmatpush.msra.mxu0 0.0
      %533 = vmatpush.msra.mxu0 0.0
      %534 = vmatpush.msra.mxu0 0.0
      %535 = vmatpush.msra.mxu0 0.0
      %536 = vmatpush.msra.mxu0 0.0
      %537 = vmatpush.msra.mxu0 0.0
      %538 = vmatpush.msra.mxu0 0.0
      %539 = vmatpush.msra.mxu0 0.0
      %540 = vmatpush.msra.mxu0 0.0
      %541 = vmatpush.msra.mxu0 0.0
      %542 = vmatpush.msra.mxu0 0.0
      %543 = vmatpush.msra.mxu0 %v479
      %544 = vmatmul.f32.gmra.mxu0 %v481
      %v545 = vpop.f32.mrf.mxu0
      %v546 = vadd.f32 0.0, %v545
      %547 = vmatmul.f32.gmra.mxu0 %v484
      %v548 = vpop.f32.mrf.mxu0
      %v549 = vadd.f32 0.0, %v548
      %550 = vmatmul.f32.gmra.mxu0 %v487
      %v551 = vpop.f32.mrf.mxu0
      %v552 = vadd.f32 0.0, %v551
      %553 = vmatmul.f32.gmra.mxu0 %v490
      %v554 = vpop.f32.mrf.mxu0
      %v555 = vadd.f32 0.0, %v554
      %556 = vmatmul.f32.gmra.mxu0 %v493
      %v557 = vpop.f32.mrf.mxu0
      %v558 = vadd.f32 0.0, %v557
      %559 = vmatmul.f32.gmra.mxu0 %v496
      %v560 = vpop.f32.mrf.mxu0
      %v561 = vadd.f32 0.0, %v560
      %562 = vmatmul.f32.gmra.mxu0 %v499
      %v563 = vpop.f32.mrf.mxu0
      %v564 = vadd.f32 0.0, %v563
      %565 = vmatmul.f32.gmra.mxu0 %v502
      %v566 = vpop.f32.mrf.mxu0
      %v567 = vadd.f32 0.0, %v566
      %568 = vmatmul.f32.gmra.mxu0 %v505
      %v569 = vpop.f32.mrf.mxu0
      %v570 = vadd.f32 0.0, %v569
      %571 = vmatmul.f32.gmra.mxu0 %v508
      %v572 = vpop.f32.mrf.mxu0
      %v573 = vadd.f32 0.0, %v572
      %574 = vmatmul.f32.gmra.mxu0 %v511
      %v575 = vpop.f32.mrf.mxu0
      %v576 = vadd.f32 0.0, %v575
      %577 = vmatmul.f32.gmra.mxu0 %v514
      %v578 = vpop.f32.mrf.mxu0
      %v579 = vadd.f32 0.0, %v578
      %580 = vmatmul.f32.gmra.mxu0 %v517
      %v581 = vpop.f32.mrf.mxu0
      %v582 = vadd.f32 0.0, %v581
      %583 = vmatmul.f32.gmra.mxu0 %v520
      %v584 = vpop.f32.mrf.mxu0
      %v585 = vadd.f32 0.0, %v584
      %586 = vmatmul.f32.gmra.mxu0 %v523
      %v587 = vpop.f32.mrf.mxu0
      %v588 = vadd.f32 0.0, %v587
      %589 = vmatmul.f32.gmra.mxu0 %v526
      %v590 = vpop.f32.mrf.mxu0
      %v591 = vadd.f32 0.0, %v590
      %592 = vdwg.mxu0
      %v593 = vadd.f32 %v413, %v546
      %v594 = vadd.f32 %v416, %v549
      %v595 = vadd.f32 %v419, %v552
      %v596 = vadd.f32 %v422, %v555
      %v597 = vadd.f32 %v425, %v558
      %v598 = vadd.f32 %v428, %v561
      %v599 = vadd.f32 %v431, %v564
      %v600 = vadd.f32 %v434, %v567
      %v601 = vadd.f32 %v437, %v570
      %v602 = vadd.f32 %v440, %v573
      %v603 = vadd.f32 %v443, %v576
      %v604 = vadd.f32 %v446, %v579
      %v605 = vadd.f32 %v449, %v582
      %v606 = vadd.f32 %v452, %v585
      %v607 = vadd.f32 %v455, %v588
      %v608 = vadd.f32 %v458, %v591
      %s609 = sadd.s32 %s194, 16
      %s610 = scalar_lea.vmem %s183, %s609
      %v611 = vld [vmem:[%s610] sm:$0xff]
      %v612 = vld [vmem:[%s610 + $0x8] sm:$0xff]
      %v613 = vld [vmem:[%s610 + $0x10] sm:$0xff]
      %v614 = vld [vmem:[%s610 + $0x18] sm:$0xff]
      %v615 = vld [vmem:[%s610 + $0x20] sm:$0xff]
      %v616 = vld [vmem:[%s610 + $0x28] sm:$0xff]
      %v617 = vld [vmem:[%s610 + $0x30] sm:$0xff]
      %v618 = vld [vmem:[%s610 + $0x38] sm:$0xff]
      %v619 = vld [vmem:[%s610 + $0x40] sm:$0xff]
      %v620 = vld [vmem:[%s610 + $0x48] sm:$0xff]
      %v621 = vld [vmem:[%s610 + $0x50] sm:$0xff]
      %v622 = vld [vmem:[%s610 + $0x58] sm:$0xff]
      %v623 = vld [vmem:[%s610 + $0x60] sm:$0xff]
      %v624 = vld [vmem:[%s610 + $0x68] sm:$0xff]
      %v625 = vld [vmem:[%s610 + $0x70] sm:$0xff]
      %v626 = vld [vmem:[%s610 + $0x78] sm:$0xff]
      %s627 = scalar_lea.vmem %s1, 24
      %v628 = vld [vmem:[%s627] sm:$0xff]
      %v630 = vsel %vm233, %v611, 0
      %v633 = vsel %vm233, %v612, 0
      %v636 = vsel %vm233, %v613, 0
      %v639 = vsel %vm233, %v614, 0
      %v642 = vsel %vm233, %v615, 0
      %v645 = vsel %vm233, %v616, 0
      %v648 = vsel %vm233, %v617, 0
      %v651 = vsel %vm233, %v618, 0
      %v654 = vsel %vm233, %v619, 0
      %v657 = vsel %vm233, %v620, 0
      %v660 = vsel %vm233, %v621, 0
      %v663 = vsel %vm233, %v622, 0
      %v666 = vsel %vm233, %v623, 0
      %v669 = vsel %vm233, %v624, 0
      %v672 = vsel %vm233, %v625, 0
      %v675 = vsel %vm233, %v626, 0
      %677 = vmatpush.msra.mxu0 0.0
      %678 = vmatpush.msra.mxu0 0.0
      %679 = vmatpush.msra.mxu0 0.0
      %680 = vmatpush.msra.mxu0 0.0
      %681 = vmatpush.msra.mxu0 0.0
      %682 = vmatpush.msra.mxu0 0.0
      %683 = vmatpush.msra.mxu0 0.0
      %684 = vmatpush.msra.mxu0 0.0
      %685 = vmatpush.msra.mxu0 0.0
      %686 = vmatpush.msra.mxu0 0.0
      %687 = vmatpush.msra.mxu0 0.0
      %688 = vmatpush.msra.mxu0 0.0
      %689 = vmatpush.msra.mxu0 0.0
      %690 = vmatpush.msra.mxu0 0.0
      %691 = vmatpush.msra.mxu0 0.0
      %692 = vmatpush.msra.mxu0 %v628
      %693 = vmatmul.f32.gmra.mxu0 %v630
      %v694 = vpop.f32.mrf.mxu0
      %v695 = vadd.f32 0.0, %v694
      %696 = vmatmul.f32.gmra.mxu0 %v633
      %v697 = vpop.f32.mrf.mxu0
      %v698 = vadd.f32 0.0, %v697
      %699 = vmatmul.f32.gmra.mxu0 %v636
      %v700 = vpop.f32.mrf.mxu0
      %v701 = vadd.f32 0.0, %v700
      %702 = vmatmul.f32.gmra.mxu0 %v639
      %v703 = vpop.f32.mrf.mxu0
      %v704 = vadd.f32 0.0, %v703
      %705 = vmatmul.f32.gmra.mxu0 %v642
      %v706 = vpop.f32.mrf.mxu0
      %v707 = vadd.f32 0.0, %v706
      %708 = vmatmul.f32.gmra.mxu0 %v645
      %v709 = vpop.f32.mrf.mxu0
      %v710 = vadd.f32 0.0, %v709
      %711 = vmatmul.f32.gmra.mxu0 %v648
      %v712 = vpop.f32.mrf.mxu0
      %v713 = vadd.f32 0.0, %v712
      %714 = vmatmul.f32.gmra.mxu0 %v651
      %v715 = vpop.f32.mrf.mxu0
      %v716 = vadd.f32 0.0, %v715
      %717 = vmatmul.f32.gmra.mxu0 %v654
      %v718 = vpop.f32.mrf.mxu0
      %v719 = vadd.f32 0.0, %v718
      %720 = vmatmul.f32.gmra.mxu0 %v657
      %v721 = vpop.f32.mrf.mxu0
      %v722 = vadd.f32 0.0, %v721
      %723 = vmatmul.f32.gmra.mxu0 %v660
      %v724 = vpop.f32.mrf.mxu0
      %v725 = vadd.f32 0.0, %v724
      %726 = vmatmul.f32.gmra.mxu0 %v663
      %v727 = vpop.f32.mrf.mxu0
      %v728 = vadd.f32 0.0, %v727
      %729 = vmatmul.f32.gmra.mxu0 %v666
      %v730 = vpop.f32.mrf.mxu0
      %v731 = vadd.f32 0.0, %v730
      %732 = vmatmul.f32.gmra.mxu0 %v669
      %v733 = vpop.f32.mrf.mxu0
      %v734 = vadd.f32 0.0, %v733
      %735 = vmatmul.f32.gmra.mxu0 %v672
      %v736 = vpop.f32.mrf.mxu0
      %v737 = vadd.f32 0.0, %v736
      %738 = vmatmul.f32.gmra.mxu0 %v675
      %v739 = vpop.f32.mrf.mxu0
      %v740 = vadd.f32 0.0, %v739
      %741 = vdwg.mxu0
      %v742 = vadd.f32 %v593, %v695
      %v743 = vadd.f32 %v594, %v698
      %v744 = vadd.f32 %v595, %v701
      %v745 = vadd.f32 %v596, %v704
      %v746 = vadd.f32 %v597, %v707
      %v747 = vadd.f32 %v598, %v710
      %v748 = vadd.f32 %v599, %v713
      %v749 = vadd.f32 %v600, %v716
      %v750 = vadd.f32 %v601, %v719
      %v751 = vadd.f32 %v602, %v722
      %v752 = vadd.f32 %v603, %v725
      %v753 = vadd.f32 %v604, %v728
      %v754 = vadd.f32 %v605, %v731
      %v755 = vadd.f32 %v606, %v734
      %v756 = vadd.f32 %v607, %v737
      %v757 = vadd.f32 %v608, %v740
      %s758 = sadd.s32 %s194, 17
      %s759 = scalar_lea.vmem %s183, %s758
      %v760 = vld [vmem:[%s759] sm:$0xff]
      %v761 = vld [vmem:[%s759 + $0x8] sm:$0xff]
      %v762 = vld [vmem:[%s759 + $0x10] sm:$0xff]
      %v763 = vld [vmem:[%s759 + $0x18] sm:$0xff]
      %v764 = vld [vmem:[%s759 + $0x20] sm:$0xff]
      %v765 = vld [vmem:[%s759 + $0x28] sm:$0xff]
      %v766 = vld [vmem:[%s759 + $0x30] sm:$0xff]
      %v767 = vld [vmem:[%s759 + $0x38] sm:$0xff]
      %v768 = vld [vmem:[%s759 + $0x40] sm:$0xff]
      %v769 = vld [vmem:[%s759 + $0x48] sm:$0xff]
      %v770 = vld [vmem:[%s759 + $0x50] sm:$0xff]
      %v771 = vld [vmem:[%s759 + $0x58] sm:$0xff]
      %v772 = vld [vmem:[%s759 + $0x60] sm:$0xff]
      %v773 = vld [vmem:[%s759 + $0x68] sm:$0xff]
      %v774 = vld [vmem:[%s759 + $0x70] sm:$0xff]
      %v775 = vld [vmem:[%s759 + $0x78] sm:$0xff]
      %s776 = scalar_lea.vmem %s1, 32
      %v777 = vld [vmem:[%s776] sm:$0xff]
      %v779 = vsel %vm233, %v760, 0
      %v782 = vsel %vm233, %v761, 0
      %v785 = vsel %vm233, %v762, 0
      %v788 = vsel %vm233, %v763, 0
      %v791 = vsel %vm233, %v764, 0
      %v794 = vsel %vm233, %v765, 0
      %v797 = vsel %vm233, %v766, 0
      %v800 = vsel %vm233, %v767, 0
      %v803 = vsel %vm233, %v768, 0
      %v806 = vsel %vm233, %v769, 0
      %v809 = vsel %vm233, %v770, 0
      %v812 = vsel %vm233, %v771, 0
      %v815 = vsel %vm233, %v772, 0
      %v818 = vsel %vm233, %v773, 0
      %v821 = vsel %vm233, %v774, 0
      %v824 = vsel %vm233, %v775, 0
      %826 = vmatpush.msra.mxu0 0.0
      %827 = vmatpush.msra.mxu0 0.0
      %828 = vmatpush.msra.mxu0 0.0
      %829 = vmatpush.msra.mxu0 0.0
      %830 = vmatpush.msra.mxu0 0.0
      %831 = vmatpush.msra.mxu0 0.0
      %832 = vmatpush.msra.mxu0 0.0
      %833 = vmatpush.msra.mxu0 0.0
      %834 = vmatpush.msra.mxu0 0.0
      %835 = vmatpush.msra.mxu0 0.0
      %836 = vmatpush.msra.mxu0 0.0
      %837 = vmatpush.msra.mxu0 0.0
      %838 = vmatpush.msra.mxu0 0.0
      %839 = vmatpush.msra.mxu0 0.0
      %840 = vmatpush.msra.mxu0 0.0
      %841 = vmatpush.msra.mxu0 %v777
      %842 = vmatmul.f32.gmra.mxu0 %v779
      %v843 = vpop.f32.mrf.mxu0
      %v844 = vadd.f32 0.0, %v843
      %845 = vmatmul.f32.gmra.mxu0 %v782
      %v846 = vpop.f32.mrf.mxu0
      %v847 = vadd.f32 0.0, %v846
      %848 = vmatmul.f32.gmra.mxu0 %v785
      %v849 = vpop.f32.mrf.mxu0
      %v850 = vadd.f32 0.0, %v849
      %851 = vmatmul.f32.gmra.mxu0 %v788
      %v852 = vpop.f32.mrf.mxu0
      %v853 = vadd.f32 0.0, %v852
      %854 = vmatmul.f32.gmra.mxu0 %v791
      %v855 = vpop.f32.mrf.mxu0
      %v856 = vadd.f32 0.0, %v855
      %857 = vmatmul.f32.gmra.mxu0 %v794
      %v858 = vpop.f32.mrf.mxu0
      %v859 = vadd.f32 0.0, %v858
      %860 = vmatmul.f32.gmra.mxu0 %v797
      %v861 = vpop.f32.mrf.mxu0
      %v862 = vadd.f32 0.0, %v861
      %863 = vmatmul.f32.gmra.mxu0 %v800
      %v864 = vpop.f32.mrf.mxu0
      %v865 = vadd.f32 0.0, %v864
      %866 = vmatmul.f32.gmra.mxu0 %v803
      %v867 = vpop.f32.mrf.mxu0
      %v868 = vadd.f32 0.0, %v867
      %869 = vmatmul.f32.gmra.mxu0 %v806
      %v870 = vpop.f32.mrf.mxu0
      %v871 = vadd.f32 0.0, %v870
      %872 = vmatmul.f32.gmra.mxu0 %v809
      %v873 = vpop.f32.mrf.mxu0
      %v874 = vadd.f32 0.0, %v873
      %875 = vmatmul.f32.gmra.mxu0 %v812
      %v876 = vpop.f32.mrf.mxu0
      %v877 = vadd.f32 0.0, %v876
      %878 = vmatmul.f32.gmra.mxu0 %v815
      %v879 = vpop.f32.mrf.mxu0
      %v880 = vadd.f32 0.0, %v879
      %881 = vmatmul.f32.gmra.mxu0 %v818
      %v882 = vpop.f32.mrf.mxu0
      %v883 = vadd.f32 0.0, %v882
      %884 = vmatmul.f32.gmra.mxu0 %v821
      %v885 = vpop.f32.mrf.mxu0
      %v886 = vadd.f32 0.0, %v885
      %887 = vmatmul.f32.gmra.mxu0 %v824
      %v888 = vpop.f32.mrf.mxu0
      %v889 = vadd.f32 0.0, %v888
      %890 = vdwg.mxu0
      %v891 = vadd.f32 %v742, %v844
      %v892 = vadd.f32 %v743, %v847
      %v893 = vadd.f32 %v744, %v850
      %v894 = vadd.f32 %v745, %v853
      %v895 = vadd.f32 %v746, %v856
      %v896 = vadd.f32 %v747, %v859
      %v897 = vadd.f32 %v748, %v862
      %v898 = vadd.f32 %v749, %v865
      %v899 = vadd.f32 %v750, %v868
      %v900 = vadd.f32 %v751, %v871
      %v901 = vadd.f32 %v752, %v874
      %v902 = vadd.f32 %v753, %v877
      %v903 = vadd.f32 %v754, %v880
      %v904 = vadd.f32 %v755, %v883
      %v905 = vadd.f32 %v756, %v886
      %v906 = vadd.f32 %v757, %v889
      %s907 = sadd.s32 %s194, 18
      %s908 = scalar_lea.vmem %s183, %s907
      %v909 = vld [vmem:[%s908] sm:$0xff]
      %v910 = vld [vmem:[%s908 + $0x8] sm:$0xff]
      %v911 = vld [vmem:[%s908 + $0x10] sm:$0xff]
      %v912 = vld [vmem:[%s908 + $0x18] sm:$0xff]
      %v913 = vld [vmem:[%s908 + $0x20] sm:$0xff]
      %v914 = vld [vmem:[%s908 + $0x28] sm:$0xff]
      %v915 = vld [vmem:[%s908 + $0x30] sm:$0xff]
      %v916 = vld [vmem:[%s908 + $0x38] sm:$0xff]
      %v917 = vld [vmem:[%s908 + $0x40] sm:$0xff]
      %v918 = vld [vmem:[%s908 + $0x48] sm:$0xff]
      %v919 = vld [vmem:[%s908 + $0x50] sm:$0xff]
      %v920 = vld [vmem:[%s908 + $0x58] sm:$0xff]
      %v921 = vld [vmem:[%s908 + $0x60] sm:$0xff]
      %v922 = vld [vmem:[%s908 + $0x68] sm:$0xff]
      %v923 = vld [vmem:[%s908 + $0x70] sm:$0xff]
      %v924 = vld [vmem:[%s908 + $0x78] sm:$0xff]
      %s925 = scalar_lea.vmem %s1, 40
      %v926 = vld [vmem:[%s925] sm:$0xff]
      %v928 = vsel %vm233, %v909, 0
      %v931 = vsel %vm233, %v910, 0
      %v934 = vsel %vm233, %v911, 0
      %v937 = vsel %vm233, %v912, 0
      %v940 = vsel %vm233, %v913, 0
      %v943 = vsel %vm233, %v914, 0
      %v946 = vsel %vm233, %v915, 0
      %v949 = vsel %vm233, %v916, 0
      %v952 = vsel %vm233, %v917, 0
      %v955 = vsel %vm233, %v918, 0
      %v958 = vsel %vm233, %v919, 0
      %v961 = vsel %vm233, %v920, 0
      %v964 = vsel %vm233, %v921, 0
      %v967 = vsel %vm233, %v922, 0
      %v970 = vsel %vm233, %v923, 0
      %v973 = vsel %vm233, %v924, 0
      %975 = vmatpush.msra.mxu0 0.0
      %976 = vmatpush.msra.mxu0 0.0
      %977 = vmatpush.msra.mxu0 0.0
      %978 = vmatpush.msra.mxu0 0.0
      %979 = vmatpush.msra.mxu0 0.0
      %980 = vmatpush.msra.mxu0 0.0
      %981 = vmatpush.msra.mxu0 0.0
      %982 = vmatpush.msra.mxu0 0.0
      %983 = vmatpush.msra.mxu0 0.0
      %984 = vmatpush.msra.mxu0 0.0
      %985 = vmatpush.msra.mxu0 0.0
      %986 = vmatpush.msra.mxu0 0.0
      %987 = vmatpush.msra.mxu0 0.0
      %988 = vmatpush.msra.mxu0 0.0
      %989 = vmatpush.msra.mxu0 0.0
      %990 = vmatpush.msra.mxu0 %v926
      %991 = vmatmul.f32.gmra.mxu0 %v928
      %v992 = vpop.f32.mrf.mxu0
      %v993 = vadd.f32 0.0, %v992
      %994 = vmatmul.f32.gmra.mxu0 %v931
      %v995 = vpop.f32.mrf.mxu0
      %v996 = vadd.f32 0.0, %v995
      %997 = vmatmul.f32.gmra.mxu0 %v934
      %v998 = vpop.f32.mrf.mxu0
      %v999 = vadd.f32 0.0, %v998
      %1000 = vmatmul.f32.gmra.mxu0 %v937
      %v1001 = vpop.f32.mrf.mxu0
      %v1002 = vadd.f32 0.0, %v1001
      %1003 = vmatmul.f32.gmra.mxu0 %v940
      %v1004 = vpop.f32.mrf.mxu0
      %v1005 = vadd.f32 0.0, %v1004
      %1006 = vmatmul.f32.gmra.mxu0 %v943
      %v1007 = vpop.f32.mrf.mxu0
      %v1008 = vadd.f32 0.0, %v1007
      %1009 = vmatmul.f32.gmra.mxu0 %v946
      %v1010 = vpop.f32.mrf.mxu0
      %v1011 = vadd.f32 0.0, %v1010
      %1012 = vmatmul.f32.gmra.mxu0 %v949
      %v1013 = vpop.f32.mrf.mxu0
      %v1014 = vadd.f32 0.0, %v1013
      %1015 = vmatmul.f32.gmra.mxu0 %v952
      %v1016 = vpop.f32.mrf.mxu0
      %v1017 = vadd.f32 0.0, %v1016
      %1018 = vmatmul.f32.gmra.mxu0 %v955
      %v1019 = vpop.f32.mrf.mxu0
      %v1020 = vadd.f32 0.0, %v1019
      %1021 = vmatmul.f32.gmra.mxu0 %v958
      %v1022 = vpop.f32.mrf.mxu0
      %v1023 = vadd.f32 0.0, %v1022
      %1024 = vmatmul.f32.gmra.mxu0 %v961
      %v1025 = vpop.f32.mrf.mxu0
      %v1026 = vadd.f32 0.0, %v1025
      %1027 = vmatmul.f32.gmra.mxu0 %v964
      %v1028 = vpop.f32.mrf.mxu0
      %v1029 = vadd.f32 0.0, %v1028
      %1030 = vmatmul.f32.gmra.mxu0 %v967
      %v1031 = vpop.f32.mrf.mxu0
      %v1032 = vadd.f32 0.0, %v1031
      %1033 = vmatmul.f32.gmra.mxu0 %v970
      %v1034 = vpop.f32.mrf.mxu0
      %v1035 = vadd.f32 0.0, %v1034
      %1036 = vmatmul.f32.gmra.mxu0 %v973
      %v1037 = vpop.f32.mrf.mxu0
      %v1038 = vadd.f32 0.0, %v1037
      %1039 = vdwg.mxu0
      %v1040 = vadd.f32 %v891, %v993
      %v1041 = vadd.f32 %v892, %v996
      %v1042 = vadd.f32 %v893, %v999
      %v1043 = vadd.f32 %v894, %v1002
      %v1044 = vadd.f32 %v895, %v1005
      %v1045 = vadd.f32 %v896, %v1008
      %v1046 = vadd.f32 %v897, %v1011
      %v1047 = vadd.f32 %v898, %v1014
      %v1048 = vadd.f32 %v899, %v1017
      %v1049 = vadd.f32 %v900, %v1020
      %v1050 = vadd.f32 %v901, %v1023
      %v1051 = vadd.f32 %v902, %v1026
      %v1052 = vadd.f32 %v903, %v1029
      %v1053 = vadd.f32 %v904, %v1032
      %v1054 = vadd.f32 %v905, %v1035
      %v1055 = vadd.f32 %v906, %v1038
      %s1056 = sadd.s32 %s194, 32
      %s1057 = scalar_lea.vmem %s183, %s1056
      %v1058 = vld [vmem:[%s1057] sm:$0xff]
      %v1059 = vld [vmem:[%s1057 + $0x8] sm:$0xff]
      %v1060 = vld [vmem:[%s1057 + $0x10] sm:$0xff]
      %v1061 = vld [vmem:[%s1057 + $0x18] sm:$0xff]
      %v1062 = vld [vmem:[%s1057 + $0x20] sm:$0xff]
      %v1063 = vld [vmem:[%s1057 + $0x28] sm:$0xff]
      %v1064 = vld [vmem:[%s1057 + $0x30] sm:$0xff]
      %v1065 = vld [vmem:[%s1057 + $0x38] sm:$0xff]
      %v1066 = vld [vmem:[%s1057 + $0x40] sm:$0xff]
      %v1067 = vld [vmem:[%s1057 + $0x48] sm:$0xff]
      %v1068 = vld [vmem:[%s1057 + $0x50] sm:$0xff]
      %v1069 = vld [vmem:[%s1057 + $0x58] sm:$0xff]
      %v1070 = vld [vmem:[%s1057 + $0x60] sm:$0xff]
      %v1071 = vld [vmem:[%s1057 + $0x68] sm:$0xff]
      %v1072 = vld [vmem:[%s1057 + $0x70] sm:$0xff]
      %v1073 = vld [vmem:[%s1057 + $0x78] sm:$0xff]
      %s1074 = scalar_lea.vmem %s1, 48
      %v1075 = vld [vmem:[%s1074] sm:$0xff]
      %v1077 = vsel %vm233, %v1058, 0
      %v1080 = vsel %vm233, %v1059, 0
      %v1083 = vsel %vm233, %v1060, 0
      %v1086 = vsel %vm233, %v1061, 0
      %v1089 = vsel %vm233, %v1062, 0
      %v1092 = vsel %vm233, %v1063, 0
      %v1095 = vsel %vm233, %v1064, 0
      %v1098 = vsel %vm233, %v1065, 0
      %v1101 = vsel %vm233, %v1066, 0
      %v1104 = vsel %vm233, %v1067, 0
      %v1107 = vsel %vm233, %v1068, 0
      %v1110 = vsel %vm233, %v1069, 0
      %v1113 = vsel %vm233, %v1070, 0
      %v1116 = vsel %vm233, %v1071, 0
      %v1119 = vsel %vm233, %v1072, 0
      %v1122 = vsel %vm233, %v1073, 0
      %1124 = vmatpush.msra.mxu0 0.0
      %1125 = vmatpush.msra.mxu0 0.0
      %1126 = vmatpush.msra.mxu0 0.0
      %1127 = vmatpush.msra.mxu0 0.0
      %1128 = vmatpush.msra.mxu0 0.0
      %1129 = vmatpush.msra.mxu0 0.0
      %1130 = vmatpush.msra.mxu0 0.0
      %1131 = vmatpush.msra.mxu0 0.0
      %1132 = vmatpush.msra.mxu0 0.0
      %1133 = vmatpush.msra.mxu0 0.0
      %1134 = vmatpush.msra.mxu0 0.0
      %1135 = vmatpush.msra.mxu0 0.0
      %1136 = vmatpush.msra.mxu0 0.0
      %1137 = vmatpush.msra.mxu0 0.0
      %1138 = vmatpush.msra.mxu0 0.0
      %1139 = vmatpush.msra.mxu0 %v1075
      %1140 = vmatmul.f32.gmra.mxu0 %v1077
      %v1141 = vpop.f32.mrf.mxu0
      %v1142 = vadd.f32 0.0, %v1141
      %1143 = vmatmul.f32.gmra.mxu0 %v1080
      %v1144 = vpop.f32.mrf.mxu0
      %v1145 = vadd.f32 0.0, %v1144
      %1146 = vmatmul.f32.gmra.mxu0 %v1083
      %v1147 = vpop.f32.mrf.mxu0
      %v1148 = vadd.f32 0.0, %v1147
      %1149 = vmatmul.f32.gmra.mxu0 %v1086
      %v1150 = vpop.f32.mrf.mxu0
      %v1151 = vadd.f32 0.0, %v1150
      %1152 = vmatmul.f32.gmra.mxu0 %v1089
      %v1153 = vpop.f32.mrf.mxu0
      %v1154 = vadd.f32 0.0, %v1153
      %1155 = vmatmul.f32.gmra.mxu0 %v1092
      %v1156 = vpop.f32.mrf.mxu0
      %v1157 = vadd.f32 0.0, %v1156
      %1158 = vmatmul.f32.gmra.mxu0 %v1095
      %v1159 = vpop.f32.mrf.mxu0
      %v1160 = vadd.f32 0.0, %v1159
      %1161 = vmatmul.f32.gmra.mxu0 %v1098
      %v1162 = vpop.f32.mrf.mxu0
      %v1163 = vadd.f32 0.0, %v1162
      %1164 = vmatmul.f32.gmra.mxu0 %v1101
      %v1165 = vpop.f32.mrf.mxu0
      %v1166 = vadd.f32 0.0, %v1165
      %1167 = vmatmul.f32.gmra.mxu0 %v1104
      %v1168 = vpop.f32.mrf.mxu0
      %v1169 = vadd.f32 0.0, %v1168
      %1170 = vmatmul.f32.gmra.mxu0 %v1107
      %v1171 = vpop.f32.mrf.mxu0
      %v1172 = vadd.f32 0.0, %v1171
      %1173 = vmatmul.f32.gmra.mxu0 %v1110
      %v1174 = vpop.f32.mrf.mxu0
      %v1175 = vadd.f32 0.0, %v1174
      %1176 = vmatmul.f32.gmra.mxu0 %v1113
      %v1177 = vpop.f32.mrf.mxu0
      %v1178 = vadd.f32 0.0, %v1177
      %1179 = vmatmul.f32.gmra.mxu0 %v1116
      %v1180 = vpop.f32.mrf.mxu0
      %v1181 = vadd.f32 0.0, %v1180
      %1182 = vmatmul.f32.gmra.mxu0 %v1119
      %v1183 = vpop.f32.mrf.mxu0
      %v1184 = vadd.f32 0.0, %v1183
      %1185 = vmatmul.f32.gmra.mxu0 %v1122
      %v1186 = vpop.f32.mrf.mxu0
      %v1187 = vadd.f32 0.0, %v1186
      %1188 = vdwg.mxu0
      %v1189 = vadd.f32 %v1040, %v1142
      %v1190 = vadd.f32 %v1041, %v1145
      %v1191 = vadd.f32 %v1042, %v1148
      %v1192 = vadd.f32 %v1043, %v1151
      %v1193 = vadd.f32 %v1044, %v1154
      %v1194 = vadd.f32 %v1045, %v1157
      %v1195 = vadd.f32 %v1046, %v1160
      %v1196 = vadd.f32 %v1047, %v1163
      %v1197 = vadd.f32 %v1048, %v1166
      %v1198 = vadd.f32 %v1049, %v1169
      %v1199 = vadd.f32 %v1050, %v1172
      %v1200 = vadd.f32 %v1051, %v1175
      %v1201 = vadd.f32 %v1052, %v1178
      %v1202 = vadd.f32 %v1053, %v1181
      %v1203 = vadd.f32 %v1054, %v1184
      %v1204 = vadd.f32 %v1055, %v1187
      %s1205 = sadd.s32 %s194, 33
      %s1206 = scalar_lea.vmem %s183, %s1205
      %v1207 = vld [vmem:[%s1206] sm:$0xff]
      %v1208 = vld [vmem:[%s1206 + $0x8] sm:$0xff]
      %v1209 = vld [vmem:[%s1206 + $0x10] sm:$0xff]
      %v1210 = vld [vmem:[%s1206 + $0x18] sm:$0xff]
      %v1211 = vld [vmem:[%s1206 + $0x20] sm:$0xff]
      %v1212 = vld [vmem:[%s1206 + $0x28] sm:$0xff]
      %v1213 = vld [vmem:[%s1206 + $0x30] sm:$0xff]
      %v1214 = vld [vmem:[%s1206 + $0x38] sm:$0xff]
      %v1215 = vld [vmem:[%s1206 + $0x40] sm:$0xff]
      %v1216 = vld [vmem:[%s1206 + $0x48] sm:$0xff]
      %v1217 = vld [vmem:[%s1206 + $0x50] sm:$0xff]
      %v1218 = vld [vmem:[%s1206 + $0x58] sm:$0xff]
      %v1219 = vld [vmem:[%s1206 + $0x60] sm:$0xff]
      %v1220 = vld [vmem:[%s1206 + $0x68] sm:$0xff]
      %v1221 = vld [vmem:[%s1206 + $0x70] sm:$0xff]
      %v1222 = vld [vmem:[%s1206 + $0x78] sm:$0xff]
      %s1223 = scalar_lea.vmem %s1, 56
      %v1224 = vld [vmem:[%s1223] sm:$0xff]
      %v1226 = vsel %vm233, %v1207, 0
      %v1229 = vsel %vm233, %v1208, 0
      %v1232 = vsel %vm233, %v1209, 0
      %v1235 = vsel %vm233, %v1210, 0
      %v1238 = vsel %vm233, %v1211, 0
      %v1241 = vsel %vm233, %v1212, 0
      %v1244 = vsel %vm233, %v1213, 0
      %v1247 = vsel %vm233, %v1214, 0
      %v1250 = vsel %vm233, %v1215, 0
      %v1253 = vsel %vm233, %v1216, 0
      %v1256 = vsel %vm233, %v1217, 0
      %v1259 = vsel %vm233, %v1218, 0
      %v1262 = vsel %vm233, %v1219, 0
      %v1265 = vsel %vm233, %v1220, 0
      %v1268 = vsel %vm233, %v1221, 0
      %v1271 = vsel %vm233, %v1222, 0
      %1273 = vmatpush.msra.mxu0 0.0
      %1274 = vmatpush.msra.mxu0 0.0
      %1275 = vmatpush.msra.mxu0 0.0
      %1276 = vmatpush.msra.mxu0 0.0
      %1277 = vmatpush.msra.mxu0 0.0
      %1278 = vmatpush.msra.mxu0 0.0
      %1279 = vmatpush.msra.mxu0 0.0
      %1280 = vmatpush.msra.mxu0 0.0
      %1281 = vmatpush.msra.mxu0 0.0
      %1282 = vmatpush.msra.mxu0 0.0
      %1283 = vmatpush.msra.mxu0 0.0
      %1284 = vmatpush.msra.mxu0 0.0
      %1285 = vmatpush.msra.mxu0 0.0
      %1286 = vmatpush.msra.mxu0 0.0
      %1287 = vmatpush.msra.mxu0 0.0
      %1288 = vmatpush.msra.mxu0 %v1224
      %1289 = vmatmul.f32.gmra.mxu0 %v1226
      %v1290 = vpop.f32.mrf.mxu0
      %v1291 = vadd.f32 0.0, %v1290
      %1292 = vmatmul.f32.gmra.mxu0 %v1229
      %v1293 = vpop.f32.mrf.mxu0
      %v1294 = vadd.f32 0.0, %v1293
      %1295 = vmatmul.f32.gmra.mxu0 %v1232
      %v1296 = vpop.f32.mrf.mxu0
      %v1297 = vadd.f32 0.0, %v1296
      %1298 = vmatmul.f32.gmra.mxu0 %v1235
      %v1299 = vpop.f32.mrf.mxu0
      %v1300 = vadd.f32 0.0, %v1299
      %1301 = vmatmul.f32.gmra.mxu0 %v1238
      %v1302 = vpop.f32.mrf.mxu0
      %v1303 = vadd.f32 0.0, %v1302
      %1304 = vmatmul.f32.gmra.mxu0 %v1241
      %v1305 = vpop.f32.mrf.mxu0
      %v1306 = vadd.f32 0.0, %v1305
      %1307 = vmatmul.f32.gmra.mxu0 %v1244
      %v1308 = vpop.f32.mrf.mxu0
      %v1309 = vadd.f32 0.0, %v1308
      %1310 = vmatmul.f32.gmra.mxu0 %v1247
      %v1311 = vpop.f32.mrf.mxu0
      %v1312 = vadd.f32 0.0, %v1311
      %1313 = vmatmul.f32.gmra.mxu0 %v1250
      %v1314 = vpop.f32.mrf.mxu0
      %v1315 = vadd.f32 0.0, %v1314
      %1316 = vmatmul.f32.gmra.mxu0 %v1253
      %v1317 = vpop.f32.mrf.mxu0
      %v1318 = vadd.f32 0.0, %v1317
      %1319 = vmatmul.f32.gmra.mxu0 %v1256
      %v1320 = vpop.f32.mrf.mxu0
      %v1321 = vadd.f32 0.0, %v1320
      %1322 = vmatmul.f32.gmra.mxu0 %v1259
      %v1323 = vpop.f32.mrf.mxu0
      %v1324 = vadd.f32 0.0, %v1323
      %1325 = vmatmul.f32.gmra.mxu0 %v1262
      %v1326 = vpop.f32.mrf.mxu0
      %v1327 = vadd.f32 0.0, %v1326
      %1328 = vmatmul.f32.gmra.mxu0 %v1265
      %v1329 = vpop.f32.mrf.mxu0
      %v1330 = vadd.f32 0.0, %v1329
      %1331 = vmatmul.f32.gmra.mxu0 %v1268
      %v1332 = vpop.f32.mrf.mxu0
      %v1333 = vadd.f32 0.0, %v1332
      %1334 = vmatmul.f32.gmra.mxu0 %v1271
      %v1335 = vpop.f32.mrf.mxu0
      %v1336 = vadd.f32 0.0, %v1335
      %1337 = vdwg.mxu0
      %v1338 = vadd.f32 %v1189, %v1291
      %v1339 = vadd.f32 %v1190, %v1294
      %v1340 = vadd.f32 %v1191, %v1297
      %v1341 = vadd.f32 %v1192, %v1300
      %v1342 = vadd.f32 %v1193, %v1303
      %v1343 = vadd.f32 %v1194, %v1306
      %v1344 = vadd.f32 %v1195, %v1309
      %v1345 = vadd.f32 %v1196, %v1312
      %v1346 = vadd.f32 %v1197, %v1315
      %v1347 = vadd.f32 %v1198, %v1318
      %v1348 = vadd.f32 %v1199, %v1321
      %v1349 = vadd.f32 %v1200, %v1324
      %v1350 = vadd.f32 %v1201, %v1327
      %v1351 = vadd.f32 %v1202, %v1330
      %v1352 = vadd.f32 %v1203, %v1333
      %v1353 = vadd.f32 %v1204, %v1336
      %s1354 = sadd.s32 %s194, 34
      %s1355 = scalar_lea.vmem %s183, %s1354
      %v1356 = vld [vmem:[%s1355] sm:$0xff]
      %v1357 = vld [vmem:[%s1355 + $0x8] sm:$0xff]
      %v1358 = vld [vmem:[%s1355 + $0x10] sm:$0xff]
      %v1359 = vld [vmem:[%s1355 + $0x18] sm:$0xff]
      %v1360 = vld [vmem:[%s1355 + $0x20] sm:$0xff]
      %v1361 = vld [vmem:[%s1355 + $0x28] sm:$0xff]
      %v1362 = vld [vmem:[%s1355 + $0x30] sm:$0xff]
      %v1363 = vld [vmem:[%s1355 + $0x38] sm:$0xff]
      %v1364 = vld [vmem:[%s1355 + $0x40] sm:$0xff]
      %v1365 = vld [vmem:[%s1355 + $0x48] sm:$0xff]
      %v1366 = vld [vmem:[%s1355 + $0x50] sm:$0xff]
      %v1367 = vld [vmem:[%s1355 + $0x58] sm:$0xff]
      %v1368 = vld [vmem:[%s1355 + $0x60] sm:$0xff]
      %v1369 = vld [vmem:[%s1355 + $0x68] sm:$0xff]
      %v1370 = vld [vmem:[%s1355 + $0x70] sm:$0xff]
      %v1371 = vld [vmem:[%s1355 + $0x78] sm:$0xff]
      %s1372 = scalar_lea.vmem %s1, 64
      %v1373 = vld [vmem:[%s1372] sm:$0xff]
      %v1375 = vsel %vm233, %v1356, 0
      %v1378 = vsel %vm233, %v1357, 0
      %v1381 = vsel %vm233, %v1358, 0
      %v1384 = vsel %vm233, %v1359, 0
      %v1387 = vsel %vm233, %v1360, 0
      %v1390 = vsel %vm233, %v1361, 0
      %v1393 = vsel %vm233, %v1362, 0
      %v1396 = vsel %vm233, %v1363, 0
      %v1399 = vsel %vm233, %v1364, 0
      %v1402 = vsel %vm233, %v1365, 0
      %v1405 = vsel %vm233, %v1366, 0
      %v1408 = vsel %vm233, %v1367, 0
      %v1411 = vsel %vm233, %v1368, 0
      %v1414 = vsel %vm233, %v1369, 0
      %v1417 = vsel %vm233, %v1370, 0
      %v1420 = vsel %vm233, %v1371, 0
      %1422 = vmatpush.msra.mxu0 0.0
      %1423 = vmatpush.msra.mxu0 0.0
      %1424 = vmatpush.msra.mxu0 0.0
      %1425 = vmatpush.msra.mxu0 0.0
      %1426 = vmatpush.msra.mxu0 0.0
      %1427 = vmatpush.msra.mxu0 0.0
      %1428 = vmatpush.msra.mxu0 0.0
      %1429 = vmatpush.msra.mxu0 0.0
      %1430 = vmatpush.msra.mxu0 0.0
      %1431 = vmatpush.msra.mxu0 0.0
      %1432 = vmatpush.msra.mxu0 0.0
      %1433 = vmatpush.msra.mxu0 0.0
      %1434 = vmatpush.msra.mxu0 0.0
      %1435 = vmatpush.msra.mxu0 0.0
      %1436 = vmatpush.msra.mxu0 0.0
      %1437 = vmatpush.msra.mxu0 %v1373
      %1438 = vmatmul.f32.gmra.mxu0 %v1375
      %v1439 = vpop.f32.mrf.mxu0
      %v1440 = vadd.f32 0.0, %v1439
      %1441 = vmatmul.f32.gmra.mxu0 %v1378
      %v1442 = vpop.f32.mrf.mxu0
      %v1443 = vadd.f32 0.0, %v1442
      %1444 = vmatmul.f32.gmra.mxu0 %v1381
      %v1445 = vpop.f32.mrf.mxu0
      %v1446 = vadd.f32 0.0, %v1445
      %1447 = vmatmul.f32.gmra.mxu0 %v1384
      %v1448 = vpop.f32.mrf.mxu0
      %v1449 = vadd.f32 0.0, %v1448
      %1450 = vmatmul.f32.gmra.mxu0 %v1387
      %v1451 = vpop.f32.mrf.mxu0
      %v1452 = vadd.f32 0.0, %v1451
      %1453 = vmatmul.f32.gmra.mxu0 %v1390
      %v1454 = vpop.f32.mrf.mxu0
      %v1455 = vadd.f32 0.0, %v1454
      %1456 = vmatmul.f32.gmra.mxu0 %v1393
      %v1457 = vpop.f32.mrf.mxu0
      %v1458 = vadd.f32 0.0, %v1457
      %1459 = vmatmul.f32.gmra.mxu0 %v1396
      %v1460 = vpop.f32.mrf.mxu0
      %v1461 = vadd.f32 0.0, %v1460
      %1462 = vmatmul.f32.gmra.mxu0 %v1399
      %v1463 = vpop.f32.mrf.mxu0
      %v1464 = vadd.f32 0.0, %v1463
      %1465 = vmatmul.f32.gmra.mxu0 %v1402
      %v1466 = vpop.f32.mrf.mxu0
      %v1467 = vadd.f32 0.0, %v1466
      %1468 = vmatmul.f32.gmra.mxu0 %v1405
      %v1469 = vpop.f32.mrf.mxu0
      %v1470 = vadd.f32 0.0, %v1469
      %1471 = vmatmul.f32.gmra.mxu0 %v1408
      %v1472 = vpop.f32.mrf.mxu0
      %v1473 = vadd.f32 0.0, %v1472
      %1474 = vmatmul.f32.gmra.mxu0 %v1411
      %v1475 = vpop.f32.mrf.mxu0
      %v1476 = vadd.f32 0.0, %v1475
      %1477 = vmatmul.f32.gmra.mxu0 %v1414
      %v1478 = vpop.f32.mrf.mxu0
      %v1479 = vadd.f32 0.0, %v1478
      %1480 = vmatmul.f32.gmra.mxu0 %v1417
      %v1481 = vpop.f32.mrf.mxu0
      %v1482 = vadd.f32 0.0, %v1481
      %1483 = vmatmul.f32.gmra.mxu0 %v1420
      %v1484 = vpop.f32.mrf.mxu0
      %v1485 = vadd.f32 0.0, %v1484
      %1486 = vdwg.mxu0
      %v1487 = vadd.f32 %v1338, %v1440
      %v1488 = vadd.f32 %v1339, %v1443
      %v1489 = vadd.f32 %v1340, %v1446
      %v1490 = vadd.f32 %v1341, %v1449
      %v1491 = vadd.f32 %v1342, %v1452
      %v1492 = vadd.f32 %v1343, %v1455
      %v1493 = vadd.f32 %v1344, %v1458
      %v1494 = vadd.f32 %v1345, %v1461
      %v1495 = vadd.f32 %v1346, %v1464
      %v1496 = vadd.f32 %v1347, %v1467
      %v1497 = vadd.f32 %v1348, %v1470
      %v1498 = vadd.f32 %v1349, %v1473
      %v1499 = vadd.f32 %v1350, %v1476
      %v1500 = vadd.f32 %v1351, %v1479
      %v1501 = vadd.f32 %v1352, %v1482
      %v1502 = vadd.f32 %v1353, %v1485
      %v1503 = vld [vmem:[%s2] sm:$0x1]
      %v1505 = vperm.slane %v1503, 0
      %v1507 = vadd.f32 %v1487, %v1505
      %v1508 = vadd.f32 %v1488, %v1505
      %v1509 = vadd.f32 %v1489, %v1505
      %v1510 = vadd.f32 %v1490, %v1505
      %v1511 = vadd.f32 %v1491, %v1505
      %v1512 = vadd.f32 %v1492, %v1505
      %v1513 = vadd.f32 %v1493, %v1505
      %v1514 = vadd.f32 %v1494, %v1505
      %v1515 = vadd.f32 %v1495, %v1505
      %v1516 = vadd.f32 %v1496, %v1505
      %v1517 = vadd.f32 %v1497, %v1505
      %v1518 = vadd.f32 %v1498, %v1505
      %v1519 = vadd.f32 %v1499, %v1505
      %v1520 = vadd.f32 %v1500, %v1505
      %v1521 = vadd.f32 %v1501, %v1505
      %v1522 = vadd.f32 %v1502, %v1505
      %v1523 = vmax.f32 %v1507, 0.0
      %v1524 = vmax.f32 %v1508, 0.0
      %v1525 = vmax.f32 %v1509, 0.0
      %v1526 = vmax.f32 %v1510, 0.0
      %v1527 = vmax.f32 %v1511, 0.0
      %v1528 = vmax.f32 %v1512, 0.0
      %v1529 = vmax.f32 %v1513, 0.0
      %v1530 = vmax.f32 %v1514, 0.0
      %v1531 = vmax.f32 %v1515, 0.0
      %v1532 = vmax.f32 %v1516, 0.0
      %v1533 = vmax.f32 %v1517, 0.0
      %v1534 = vmax.f32 %v1518, 0.0
      %v1535 = vmax.f32 %v1519, 0.0
      %v1536 = vmax.f32 %v1520, 0.0
      %v1537 = vmax.f32 %v1521, 0.0
      %v1538 = vmax.f32 %v1522, 0.0
      %vm1539 = vcmask 31744
      %1540 = vst.msk [vmem:[%s192] sm:$0xff] %vm1539, %v1523
      %1541 = vst.msk [vmem:[%s192 + $0x8] sm:$0xff] %vm1539, %v1524
      %1542 = vst.msk [vmem:[%s192 + $0x10] sm:$0xff] %vm1539, %v1525
      %1543 = vst.msk [vmem:[%s192 + $0x18] sm:$0xff] %vm1539, %v1526
      %1544 = vst.msk [vmem:[%s192 + $0x20] sm:$0xff] %vm1539, %v1527
      %1545 = vst.msk [vmem:[%s192 + $0x28] sm:$0xff] %vm1539, %v1528
      %1546 = vst.msk [vmem:[%s192 + $0x30] sm:$0xff] %vm1539, %v1529
      %1547 = vst.msk [vmem:[%s192 + $0x38] sm:$0xff] %vm1539, %v1530
      %1548 = vst.msk [vmem:[%s192 + $0x40] sm:$0xff] %vm1539, %v1531
      %1549 = vst.msk [vmem:[%s192 + $0x48] sm:$0xff] %vm1539, %v1532
      %1550 = vst.msk [vmem:[%s192 + $0x50] sm:$0xff] %vm1539, %v1533
      %1551 = vst.msk [vmem:[%s192 + $0x58] sm:$0xff] %vm1539, %v1534
      %1552 = vst.msk [vmem:[%s192 + $0x60] sm:$0xff] %vm1539, %v1535
      %1553 = vst.msk [vmem:[%s192 + $0x68] sm:$0xff] %vm1539, %v1536
      %1554 = vst.msk [vmem:[%s192 + $0x70] sm:$0xff] %vm1539, %v1537
      %1555 = vst.msk [vmem:[%s192 + $0x78] sm:$0xff] %vm1539, %v1538
      %s1556 = smul.u32 16, %s19
      %p1557 = scmp.lt.s32.totalorder %s18, 1
      %s1558 = scalar_select %p1557, %s18, 1
      %p1559 = scmp.lt.s32.totalorder %s1556, 31
      %s1560 = scalar_select %p1559, %s1556, 31
      %s1561 = smul.addr %s1558, 32
      %s1562 = sadd.s32 %s1560, %s1561
      %s1563 = smul.addr %s1562, 8
      %s1564 = scalar_lea.vmem %s3, %s1563
      // Predicated region
      $region33: #{expand_forward.6} parent=31 // pred_check
        %p1565 = pneg %p114
      $region34: #{expand_forward.6} parent=31 // pred_check_branch
        %1567 = sbr.rel (%p1565) target = $region36
      $region35: #{expand_forward.6} parent=31 // pred_region
        %s1568 = smul.u32 16, %s19
      $region36: #{expand_forward.6} parent=31 // pred_fallthru
        _
    $region32: #{expand_forward.6} parent=5 // pred_fallthru
      _
    %p1569 = scmp.le.s32.totalorder 2, %s9
    // Predicated region
    $region37: #{expand_forward.6} parent=5 // pred_check
      %p1570 = pneg %p1569
    $region38: #{expand_forward.6} parent=5 // pred_check_branch
      %1572 = sbr.rel (%p1570) target = $region40
    $region39: #{expand_forward.6} parent=5 // pred_region
      %s1573 = ssub.s32 %s9, 2
      // Predicated region
      $region41: #{expand_forward.6} parent=39 // pred_check
        %p1574 = pneg %p120
      $region42: #{expand_forward.6} parent=39 // pred_check_branch
        %1576 = sbr.rel (%p1574) target = $region44
      $region43: #{expand_forward.6} parent=39 // pred_region
        %s1577 = smul.u32 16, %s21
        %p1578 = scmp.lt.s32.totalorder %s20, 1
        %s1579 = scalar_select %p1578, %s20, 1
        %p1580 = scmp.lt.s32.totalorder %s1577, 31
        %s1581 = scalar_select %p1580, %s1577, 31
        %s1582 = smul.addr %s1579, 32
        %s1583 = sadd.s32 %s1581, %s1582
        %s1584 = smul.addr %s1583, 8
        %s1585 = scalar_lea.vmem %s3, %s1584
      $region44: #{expand_forward.6} parent=39 // pred_fallthru
        _
    $region40: #{expand_forward.6} parent=5 // pred_fallthru
      _
  $region6: #{expand_forward.6} parent=0 // loop_footer
    %s13 = sadd.s32 1, %s9
  $region7: #{expand_forward.6} parent=0 // loop_footer_branch
    %8 = sbr.rel target = $region3
  $region8: #{expand_forward.6} parent=0 // loop_exit
    _

// kernel: expand_forward.5
$region0: #{expand_forward.5}
  #allocation0 [shape = 'u32[]', space=smem, size = 0x4, offset = 0x4, fixed_abs, tag = 'smem constant byte address 0x4 - core index']
  #allocation1 [shape = 'u32[72,128]{1,0:T(1,128)}', space=vmem, size = 0x9000, scoped, tag = 'internal scratch']
  %s0 = inlined_call_operand.vmem [shape: f32[2,424,8], index: 0, kind: input, shape index: {}]
  %s1 = inlined_call_operand.vmem [shape: f32[9,8,4], index: 1, kind: input, shape index: {}]
  %s2 = inlined_call_operand.vmem [shape: f32[1,4], index: 2, kind: input, shape index: {}]
  %s3 = inlined_call_operand.vmem [shape: f32[2,384,4], index: 3, kind: output, shape index: {}]
  %s4 = sld [smem:[#allocation0]]
  $region45: #{expand_forward.5} parent=0
    _
  %s6 = ssub.s32 1, %s4
  %s7 = scalar_select 0, %s6, %s4
  loop: start=0, step=1, limit=8
  $region2: #{expand_forward.5} parent=0 // loop_pre_header
    _
  $region3: #{expand_forward.5} parent=0 // loop_header
    %s9 = sphi 0, %s13
    %p10 = scmp.ge.s32.totalorder %s9, 8
    %s16 = sphi 0, %s28
    %s17 = sphi 0, %s24
    %s18 = sphi 0, %s16
    %s19 = sphi 0, %s17
    %s20 = sphi 0, %s18
    %s21 = sphi 0, %s19
    %s31 = sphi 0, %s33
    %s34 = sphi 0, %s31
    %s35 = sphi 0, %s34
    %s51 = sphi 0, %s35
    %s55 = sphi 0, %s55
    %s57 = sphi 0, %s55
    %s58 = sphi 0, %s57
    %s72 = sphi 0, %s58
    %s76 = sphi 0, %s76
    %s78 = sphi 0, %s76
    %s79 = sphi 0, %s78
    %s93 = sphi 0, %s79
    %s101 = sphi 0, %s103
    %s104 = sphi 0, %s101
    %s105 = sphi 0, %s104
    %s121 = sphi 0, %s105
  $region4: #{expand_forward.5} parent=0 // loop_header_branch
    %12 = sbr.rel (%p10) target = $region8
  $region5: #{expand_forward.5} parent=0 // loop_body
    %s14 = ssub.s32 %s9, 1
    %s15 = ssub.s32 %s9, 2
    %s22 = sadd.s32 1, %s17
    %p23 = scmp.ge.s32.totalorder %s22, 3
    %s24 = scalar_select %p23, 0, %s22
    %s25 = sadd.s32 1, %s16
    %s26 = scalar_select %p23, %s25, %s16
    %p27 = scmp.ge.s32.totalorder %s26, 2
    %s28 = scalar_select %p27, 0, %s26
    %s29 = ssub.s32 %s16, %s28
    %p30 = scmp.eq.s32.totalorder %s29, 0
    %s32 = sadd.s32 %s31, 1
    %s33 = scalar_select %p30, %s31, %s32
    %p36 = pneg %p30
    %p37 = scmp.eq.s32.totalorder %s9, 5
    %p38 = por %p36, %p37
    %p39 = scmp.ne.s32.totalorder %s31, %s34
    %p40 = scmp.eq.s32.totalorder %s9, 0
    %p41 = por %p39, %p40
    %p42 = scmp.ne.s32.totalorder %s31, %s34
    %p43 = scmp.eq.s32.totalorder %s14, 5
    %p44 = por %p42, %p43
    %p45 = scmp.ne.s32.totalorder %s34, %s35
    %p46 = scmp.eq.s32.totalorder %s14, 0
    %p47 = por %p45, %p46
    %p48 = scmp.ne.s32.totalorder %s34, %s35
    %p49 = scmp.eq.s32.totalorder %s15, 5
    %p50 = por %p48, %p49
    %p52 = scmp.ne.s32.totalorder %s35, %s51
    %p53 = scmp.eq.s32.totalorder %s15, 0
    %p54 = por %p52, %p53
    %s56 = sadd.s32 %s55, 1
    %p59 = scmp.eq.s32.totalorder %s9, 5
    %p60 = scmp.ne.s32.totalorder %s55, %s57
    %p61 = scmp.eq.s32.totalorder %s9, 0
    %p62 = por %p60, %p61
    %p63 = scmp.ne.s32.totalorder %s55, %s57
    %p64 = scmp.eq.s32.totalorder %s14, 5
    %p65 = por %p63, %p64
    %p66 = scmp.ne.s32.totalorder %s57, %s58
    %p67 = scmp.eq.s32.totalorder %s14, 0
    %p68 = por %p66, %p67
    %p69 = scmp.ne.s32.totalorder %s57, %s58
    %p70 = scmp.eq.s32.totalorder %s15, 5
    %p71 = por %p69, %p70
    %p73 = scmp.ne.s32.totalorder %s58, %s72
    %p74 = scmp.eq.s32.totalorder %s15, 0
    %p75 = por %p73, %p74
    %s77 = sadd.s32 %s76, 1
    %p80 = scmp.eq.s32.totalorder %s9, 5
    %p81 = scmp.ne.s32.totalorder %s76, %s78
    %p82 = scmp.eq.s32.totalorder %s9, 0
    %p83 = por %p81, %p82
    %p84 = scmp.ne.s32.totalorder %s76, %s78
    %p85 = scmp.eq.s32.totalorder %s14, 5
    %p86 = por %p84, %p85
    %p87 = scmp.ne.s32.totalorder %s78, %s79
    %p88 = scmp.eq.s32.totalorder %s14, 0
    %p89 = por %p87, %p88
    %p90 = scmp.ne.s32.totalorder %s78, %s79
    %p91 = scmp.eq.s32.totalorder %s15, 5
    %p92 = por %p90, %p91
    %p94 = scmp.ne.s32.totalorder %s79, %s93
    %p95 = scmp.eq.s32.totalorder %s15, 0
    %p96 = por %p94, %p95
    %s97 = ssub.s32 %s16, %s28
    %s98 = ssub.s32 %s17, %s24
    %s99 = sor.u32 %s97, %s98
    %p100 = scmp.eq.s32.totalorder %s99, 0
    %s102 = sadd.s32 %s101, 1
    %s103 = scalar_select %p100, %s101, %s102
    %p106 = pneg %p100
    %p107 = scmp.eq.s32.totalorder %s9, 5
    %p108 = por %p106, %p107
    %p109 = scmp.ne.s32.totalorder %s101, %s104
    %p110 = scmp.eq.s32.totalorder %s9, 0
    %p111 = por %p109, %p110
    %p112 = scmp.ne.s32.totalorder %s101, %s104
    %p113 = scmp.eq.s32.totalorder %s14, 5
    %p114 = por %p112, %p113
    %p115 = scmp.ne.s32.totalorder %s104, %s105
    %p116 = scmp.eq.s32.totalorder %s14, 0
    %p117 = por %p115, %p116
    %p118 = scmp.ne.s32.totalorder %s104, %s105
    %p119 = scmp.eq.s32.totalorder %s15, 5
    %p120 = por %p118, %p119
    %p122 = scmp.ne.s32.totalorder %s105, %s121
    %p123 = scmp.eq.s32.totalorder %s15, 0
    %p124 = por %p122, %p123
    %p125 = scmp.le.s32.totalorder 1, %s9
    %p126 = scmp.lt.s32.totalorder %s9, 7
    %p127 = pnand %p125, %p126
    %p128 = pneg %p127
    // Predicated region
    $region9: #{expand_forward.5} parent=5 // pred_check
      _
    $region10: #{expand_forward.5} parent=5 // pred_check_branch
      %130 = sbr.rel (%p127) target = $region12
    $region11: #{expand_forward.5} parent=5 // pred_region
      %s131 = ssub.s32 %s9, 1
      // Predicated region
      $region13: #{expand_forward.5} parent=11 // pred_check
        %p132 = pneg %p68
      $region14: #{expand_forward.5} parent=11 // pred_check_branch
        %134 = sbr.rel (%p132) target = $region16
      $region15: #{expand_forward.5} parent=11 // pred_region
        _
      $region16: #{expand_forward.5} parent=11 // pred_fallthru
        _
      // Predicated region
      $region17: #{expand_forward.5} parent=11 // pred_check
        %p135 = pneg %p89
      $region18: #{expand_forward.5} parent=11 // pred_check_branch
        %137 = sbr.rel (%p135) target = $region20
      $region19: #{expand_forward.5} parent=11 // pred_region
        _
      $region20: #{expand_forward.5} parent=11 // pred_fallthru
        _
    $region12: #{expand_forward.5} parent=5 // pred_fallthru
      _
    %p138 = scmp.lt.s32.totalorder %s9, 6
    // Predicated region
    $region21: #{expand_forward.5} parent=5 // pred_check
      %p139 = pneg %p138
    $region22: #{expand_forward.5} parent=5 // pred_check_branch
      %141 = sbr.rel (%p139) target = $region24
    $region23: #{expand_forward.5} parent=5 // pred_region
      // Predicated region
      $region25: #{expand_forward.5} parent=23 // pred_check
        %p142 = pneg %p41
      $region26: #{expand_forward.5} parent=23 // pred_check_branch
        %144 = sbr.rel (%p142) target = $region28
      $region27: #{expand_forward.5} parent=23 // pred_region
        %p145 = scmp.lt.s32.totalorder %s16, 1
        %s146 = scalar_select %p145, %s16, 1
        %s147 = smul.addr %s146, 53
        %s148 = smul.addr %s147, 8
        %s149 = scalar_lea.vmem %s0, %s148
      $region28: #{expand_forward.5} parent=23 // pred_fallthru
        _
    $region24: #{expand_forward.5} parent=5 // pred_fallthru
      _
    %p150 = scmp.le.s32.totalorder 1, %s9
    %p151 = scmp.lt.s32.totalorder %s9, 7
    %p152 = pnand %p150, %p151
    %p153 = pneg %p152
    // Predicated region
    $region29: #{expand_forward.5} parent=5 // pred_check
      _
    $region30: #{expand_forward.5} parent=5 // pred_check_branch
      %155 = sbr.rel (%p152) target = $region32
    $region31: #{expand_forward.5} parent=5 // pred_region
      %s156 = ssub.s32 %s9, 1
      %p157 = scmp.lt.s32.totalorder %s18, 1
      %s158 = scalar_select %p157, %s18, 1
      %s159 = smul.addr %s158, 53
      %s160 = smul.addr %s159, 8
      %s161 = scalar_lea.vmem %s0, %s160
      %p162 = pneg %p47
      %p163 = pneg %p44
      %p164 = pneg %p68
      %p165 = pneg %p65
      %p166 = pneg %p89
      %p167 = pneg %p86
      %p168 = pneg %p117
      %p169 = pneg %p114
      %s170 = smul.u32 16, %s19
      %p171 = scmp.lt.s32.totalorder %s18, 1
      %s172 = scalar_select %p171, %s18, 1
      %p173 = scmp.lt.s32.totalorder %s170, 47
      %s174 = scalar_select %p173, %s170, 47
      %s175 = smul.addr %s172, 48
      %s176 = sadd.s32 %s174, %s175
      %s177 = smul.addr %s176, 8
      %s178 = scalar_lea.vmem %s3, %s177
      %p179 = scmp.lt.s32.totalorder %s18, 1
      %s180 = scalar_select %p179, %s18, 1
      %s181 = smul.addr %s180, 53
      %s182 = smul.addr %s181, 8
      %s183 = scalar_lea.vmem %s0, %s182
      %s184 = smul.u32 16, %s19
      %p185 = scmp.lt.s32.totalorder %s18, 1
      %s186 = scalar_select %p185, %s18, 1
      %p187 = scmp.lt.s32.totalorder %s184, 47
      %s188 = scalar_select %p187, %s184, 47
      %s189 = smul.addr %s186, 48
      %s190 = sadd.s32 %s188, %s189
      %s191 = smul.addr %s190, 8
      %s192 = scalar_lea.vmem %s3, %s191
      %s193 = smul.u32 16, %s19
      %s194 = smul.u32 %s19, 128
      %s195 = scalar_lea.vmem %s183, %s194
      %v196 = vld [vmem:[%s195] sm:$0xff]
      %v197 = vld [vmem:[%s195 + $0x8] sm:$0xff]
      %v198 = vld [vmem:[%s195 + $0x10] sm:$0xff]
      %v199 = vld [vmem:[%s195 + $0x18] sm:$0xff]
      %v200 = vld [vmem:[%s195 + $0x20] sm:$0xff]
      %v201 = vld [vmem:[%s195 + $0x28] sm:$0xff]
      %v202 = vld [vmem:[%s195 + $0x30] sm:$0xff]
      %v203 = vld [vmem:[%s195 + $0x38] sm:$0xff]
      %v204 = vld [vmem:[%s195 + $0x40] sm:$0xff]
      %v205 = vld [vmem:[%s195 + $0x48] sm:$0xff]
      %v206 = vld [vmem:[%s195 + $0x50] sm:$0xff]
      %v207 = vld [vmem:[%s195 + $0x58] sm:$0xff]
      %v208 = vld [vmem:[%s195 + $0x60] sm:$0xff]
      %v209 = vld [vmem:[%s195 + $0x68] sm:$0xff]
      %v210 = vld [vmem:[%s195 + $0x70] sm:$0xff]
      %v211 = vld [vmem:[%s195 + $0x78] sm:$0xff]
      %v212 = vld [vmem:[%s1] sm:$0xff]
      %s213 = sadd.s32 %s194, 1
      %s214 = scalar_lea.vmem %s183, %s213
      %v215 = vld [vmem:[%s214] sm:$0xff]
      %v216 = vld [vmem:[%s214 + $0x8] sm:$0xff]
      %v217 = vld [vmem:[%s214 + $0x10] sm:$0xff]
      %v218 = vld [vmem:[%s214 + $0x18] sm:$0xff]
      %v219 = vld [vmem:[%s214 + $0x20] sm:$0xff]
      %v220 = vld [vmem:[%s214 + $0x28] sm:$0xff]
      %v221 = vld [vmem:[%s214 + $0x30] sm:$0xff]
      %v222 = vld [vmem:[%s214 + $0x38] sm:$0xff]
      %v223 = vld [vmem:[%s214 + $0x40] sm:$0xff]
      %v224 = vld [vmem:[%s214 + $0x48] sm:$0xff]
      %v225 = vld [vmem:[%s214 + $0x50] sm:$0xff]
      %v226 = vld [vmem:[%s214 + $0x58] sm:$0xff]
      %v227 = vld [vmem:[%s214 + $0x60] sm:$0xff]
      %v228 = vld [vmem:[%s214 + $0x68] sm:$0xff]
      %v229 = vld [vmem:[%s214 + $0x70] sm:$0xff]
      %v230 = vld [vmem:[%s214 + $0x78] sm:$0xff]
      %s231 = scalar_lea.vmem %s1, 8
      %v232 = vld [vmem:[%s231] sm:$0xff]
      %vm233 = vcmask 64512
      %v235 = vsel %vm233, %v215, 0
      %v238 = vsel %vm233, %v216, 0
      %v241 = vsel %vm233, %v217, 0
      %v244 = vsel %vm233, %v218, 0
      %v247 = vsel %vm233, %v219, 0
      %v250 = vsel %vm233, %v220, 0
      %v253 = vsel %vm233, %v221, 0
      %v256 = vsel %vm233, %v222, 0
      %v259 = vsel %vm233, %v223, 0
      %v262 = vsel %vm233, %v224, 0
      %v265 = vsel %vm233, %v225, 0
      %v268 = vsel %vm233, %v226, 0
      %v271 = vsel %vm233, %v227, 0
      %v274 = vsel %vm233, %v228, 0
      %v277 = vsel %vm233, %v229, 0
      %v280 = vsel %vm233, %v230, 0
      %282 = vmatpush.msra.mxu0 0.0
      %283 = vmatpush.msra.mxu0 0.0
      %284 = vmatpush.msra.mxu0 0.0
      %285 = vmatpush.msra.mxu0 0.0
      %286 = vmatpush.msra.mxu0 0.0
      %287 = vmatpush.msra.mxu0 0.0
      %288 = vmatpush.msra.mxu0 0.0
      %289 = vmatpush.msra.mxu0 0.0
      %290 = vmatpush.msra.mxu0 0.0
      %291 = vmatpush.msra.mxu0 0.0
      %292 = vmatpush.msra.mxu0 0.0
      %293 = vmatpush.msra.mxu0 0.0
      %294 = vmatpush.msra.mxu0 0.0
      %295 = vmatpush.msra.mxu0 0.0
      %296 = vmatpush.msra.mxu0 0.0
      %297 = vmatpush.msra.mxu0 %v232
      %298 = vmatmul.f32.gmra.mxu0 %v235
      %v299 = vpop.f32.mrf.mxu0
      %v300 = vadd.f32 0.0, %v299
      %301 = vmatmul.f32.gmra.mxu0 %v238
      %v302 = vpop.f32.mrf.mxu0
      %v303 = vadd.f32 0.0, %v302
      %304 = vmatmul.f32.gmra.mxu0 %v241
      %v305 = vpop.f32.mrf.mxu0
      %v306 = vadd.f32 0.0, %v305
      %307 = vmatmul.f32.gmra.mxu0 %v244
      %v308 = vpop.f32.mrf.mxu0
      %v309 = vadd.f32 0.0, %v308
      %310 = vmatmul.f32.gmra.mxu0 %v247
      %v311 = vpop.f32.mrf.mxu0
      %v312 = vadd.f32 0.0, %v311
      %313 = vmatmul.f32.gmra.mxu0 %v250
      %v314 = vpop.f32.mrf.mxu0
      %v315 = vadd.f32 0.0, %v314
      %316 = vmatmul.f32.gmra.mxu0 %v253
      %v317 = vpop.f32.mrf.mxu0
      %v318 = vadd.f32 0.0, %v317
      %319 = vmatmul.f32.gmra.mxu0 %v256
      %v320 = vpop.f32.mrf.mxu0
      %v321 = vadd.f32 0.0, %v320
      %322 = vmatmul.f32.gmra.mxu0 %v259
      %v323 = vpop.f32.mrf.mxu0
      %v324 = vadd.f32 0.0, %v323
      %325 = vmatmul.f32.gmra.mxu0 %v262
      %v326 = vpop.f32.mrf.mxu0
      %v327 = vadd.f32 0.0, %v326
      %328 = vmatmul.f32.gmra.mxu0 %v265
      %v329 = vpop.f32.mrf.mxu0
      %v330 = vadd.f32 0.0, %v329
      %331 = vmatmul.f32.gmra.mxu0 %v268
      %v332 = vpop.f32.mrf.mxu0
      %v333 = vadd.f32 0.0, %v332
      %334 = vmatmul.f32.gmra.mxu0 %v271
      %v335 = vpop.f32.mrf.mxu0
      %v336 = vadd.f32 0.0, %v335
      %337 = vmatmul.f32.gmra.mxu0 %v274
      %v338 = vpop.f32.mrf.mxu0
      %v339 = vadd.f32 0.0, %v338
      %340 = vmatmul.f32.gmra.mxu0 %v277
      %v341 = vpop.f32.mrf.mxu0
      %v342 = vadd.f32 0.0, %v341
      %343 = vmatmul.f32.gmra.mxu0 %v280
      %v344 = vpop.f32.mrf.mxu0
      %v345 = vadd.f32 0.0, %v344
      %346 = vdwg.mxu0
      %v348 = vsel %vm233, %v196, 0
      %v351 = vsel %vm233, %v197, 0
      %v354 = vsel %vm233, %v198, 0
      %v357 = vsel %vm233, %v199, 0
      %v360 = vsel %vm233, %v200, 0
      %v363 = vsel %vm233, %v201, 0
      %v366 = vsel %vm233, %v202, 0
      %v369 = vsel %vm233, %v203, 0
      %v372 = vsel %vm233, %v204, 0
      %v375 = vsel %vm233, %v205, 0
      %v378 = vsel %vm233, %v206, 0
      %v381 = vsel %vm233, %v207, 0
      %v384 = vsel %vm233, %v208, 0
      %v387 = vsel %vm233, %v209, 0
      %v390 = vsel %vm233, %v210, 0
      %v393 = vsel %vm233, %v211, 0
      %395 = vmatpush.msra.mxu0 0.0
      %396 = vmatpush.msra.mxu0 0.0
      %397 = vmatpush.msra.mxu0 0.0
      %398 = vmatpush.msra.mxu0 0.0
      %399 = vmatpush.msra.mxu0 0.0
      %400 = vmatpush.msra.mxu0 0.0
      %401 = vmatpush.msra.mxu0 0.0
      %402 = vmatpush.msra.mxu0 0.0
      %403 = vmatpush.msra.mxu0 0.0
      %404 = vmatpush.msra.mxu0 0.0
      %405 = vmatpush.msra.mxu0 0.0
      %406 = vmatpush.msra.mxu0 0.0
      %407 = vmatpush.msra.mxu0 0.0
      %408 = vmatpush.msra.mxu0 0.0
      %409 = vmatpush.msra.mxu0 0.0
      %410 = vmatpush.msra.mxu0 %v212
      %411 = vmatmul.f32.gmra.mxu0 %v348
      %v412 = vpop.f32.mrf.mxu0
      %v413 = vadd.f32 %v300, %v412
      %414 = vmatmul.f32.gmra.mxu0 %v351
      %v415 = vpop.f32.mrf.mxu0
      %v416 = vadd.f32 %v303, %v415
      %417 = vmatmul.f32.gmra.mxu0 %v354
      %v418 = vpop.f32.mrf.mxu0
      %v419 = vadd.f32 %v306, %v418
      %420 = vmatmul.f32.gmra.mxu0 %v357
      %v421 = vpop.f32.mrf.mxu0
      %v422 = vadd.f32 %v309, %v421
      %423 = vmatmul.f32.gmra.mxu0 %v360
      %v424 = vpop.f32.mrf.mxu0
      %v425 = vadd.f32 %v312, %v424
      %426 = vmatmul.f32.gmra.mxu0 %v363
      %v427 = vpop.f32.mrf.mxu0
      %v428 = vadd.f32 %v315, %v427
      %429 = vmatmul.f32.gmra.mxu0 %v366
      %v430 = vpop.f32.mrf.mxu0
      %v431 = vadd.f32 %v318, %v430
      %432 = vmatmul.f32.gmra.mxu0 %v369
      %v433 = vpop.f32.mrf.mxu0
      %v434 = vadd.f32 %v321, %v433
      %435 = vmatmul.f32.gmra.mxu0 %v372
      %v436 = vpop.f32.mrf.mxu0
      %v437 = vadd.f32 %v324, %v436
      %438 = vmatmul.f32.gmra.mxu0 %v375
      %v439 = vpop.f32.mrf.mxu0
      %v440 = vadd.f32 %v327, %v439
      %441 = vmatmul.f32.gmra.mxu0 %v378
      %v442 = vpop.f32.mrf.mxu0
      %v443 = vadd.f32 %v330, %v442
      %444 = vmatmul.f32.gmra.mxu0 %v381
      %v445 = vpop.f32.mrf.mxu0
      %v446 = vadd.f32 %v333, %v445
      %447 = vmatmul.f32.gmra.mxu0 %v384
      %v448 = vpop.f32.mrf.mxu0
      %v449 = vadd.f32 %v336, %v448
      %450 = vmatmul.f32.gmra.mxu0 %v387
      %v451 = vpop.f32.mrf.mxu0
      %v452 = vadd.f32 %v339, %v451
      %453 = vmatmul.f32.gmra.mxu0 %v390
      %v454 = vpop.f32.mrf.mxu0
      %v455 = vadd.f32 %v342, %v454
      %456 = vmatmul.f32.gmra.mxu0 %v393
      %v457 = vpop.f32.mrf.mxu0
      %v458 = vadd.f32 %v345, %v457
      %459 = vdwg.mxu0
      %s460 = sadd.s32 %s194, 2
      %s461 = scalar_lea.vmem %s183, %s460
      %v462 = vld [vmem:[%s461] sm:$0xff]
      %v463 = vld [vmem:[%s461 + $0x8] sm:$0xff]
      %v464 = vld [vmem:[%s461 + $0x10] sm:$0xff]
      %v465 = vld [vmem:[%s461 + $0x18] sm:$0xff]
      %v466 = vld [vmem:[%s461 + $0x20] sm:$0xff]
      %v467 = vld [vmem:[%s461 + $0x28] sm:$0xff]
      %v468 = vld [vmem:[%s461 + $0x30] sm:$0xff]
      %v469 = vld [vmem:[%s461 + $0x38] sm:$0xff]
      %v470 = vld [vmem:[%s461 + $0x40] sm:$0xff]
      %v471 = vld [vmem:[%s461 + $0x48] sm:$0xff]
      %v472 = vld [vmem:[%s461 + $0x50] sm:$0xff]
      %v473 = vld [vmem:[%s461 + $0x58] sm:$0xff]
      %v474 = vld [vmem:[%s461 + $0x60] sm:$0xff]
      %v475 = vld [vmem:[%s461 + $0x68] sm:$0xff]
      %v476 = vld [vmem:[%s461 + $0x70] sm:$0xff]
      %v477 = vld [vmem:[%s461 + $0x78] sm:$0xff]
      %s478 = scalar_lea.vmem %s1, 16
      %v479 = vld [vmem:[%s478] sm:$0xff]
      %v481 = vsel %vm233, %v462, 0
      %v484 = vsel %vm233, %v463, 0
      %v487 = vsel %vm233, %v464, 0
      %v490 = vsel %vm233, %v465, 0
      %v493 = vsel %vm233, %v466, 0
      %v496 = vsel %vm233, %v467, 0
      %v499 = vsel %vm233, %v468, 0
      %v502 = vsel %vm233, %v469, 0
      %v505 = vsel %vm233, %v470, 0
      %v508 = vsel %vm233, %v471, 0
      %v511 = vsel %vm233, %v472, 0
      %v514 = vsel %vm233, %v473, 0
      %v517 = vsel %vm233, %v474, 0
      %v520 = vsel %vm233, %v475, 0
      %v523 = vsel %vm233, %v476, 0
      %v526 = vsel %vm233, %v477, 0
      %528 = vmatpush.msra.mxu0 0.0
      %529 = vmatpush.msra.mxu0 0.0
      %530 = vmatpush.msra.mxu0 0.0
      %531 = vmatpush.msra.mxu0 0.0
      %532 = vmatpush.msra.mxu0 0.0
      %533 = vmatpush.msra.mxu0 0.0
      %534 = vmatpush.msra.mxu0 0.0
      %535 = vmatpush.msra.mxu0 0.0
      %536 = vmatpush.msra.mxu0 0.0
      %537 = vmatpush.msra.mxu0 0.0
      %538 = vmatpush.msra.mxu0 0.0
      %539 = vmatpush.msra.mxu0 0.0
      %540 = vmatpush.msra.mxu0 0.0
      %541 = vmatpush.msra.mxu0 0.0
      %542 = vmatpush.msra.mxu0 0.0
      %543 = vmatpush.msra.mxu0 %v479
      %544 = vmatmul.f32.gmra.mxu0 %v481
      %v545 = vpop.f32.mrf.mxu0
      %v546 = vadd.f32 0.0, %v545
      %547 = vmatmul.f32.gmra.mxu0 %v484
      %v548 = vpop.f32.mrf.mxu0
      %v549 = vadd.f32 0.0, %v548
      %550 = vmatmul.f32.gmra.mxu0 %v487
      %v551 = vpop.f32.mrf.mxu0
      %v552 = vadd.f32 0.0, %v551
      %553 = vmatmul.f32.gmra.mxu0 %v490
      %v554 = vpop.f32.mrf.mxu0
      %v555 = vadd.f32 0.0, %v554
      %556 = vmatmul.f32.gmra.mxu0 %v493
      %v557 = vpop.f32.mrf.mxu0
      %v558 = vadd.f32 0.0, %v557
      %559 = vmatmul.f32.gmra.mxu0 %v496
      %v560 = vpop.f32.mrf.mxu0
      %v561 = vadd.f32 0.0, %v560
      %562 = vmatmul.f32.gmra.mxu0 %v499
      %v563 = vpop.f32.mrf.mxu0
      %v564 = vadd.f32 0.0, %v563
      %565 = vmatmul.f32.gmra.mxu0 %v502
      %v566 = vpop.f32.mrf.mxu0
      %v567 = vadd.f32 0.0, %v566
      %568 = vmatmul.f32.gmra.mxu0 %v505
      %v569 = vpop.f32.mrf.mxu0
      %v570 = vadd.f32 0.0, %v569
      %571 = vmatmul.f32.gmra.mxu0 %v508
      %v572 = vpop.f32.mrf.mxu0
      %v573 = vadd.f32 0.0, %v572
      %574 = vmatmul.f32.gmra.mxu0 %v511
      %v575 = vpop.f32.mrf.mxu0
      %v576 = vadd.f32 0.0, %v575
      %577 = vmatmul.f32.gmra.mxu0 %v514
      %v578 = vpop.f32.mrf.mxu0
      %v579 = vadd.f32 0.0, %v578
      %580 = vmatmul.f32.gmra.mxu0 %v517
      %v581 = vpop.f32.mrf.mxu0
      %v582 = vadd.f32 0.0, %v581
      %583 = vmatmul.f32.gmra.mxu0 %v520
      %v584 = vpop.f32.mrf.mxu0
      %v585 = vadd.f32 0.0, %v584
      %586 = vmatmul.f32.gmra.mxu0 %v523
      %v587 = vpop.f32.mrf.mxu0
      %v588 = vadd.f32 0.0, %v587
      %589 = vmatmul.f32.gmra.mxu0 %v526
      %v590 = vpop.f32.mrf.mxu0
      %v591 = vadd.f32 0.0, %v590
      %592 = vdwg.mxu0
      %v593 = vadd.f32 %v413, %v546
      %v594 = vadd.f32 %v416, %v549
      %v595 = vadd.f32 %v419, %v552
      %v596 = vadd.f32 %v422, %v555
      %v597 = vadd.f32 %v425, %v558
      %v598 = vadd.f32 %v428, %v561
      %v599 = vadd.f32 %v431, %v564
      %v600 = vadd.f32 %v434, %v567
      %v601 = vadd.f32 %v437, %v570
      %v602 = vadd.f32 %v440, %v573
      %v603 = vadd.f32 %v443, %v576
      %v604 = vadd.f32 %v446, %v579
      %v605 = vadd.f32 %v449, %v582
      %v606 = vadd.f32 %v452, %v585
      %v607 = vadd.f32 %v455, %v588
      %v608 = vadd.f32 %v458, %v591
      %s609 = sadd.s32 %s194, 18
      %s610 = scalar_lea.vmem %s183, %s609
      %v611 = vld [vmem:[%s610] sm:$0xff]
      %v612 = vld [vmem:[%s610 + $0x8] sm:$0xff]
      %v613 = vld [vmem:[%s610 + $0x10] sm:$0xff]
      %v614 = vld [vmem:[%s610 + $0x18] sm:$0xff]
      %v615 = vld [vmem:[%s610 + $0x20] sm:$0xff]
      %v616 = vld [vmem:[%s610 + $0x28] sm:$0xff]
      %v617 = vld [vmem:[%s610 + $0x30] sm:$0xff]
      %v618 = vld [vmem:[%s610 + $0x38] sm:$0xff]
      %v619 = vld [vmem:[%s610 + $0x40] sm:$0xff]
      %v620 = vld [vmem:[%s610 + $0x48] sm:$0xff]
      %v621 = vld [vmem:[%s610 + $0x50] sm:$0xff]
      %v622 = vld [vmem:[%s610 + $0x58] sm:$0xff]
      %v623 = vld [vmem:[%s610 + $0x60] sm:$0xff]
      %v624 = vld [vmem:[%s610 + $0x68] sm:$0xff]
      %v625 = vld [vmem:[%s610 + $0x70] sm:$0xff]
      %v626 = vld [vmem:[%s610 + $0x78] sm:$0xff]
      %s627 = scalar_lea.vmem %s1, 24
      %v628 = vld [vmem:[%s627] sm:$0xff]
      %v630 = vsel %vm233, %v611, 0
      %v633 = vsel %vm233, %v612, 0
      %v636 = vsel %vm233, %v613, 0
      %v639 = vsel %vm233, %v614, 0
      %v642 = vsel %vm233, %v615, 0
      %v645 = vsel %vm233, %v616, 0
      %v648 = vsel %vm233, %v617, 0
      %v651 = vsel %vm233, %v618, 0
      %v654 = vsel %vm233, %v619, 0
      %v657 = vsel %vm233, %v620, 0
      %v660 = vsel %vm233, %v621, 0
      %v663 = vsel %vm233, %v622, 0
      %v666 = vsel %vm233, %v623, 0
      %v669 = vsel %vm233, %v624, 0
      %v672 = vsel %vm233, %v625, 0
      %v675 = vsel %vm233, %v626, 0
      %677 = vmatpush.msra.mxu0 0.0
      %678 = vmatpush.msra.mxu0 0.0
      %679 = vmatpush.msra.mxu0 0.0
      %680 = vmatpush.msra.mxu0 0.0
      %681 = vmatpush.msra.mxu0 0.0
      %682 = vmatpush.msra.mxu0 0.0
      %683 = vmatpush.msra.mxu0 0.0
      %684 = vmatpush.msra.mxu0 0.0
      %685 = vmatpush.msra.mxu0 0.0
      %686 = vmatpush.msra.mxu0 0.0
      %687 = vmatpush.msra.mxu0 0.0
      %688 = vmatpush.msra.mxu0 0.0
      %689 = vmatpush.msra.mxu0 0.0
      %690 = vmatpush.msra.mxu0 0.0
      %691 = vmatpush.msra.mxu0 0.0
      %692 = vmatpush.msra.mxu0 %v628
      %693 = vmatmul.f32.gmra.mxu0 %v630
      %v694 = vpop.f32.mrf.mxu0
      %v695 = vadd.f32 0.0, %v694
      %696 = vmatmul.f32.gmra.mxu0 %v633
      %v697 = vpop.f32.mrf.mxu0
      %v698 = vadd.f32 0.0, %v697
      %699 = vmatmul.f32.gmra.mxu0 %v636
      %v700 = vpop.f32.mrf.mxu0
      %v701 = vadd.f32 0.0, %v700
      %702 = vmatmul.f32.gmra.mxu0 %v639
      %v703 = vpop.f32.mrf.mxu0
      %v704 = vadd.f32 0.0, %v703
      %705 = vmatmul.f32.gmra.mxu0 %v642
      %v706 = vpop.f32.mrf.mxu0
      %v707 = vadd.f32 0.0, %v706
      %708 = vmatmul.f32.gmra.mxu0 %v645
      %v709 = vpop.f32.mrf.mxu0
      %v710 = vadd.f32 0.0, %v709
      %711 = vmatmul.f32.gmra.mxu0 %v648
      %v712 = vpop.f32.mrf.mxu0
      %v713 = vadd.f32 0.0, %v712
      %714 = vmatmul.f32.gmra.mxu0 %v651
      %v715 = vpop.f32.mrf.mxu0
      %v716 = vadd.f32 0.0, %v715
      %717 = vmatmul.f32.gmra.mxu0 %v654
      %v718 = vpop.f32.mrf.mxu0
      %v719 = vadd.f32 0.0, %v718
      %720 = vmatmul.f32.gmra.mxu0 %v657
      %v721 = vpop.f32.mrf.mxu0
      %v722 = vadd.f32 0.0, %v721
      %723 = vmatmul.f32.gmra.mxu0 %v660
      %v724 = vpop.f32.mrf.mxu0
      %v725 = vadd.f32 0.0, %v724
      %726 = vmatmul.f32.gmra.mxu0 %v663
      %v727 = vpop.f32.mrf.mxu0
      %v728 = vadd.f32 0.0, %v727
      %729 = vmatmul.f32.gmra.mxu0 %v666
      %v730 = vpop.f32.mrf.mxu0
      %v731 = vadd.f32 0.0, %v730
      %732 = vmatmul.f32.gmra.mxu0 %v669
      %v733 = vpop.f32.mrf.mxu0
      %v734 = vadd.f32 0.0, %v733
      %735 = vmatmul.f32.gmra.mxu0 %v672
      %v736 = vpop.f32.mrf.mxu0
      %v737 = vadd.f32 0.0, %v736
      %738 = vmatmul.f32.gmra.mxu0 %v675
      %v739 = vpop.f32.mrf.mxu0
      %v740 = vadd.f32 0.0, %v739
      %741 = vdwg.mxu0
      %v742 = vadd.f32 %v593, %v695
      %v743 = vadd.f32 %v594, %v698
      %v744 = vadd.f32 %v595, %v701
      %v745 = vadd.f32 %v596, %v704
      %v746 = vadd.f32 %v597, %v707
      %v747 = vadd.f32 %v598, %v710
      %v748 = vadd.f32 %v599, %v713
      %v749 = vadd.f32 %v600, %v716
      %v750 = vadd.f32 %v601, %v719
      %v751 = vadd.f32 %v602, %v722
      %v752 = vadd.f32 %v603, %v725
      %v753 = vadd.f32 %v604, %v728
      %v754 = vadd.f32 %v605, %v731
      %v755 = vadd.f32 %v606, %v734
      %v756 = vadd.f32 %v607, %v737
      %v757 = vadd.f32 %v608, %v740
      %s758 = sadd.s32 %s194, 19
      %s759 = scalar_lea.vmem %s183, %s758
      %v760 = vld [vmem:[%s759] sm:$0xff]
      %v761 = vld [vmem:[%s759 + $0x8] sm:$0xff]
      %v762 = vld [vmem:[%s759 + $0x10] sm:$0xff]
      %v763 = vld [vmem:[%s759 + $0x18] sm:$0xff]
      %v764 = vld [vmem:[%s759 + $0x20] sm:$0xff]
      %v765 = vld [vmem:[%s759 + $0x28] sm:$0xff]
      %v766 = vld [vmem:[%s759 + $0x30] sm:$0xff]
      %v767 = vld [vmem:[%s759 + $0x38] sm:$0xff]
      %v768 = vld [vmem:[%s759 + $0x40] sm:$0xff]
      %v769 = vld [vmem:[%s759 + $0x48] sm:$0xff]
      %v770 = vld [vmem:[%s759 + $0x50] sm:$0xff]
      %v771 = vld [vmem:[%s759 + $0x58] sm:$0xff]
      %v772 = vld [vmem:[%s759 + $0x60] sm:$0xff]
      %v773 = vld [vmem:[%s759 + $0x68] sm:$0xff]
      %v774 = vld [vmem:[%s759 + $0x70] sm:$0xff]
      %v775 = vld [vmem:[%s759 + $0x78] sm:$0xff]
      %s776 = scalar_lea.vmem %s1, 32
      %v777 = vld [vmem:[%s776] sm:$0xff]
      %v779 = vsel %vm233, %v760, 0
      %v782 = vsel %vm233, %v761, 0
      %v785 = vsel %vm233, %v762, 0
      %v788 = vsel %vm233, %v763, 0
      %v791 = vsel %vm233, %v764, 0
      %v794 = vsel %vm233, %v765, 0
      %v797 = vsel %vm233, %v766, 0
      %v800 = vsel %vm233, %v767, 0
      %v803 = vsel %vm233, %v768, 0
      %v806 = vsel %vm233, %v769, 0
      %v809 = vsel %vm233, %v770, 0
      %v812 = vsel %vm233, %v771, 0
      %v815 = vsel %vm233, %v772, 0
      %v818 = vsel %vm233, %v773, 0
      %v821 = vsel %vm233, %v774, 0
      %v824 = vsel %vm233, %v775, 0
      %826 = vmatpush.msra.mxu0 0.0
      %827 = vmatpush.msra.mxu0 0.0
      %828 = vmatpush.msra.mxu0 0.0
      %829 = vmatpush.msra.mxu0 0.0
      %830 = vmatpush.msra.mxu0 0.0
      %831 = vmatpush.msra.mxu0 0.0
      %832 = vmatpush.msra.mxu0 0.0
      %833 = vmatpush.msra.mxu0 0.0
      %834 = vmatpush.msra.mxu0 0.0
      %835 = vmatpush.msra.mxu0 0.0
      %836 = vmatpush.msra.mxu0 0.0
      %837 = vmatpush.msra.mxu0 0.0
      %838 = vmatpush.msra.mxu0 0.0
      %839 = vmatpush.msra.mxu0 0.0
      %840 = vmatpush.msra.mxu0 0.0
      %841 = vmatpush.msra.mxu0 %v777
      %842 = vmatmul.f32.gmra.mxu0 %v779
      %v843 = vpop.f32.mrf.mxu0
      %v844 = vadd.f32 0.0, %v843
      %845 = vmatmul.f32.gmra.mxu0 %v782
      %v846 = vpop.f32.mrf.mxu0
      %v847 = vadd.f32 0.0, %v846
      %848 = vmatmul.f32.gmra.mxu0 %v785
      %v849 = vpop.f32.mrf.mxu0
      %v850 = vadd.f32 0.0, %v849
      %851 = vmatmul.f32.gmra.mxu0 %v788
      %v852 = vpop.f32.mrf.mxu0
      %v853 = vadd.f32 0.0, %v852
      %854 = vmatmul.f32.gmra.mxu0 %v791
      %v855 = vpop.f32.mrf.mxu0
      %v856 = vadd.f32 0.0, %v855
      %857 = vmatmul.f32.gmra.mxu0 %v794
      %v858 = vpop.f32.mrf.mxu0
      %v859 = vadd.f32 0.0, %v858
      %860 = vmatmul.f32.gmra.mxu0 %v797
      %v861 = vpop.f32.mrf.mxu0
      %v862 = vadd.f32 0.0, %v861
      %863 = vmatmul.f32.gmra.mxu0 %v800
      %v864 = vpop.f32.mrf.mxu0
      %v865 = vadd.f32 0.0, %v864
      %866 = vmatmul.f32.gmra.mxu0 %v803
      %v867 = vpop.f32.mrf.mxu0
      %v868 = vadd.f32 0.0, %v867
      %869 = vmatmul.f32.gmra.mxu0 %v806
      %v870 = vpop.f32.mrf.mxu0
      %v871 = vadd.f32 0.0, %v870
      %872 = vmatmul.f32.gmra.mxu0 %v809
      %v873 = vpop.f32.mrf.mxu0
      %v874 = vadd.f32 0.0, %v873
      %875 = vmatmul.f32.gmra.mxu0 %v812
      %v876 = vpop.f32.mrf.mxu0
      %v877 = vadd.f32 0.0, %v876
      %878 = vmatmul.f32.gmra.mxu0 %v815
      %v879 = vpop.f32.mrf.mxu0
      %v880 = vadd.f32 0.0, %v879
      %881 = vmatmul.f32.gmra.mxu0 %v818
      %v882 = vpop.f32.mrf.mxu0
      %v883 = vadd.f32 0.0, %v882
      %884 = vmatmul.f32.gmra.mxu0 %v821
      %v885 = vpop.f32.mrf.mxu0
      %v886 = vadd.f32 0.0, %v885
      %887 = vmatmul.f32.gmra.mxu0 %v824
      %v888 = vpop.f32.mrf.mxu0
      %v889 = vadd.f32 0.0, %v888
      %890 = vdwg.mxu0
      %v891 = vadd.f32 %v742, %v844
      %v892 = vadd.f32 %v743, %v847
      %v893 = vadd.f32 %v744, %v850
      %v894 = vadd.f32 %v745, %v853
      %v895 = vadd.f32 %v746, %v856
      %v896 = vadd.f32 %v747, %v859
      %v897 = vadd.f32 %v748, %v862
      %v898 = vadd.f32 %v749, %v865
      %v899 = vadd.f32 %v750, %v868
      %v900 = vadd.f32 %v751, %v871
      %v901 = vadd.f32 %v752, %v874
      %v902 = vadd.f32 %v753, %v877
      %v903 = vadd.f32 %v754, %v880
      %v904 = vadd.f32 %v755, %v883
      %v905 = vadd.f32 %v756, %v886
      %v906 = vadd.f32 %v757, %v889
      %s907 = sadd.s32 %s194, 20
      %s908 = scalar_lea.vmem %s183, %s907
      %v909 = vld [vmem:[%s908] sm:$0xff]
      %v910 = vld [vmem:[%s908 + $0x8] sm:$0xff]
      %v911 = vld [vmem:[%s908 + $0x10] sm:$0xff]
      %v912 = vld [vmem:[%s908 + $0x18] sm:$0xff]
      %v913 = vld [vmem:[%s908 + $0x20] sm:$0xff]
      %v914 = vld [vmem:[%s908 + $0x28] sm:$0xff]
      %v915 = vld [vmem:[%s908 + $0x30] sm:$0xff]
      %v916 = vld [vmem:[%s908 + $0x38] sm:$0xff]
      %v917 = vld [vmem:[%s908 + $0x40] sm:$0xff]
      %v918 = vld [vmem:[%s908 + $0x48] sm:$0xff]
      %v919 = vld [vmem:[%s908 + $0x50] sm:$0xff]
      %v920 = vld [vmem:[%s908 + $0x58] sm:$0xff]
      %v921 = vld [vmem:[%s908 + $0x60] sm:$0xff]
      %v922 = vld [vmem:[%s908 + $0x68] sm:$0xff]
      %v923 = vld [vmem:[%s908 + $0x70] sm:$0xff]
      %v924 = vld [vmem:[%s908 + $0x78] sm:$0xff]
      %s925 = scalar_lea.vmem %s1, 40
      %v926 = vld [vmem:[%s925] sm:$0xff]
      %v928 = vsel %vm233, %v909, 0
      %v931 = vsel %vm233, %v910, 0
      %v934 = vsel %vm233, %v911, 0
      %v937 = vsel %vm233, %v912, 0
      %v940 = vsel %vm233, %v913, 0
      %v943 = vsel %vm233, %v914, 0
      %v946 = vsel %vm233, %v915, 0
      %v949 = vsel %vm233, %v916, 0
      %v952 = vsel %vm233, %v917, 0
      %v955 = vsel %vm233, %v918, 0
      %v958 = vsel %vm233, %v919, 0
      %v961 = vsel %vm233, %v920, 0
      %v964 = vsel %vm233, %v921, 0
      %v967 = vsel %vm233, %v922, 0
      %v970 = vsel %vm233, %v923, 0
      %v973 = vsel %vm233, %v924, 0
      %975 = vmatpush.msra.mxu0 0.0
      %976 = vmatpush.msra.mxu0 0.0
      %977 = vmatpush.msra.mxu0 0.0
      %978 = vmatpush.msra.mxu0 0.0
      %979 = vmatpush.msra.mxu0 0.0
      %980 = vmatpush.msra.mxu0 0.0
      %981 = vmatpush.msra.mxu0 0.0
      %982 = vmatpush.msra.mxu0 0.0
      %983 = vmatpush.msra.mxu0 0.0
      %984 = vmatpush.msra.mxu0 0.0
      %985 = vmatpush.msra.mxu0 0.0
      %986 = vmatpush.msra.mxu0 0.0
      %987 = vmatpush.msra.mxu0 0.0
      %988 = vmatpush.msra.mxu0 0.0
      %989 = vmatpush.msra.mxu0 0.0
      %990 = vmatpush.msra.mxu0 %v926
      %991 = vmatmul.f32.gmra.mxu0 %v928
      %v992 = vpop.f32.mrf.mxu0
      %v993 = vadd.f32 0.0, %v992
      %994 = vmatmul.f32.gmra.mxu0 %v931
      %v995 = vpop.f32.mrf.mxu0
      %v996 = vadd.f32 0.0, %v995
      %997 = vmatmul.f32.gmra.mxu0 %v934
      %v998 = vpop.f32.mrf.mxu0
      %v999 = vadd.f32 0.0, %v998
      %1000 = vmatmul.f32.gmra.mxu0 %v937
      %v1001 = vpop.f32.mrf.mxu0
      %v1002 = vadd.f32 0.0, %v1001
      %1003 = vmatmul.f32.gmra.mxu0 %v940
      %v1004 = vpop.f32.mrf.mxu0
      %v1005 = vadd.f32 0.0, %v1004
      %1006 = vmatmul.f32.gmra.mxu0 %v943
      %v1007 = vpop.f32.mrf.mxu0
      %v1008 = vadd.f32 0.0, %v1007
      %1009 = vmatmul.f32.gmra.mxu0 %v946
      %v1010 = vpop.f32.mrf.mxu0
      %v1011 = vadd.f32 0.0, %v1010
      %1012 = vmatmul.f32.gmra.mxu0 %v949
      %v1013 = vpop.f32.mrf.mxu0
      %v1014 = vadd.f32 0.0, %v1013
      %1015 = vmatmul.f32.gmra.mxu0 %v952
      %v1016 = vpop.f32.mrf.mxu0
      %v1017 = vadd.f32 0.0, %v1016
      %1018 = vmatmul.f32.gmra.mxu0 %v955
      %v1019 = vpop.f32.mrf.mxu0
      %v1020 = vadd.f32 0.0, %v1019
      %1021 = vmatmul.f32.gmra.mxu0 %v958
      %v1022 = vpop.f32.mrf.mxu0
      %v1023 = vadd.f32 0.0, %v1022
      %1024 = vmatmul.f32.gmra.mxu0 %v961
      %v1025 = vpop.f32.mrf.mxu0
      %v1026 = vadd.f32 0.0, %v1025
      %1027 = vmatmul.f32.gmra.mxu0 %v964
      %v1028 = vpop.f32.mrf.mxu0
      %v1029 = vadd.f32 0.0, %v1028
      %1030 = vmatmul.f32.gmra.mxu0 %v967
      %v1031 = vpop.f32.mrf.mxu0
      %v1032 = vadd.f32 0.0, %v1031
      %1033 = vmatmul.f32.gmra.mxu0 %v970
      %v1034 = vpop.f32.mrf.mxu0
      %v1035 = vadd.f32 0.0, %v1034
      %1036 = vmatmul.f32.gmra.mxu0 %v973
      %v1037 = vpop.f32.mrf.mxu0
      %v1038 = vadd.f32 0.0, %v1037
      %1039 = vdwg.mxu0
      %v1040 = vadd.f32 %v891, %v993
      %v1041 = vadd.f32 %v892, %v996
      %v1042 = vadd.f32 %v893, %v999
      %v1043 = vadd.f32 %v894, %v1002
      %v1044 = vadd.f32 %v895, %v1005
      %v1045 = vadd.f32 %v896, %v1008
      %v1046 = vadd.f32 %v897, %v1011
      %v1047 = vadd.f32 %v898, %v1014
      %v1048 = vadd.f32 %v899, %v1017
      %v1049 = vadd.f32 %v900, %v1020
      %v1050 = vadd.f32 %v901, %v1023
      %v1051 = vadd.f32 %v902, %v1026
      %v1052 = vadd.f32 %v903, %v1029
      %v1053 = vadd.f32 %v904, %v1032
      %v1054 = vadd.f32 %v905, %v1035
      %v1055 = vadd.f32 %v906, %v1038
      %s1056 = sadd.s32 %s194, 36
      %s1057 = scalar_lea.vmem %s183, %s1056
      %v1058 = vld [vmem:[%s1057] sm:$0xff]
      %v1059 = vld [vmem:[%s1057 + $0x8] sm:$0xff]
      %v1060 = vld [vmem:[%s1057 + $0x10] sm:$0xff]
      %v1061 = vld [vmem:[%s1057 + $0x18] sm:$0xff]
      %v1062 = vld [vmem:[%s1057 + $0x20] sm:$0xff]
      %v1063 = vld [vmem:[%s1057 + $0x28] sm:$0xff]
      %v1064 = vld [vmem:[%s1057 + $0x30] sm:$0xff]
      %v1065 = vld [vmem:[%s1057 + $0x38] sm:$0xff]
      %v1066 = vld [vmem:[%s1057 + $0x40] sm:$0xff]
      %v1067 = vld [vmem:[%s1057 + $0x48] sm:$0xff]
      %v1068 = vld [vmem:[%s1057 + $0x50] sm:$0xff]
      %v1069 = vld [vmem:[%s1057 + $0x58] sm:$0xff]
      %v1070 = vld [vmem:[%s1057 + $0x60] sm:$0xff]
      %v1071 = vld [vmem:[%s1057 + $0x68] sm:$0xff]
      %v1072 = vld [vmem:[%s1057 + $0x70] sm:$0xff]
      %v1073 = vld [vmem:[%s1057 + $0x78] sm:$0xff]
      %s1074 = scalar_lea.vmem %s1, 48
      %v1075 = vld [vmem:[%s1074] sm:$0xff]
      %v1077 = vsel %vm233, %v1058, 0
      %v1080 = vsel %vm233, %v1059, 0
      %v1083 = vsel %vm233, %v1060, 0
      %v1086 = vsel %vm233, %v1061, 0
      %v1089 = vsel %vm233, %v1062, 0
      %v1092 = vsel %vm233, %v1063, 0
      %v1095 = vsel %vm233, %v1064, 0
      %v1098 = vsel %vm233, %v1065, 0
      %v1101 = vsel %vm233, %v1066, 0
      %v1104 = vsel %vm233, %v1067, 0
      %v1107 = vsel %vm233, %v1068, 0
      %v1110 = vsel %vm233, %v1069, 0
      %v1113 = vsel %vm233, %v1070, 0
      %v1116 = vsel %vm233, %v1071, 0
      %v1119 = vsel %vm233, %v1072, 0
      %v1122 = vsel %vm233, %v1073, 0
      %1124 = vmatpush.msra.mxu0 0.0
      %1125 = vmatpush.msra.mxu0 0.0
      %1126 = vmatpush.msra.mxu0 0.0
      %1127 = vmatpush.msra.mxu0 0.0
      %1128 = vmatpush.msra.mxu0 0.0
      %1129 = vmatpush.msra.mxu0 0.0
      %1130 = vmatpush.msra.mxu0 0.0
      %1131 = vmatpush.msra.mxu0 0.0
      %1132 = vmatpush.msra.mxu0 0.0
      %1133 = vmatpush.msra.mxu0 0.0
      %1134 = vmatpush.msra.mxu0 0.0
      %1135 = vmatpush.msra.mxu0 0.0
      %1136 = vmatpush.msra.mxu0 0.0
      %1137 = vmatpush.msra.mxu0 0.0
      %1138 = vmatpush.msra.mxu0 0.0
      %1139 = vmatpush.msra.mxu0 %v1075
      %1140 = vmatmul.f32.gmra.mxu0 %v1077
      %v1141 = vpop.f32.mrf.mxu0
      %v1142 = vadd.f32 0.0, %v1141
      %1143 = vmatmul.f32.gmra.mxu0 %v1080
      %v1144 = vpop.f32.mrf.mxu0
      %v1145 = vadd.f32 0.0, %v1144
      %1146 = vmatmul.f32.gmra.mxu0 %v1083
      %v1147 = vpop.f32.mrf.mxu0
      %v1148 = vadd.f32 0.0, %v1147
      %1149 = vmatmul.f32.gmra.mxu0 %v1086
      %v1150 = vpop.f32.mrf.mxu0
      %v1151 = vadd.f32 0.0, %v1150
      %1152 = vmatmul.f32.gmra.mxu0 %v1089
      %v1153 = vpop.f32.mrf.mxu0
      %v1154 = vadd.f32 0.0, %v1153
      %1155 = vmatmul.f32.gmra.mxu0 %v1092
      %v1156 = vpop.f32.mrf.mxu0
      %v1157 = vadd.f32 0.0, %v1156
      %1158 = vmatmul.f32.gmra.mxu0 %v1095
      %v1159 = vpop.f32.mrf.mxu0
      %v1160 = vadd.f32 0.0, %v1159
      %1161 = vmatmul.f32.gmra.mxu0 %v1098
      %v1162 = vpop.f32.mrf.mxu0
      %v1163 = vadd.f32 0.0, %v1162
      %1164 = vmatmul.f32.gmra.mxu0 %v1101
      %v1165 = vpop.f32.mrf.mxu0
      %v1166 = vadd.f32 0.0, %v1165
      %1167 = vmatmul.f32.gmra.mxu0 %v1104
      %v1168 = vpop.f32.mrf.mxu0
      %v1169 = vadd.f32 0.0, %v1168
      %1170 = vmatmul.f32.gmra.mxu0 %v1107
      %v1171 = vpop.f32.mrf.mxu0
      %v1172 = vadd.f32 0.0, %v1171
      %1173 = vmatmul.f32.gmra.mxu0 %v1110
      %v1174 = vpop.f32.mrf.mxu0
      %v1175 = vadd.f32 0.0, %v1174
      %1176 = vmatmul.f32.gmra.mxu0 %v1113
      %v1177 = vpop.f32.mrf.mxu0
      %v1178 = vadd.f32 0.0, %v1177
      %1179 = vmatmul.f32.gmra.mxu0 %v1116
      %v1180 = vpop.f32.mrf.mxu0
      %v1181 = vadd.f32 0.0, %v1180
      %1182 = vmatmul.f32.gmra.mxu0 %v1119
      %v1183 = vpop.f32.mrf.mxu0
      %v1184 = vadd.f32 0.0, %v1183
      %1185 = vmatmul.f32.gmra.mxu0 %v1122
      %v1186 = vpop.f32.mrf.mxu0
      %v1187 = vadd.f32 0.0, %v1186
      %1188 = vdwg.mxu0
      %v1189 = vadd.f32 %v1040, %v1142
      %v1190 = vadd.f32 %v1041, %v1145
      %v1191 = vadd.f32 %v1042, %v1148
      %v1192 = vadd.f32 %v1043, %v1151
      %v1193 = vadd.f32 %v1044, %v1154
      %v1194 = vadd.f32 %v1045, %v1157
      %v1195 = vadd.f32 %v1046, %v1160
      %v1196 = vadd.f32 %v1047, %v1163
      %v1197 = vadd.f32 %v1048, %v1166
      %v1198 = vadd.f32 %v1049, %v1169
      %v1199 = vadd.f32 %v1050, %v1172
      %v1200 = vadd.f32 %v1051, %v1175
      %v1201 = vadd.f32 %v1052, %v1178
      %v1202 = vadd.f32 %v1053, %v1181
      %v1203 = vadd.f32 %v1054, %v1184
      %v1204 = vadd.f32 %v1055, %v1187
      %s1205 = sadd.s32 %s194, 37
      %s1206 = scalar_lea.vmem %s183, %s1205
      %v1207 = vld [vmem:[%s1206] sm:$0xff]
      %v1208 = vld [vmem:[%s1206 + $0x8] sm:$0xff]
      %v1209 = vld [vmem:[%s1206 + $0x10] sm:$0xff]
      %v1210 = vld [vmem:[%s1206 + $0x18] sm:$0xff]
      %v1211 = vld [vmem:[%s1206 + $0x20] sm:$0xff]
      %v1212 = vld [vmem:[%s1206 + $0x28] sm:$0xff]
      %v1213 = vld [vmem:[%s1206 + $0x30] sm:$0xff]
      %v1214 = vld [vmem:[%s1206 + $0x38] sm:$0xff]
      %v1215 = vld [vmem:[%s1206 + $0x40] sm:$0xff]
      %v1216 = vld [vmem:[%s1206 + $0x48] sm:$0xff]
      %v1217 = vld [vmem:[%s1206 + $0x50] sm:$0xff]
      %v1218 = vld [vmem:[%s1206 + $0x58] sm:$0xff]
      %v1219 = vld [vmem:[%s1206 + $0x60] sm:$0xff]
      %v1220 = vld [vmem:[%s1206 + $0x68] sm:$0xff]
      %v1221 = vld [vmem:[%s1206 + $0x70] sm:$0xff]
      %v1222 = vld [vmem:[%s1206 + $0x78] sm:$0xff]
      %s1223 = scalar_lea.vmem %s1, 56
      %v1224 = vld [vmem:[%s1223] sm:$0xff]
      %v1226 = vsel %vm233, %v1207, 0
      %v1229 = vsel %vm233, %v1208, 0
      %v1232 = vsel %vm233, %v1209, 0
      %v1235 = vsel %vm233, %v1210, 0
      %v1238 = vsel %vm233, %v1211, 0
      %v1241 = vsel %vm233, %v1212, 0
      %v1244 = vsel %vm233, %v1213, 0
      %v1247 = vsel %vm233, %v1214, 0
      %v1250 = vsel %vm233, %v1215, 0
      %v1253 = vsel %vm233, %v1216, 0
      %v1256 = vsel %vm233, %v1217, 0
      %v1259 = vsel %vm233, %v1218, 0
      %v1262 = vsel %vm233, %v1219, 0
      %v1265 = vsel %vm233, %v1220, 0
      %v1268 = vsel %vm233, %v1221, 0
      %v1271 = vsel %vm233, %v1222, 0
      %1273 = vmatpush.msra.mxu0 0.0
      %1274 = vmatpush.msra.mxu0 0.0
      %1275 = vmatpush.msra.mxu0 0.0
      %1276 = vmatpush.msra.mxu0 0.0
      %1277 = vmatpush.msra.mxu0 0.0
      %1278 = vmatpush.msra.mxu0 0.0
      %1279 = vmatpush.msra.mxu0 0.0
      %1280 = vmatpush.msra.mxu0 0.0
      %1281 = vmatpush.msra.mxu0 0.0
      %1282 = vmatpush.msra.mxu0 0.0
      %1283 = vmatpush.msra.mxu0 0.0
      %1284 = vmatpush.msra.mxu0 0.0
      %1285 = vmatpush.msra.mxu0 0.0
      %1286 = vmatpush.msra.mxu0 0.0
      %1287 = vmatpush.msra.mxu0 0.0
      %1288 = vmatpush.msra.mxu0 %v1224
      %1289 = vmatmul.f32.gmra.mxu0 %v1226
      %v1290 = vpop.f32.mrf.mxu0
      %v1291 = vadd.f32 0.0, %v1290
      %1292 = vmatmul.f32.gmra.mxu0 %v1229
      %v1293 = vpop.f32.mrf.mxu0
      %v1294 = vadd.f32 0.0, %v1293
      %1295 = vmatmul.f32.gmra.mxu0 %v1232
      %v1296 = vpop.f32.mrf.mxu0
      %v1297 = vadd.f32 0.0, %v1296
      %1298 = vmatmul.f32.gmra.mxu0 %v1235
      %v1299 = vpop.f32.mrf.mxu0
      %v1300 = vadd.f32 0.0, %v1299
      %1301 = vmatmul.f32.gmra.mxu0 %v1238
      %v1302 = vpop.f32.mrf.mxu0
      %v1303 = vadd.f32 0.0, %v1302
      %1304 = vmatmul.f32.gmra.mxu0 %v1241
      %v1305 = vpop.f32.mrf.mxu0
      %v1306 = vadd.f32 0.0, %v1305
      %1307 = vmatmul.f32.gmra.mxu0 %v1244
      %v1308 = vpop.f32.mrf.mxu0
      %v1309 = vadd.f32 0.0, %v1308
      %1310 = vmatmul.f32.gmra.mxu0 %v1247
      %v1311 = vpop.f32.mrf.mxu0
      %v1312 = vadd.f32 0.0, %v1311
      %1313 = vmatmul.f32.gmra.mxu0 %v1250
      %v1314 = vpop.f32.mrf.mxu0
      %v1315 = vadd.f32 0.0, %v1314
      %1316 = vmatmul.f32.gmra.mxu0 %v1253
      %v1317 = vpop.f32.mrf.mxu0
      %v1318 = vadd.f32 0.0, %v1317
      %1319 = vmatmul.f32.gmra.mxu0 %v1256
      %v1320 = vpop.f32.mrf.mxu0
      %v1321 = vadd.f32 0.0, %v1320
      %1322 = vmatmul.f32.gmra.mxu0 %v1259
      %v1323 = vpop.f32.mrf.mxu0
      %v1324 = vadd.f32 0.0, %v1323
      %1325 = vmatmul.f32.gmra.mxu0 %v1262
      %v1326 = vpop.f32.mrf.mxu0
      %v1327 = vadd.f32 0.0, %v1326
      %1328 = vmatmul.f32.gmra.mxu0 %v1265
      %v1329 = vpop.f32.mrf.mxu0
      %v1330 = vadd.f32 0.0, %v1329
      %1331 = vmatmul.f32.gmra.mxu0 %v1268
      %v1332 = vpop.f32.mrf.mxu0
      %v1333 = vadd.f32 0.0, %v1332
      %1334 = vmatmul.f32.gmra.mxu0 %v1271
      %v1335 = vpop.f32.mrf.mxu0
      %v1336 = vadd.f32 0.0, %v1335
      %1337 = vdwg.mxu0
      %v1338 = vadd.f32 %v1189, %v1291
      %v1339 = vadd.f32 %v1190, %v1294
      %v1340 = vadd.f32 %v1191, %v1297
      %v1341 = vadd.f32 %v1192, %v1300
      %v1342 = vadd.f32 %v1193, %v1303
      %v1343 = vadd.f32 %v1194, %v1306
      %v1344 = vadd.f32 %v1195, %v1309
      %v1345 = vadd.f32 %v1196, %v1312
      %v1346 = vadd.f32 %v1197, %v1315
      %v1347 = vadd.f32 %v1198, %v1318
      %v1348 = vadd.f32 %v1199, %v1321
      %v1349 = vadd.f32 %v1200, %v1324
      %v1350 = vadd.f32 %v1201, %v1327
      %v1351 = vadd.f32 %v1202, %v1330
      %v1352 = vadd.f32 %v1203, %v1333
      %v1353 = vadd.f32 %v1204, %v1336
      %s1354 = sadd.s32 %s194, 38
      %s1355 = scalar_lea.vmem %s183, %s1354
      %v1356 = vld [vmem:[%s1355] sm:$0xff]
      %v1357 = vld [vmem:[%s1355 + $0x8] sm:$0xff]
      %v1358 = vld [vmem:[%s1355 + $0x10] sm:$0xff]
      %v1359 = vld [vmem:[%s1355 + $0x18] sm:$0xff]
      %v1360 = vld [vmem:[%s1355 + $0x20] sm:$0xff]
      %v1361 = vld [vmem:[%s1355 + $0x28] sm:$0xff]
      %v1362 = vld [vmem:[%s1355 + $0x30] sm:$0xff]
      %v1363 = vld [vmem:[%s1355 + $0x38] sm:$0xff]
      %v1364 = vld [vmem:[%s1355 + $0x40] sm:$0xff]
      %v1365 = vld [vmem:[%s1355 + $0x48] sm:$0xff]
      %v1366 = vld [vmem:[%s1355 + $0x50] sm:$0xff]
      %v1367 = vld [vmem:[%s1355 + $0x58] sm:$0xff]
      %v1368 = vld [vmem:[%s1355 + $0x60] sm:$0xff]
      %v1369 = vld [vmem:[%s1355 + $0x68] sm:$0xff]
      %v1370 = vld [vmem:[%s1355 + $0x70] sm:$0xff]
      %v1371 = vld [vmem:[%s1355 + $0x78] sm:$0xff]
      %s1372 = scalar_lea.vmem %s1, 64
      %v1373 = vld [vmem:[%s1372] sm:$0xff]
      %v1375 = vsel %vm233, %v1356, 0
      %v1378 = vsel %vm233, %v1357, 0
      %v1381 = vsel %vm233, %v1358, 0
      %v1384 = vsel %vm233, %v1359, 0
      %v1387 = vsel %vm233, %v1360, 0
      %v1390 = vsel %vm233, %v1361, 0
      %v1393 = vsel %vm233, %v1362, 0
      %v1396 = vsel %vm233, %v1363, 0
      %v1399 = vsel %vm233, %v1364, 0
      %v1402 = vsel %vm233, %v1365, 0
      %v1405 = vsel %vm233, %v1366, 0
      %v1408 = vsel %vm233, %v1367, 0
      %v1411 = vsel %vm233, %v1368, 0
      %v1414 = vsel %vm233, %v1369, 0
      %v1417 = vsel %vm233, %v1370, 0
      %v1420 = vsel %vm233, %v1371, 0
      %1422 = vmatpush.msra.mxu0 0.0
      %1423 = vmatpush.msra.mxu0 0.0
      %1424 = vmatpush.msra.mxu0 0.0
      %1425 = vmatpush.msra.mxu0 0.0
      %1426 = vmatpush.msra.mxu0 0.0
      %1427 = vmatpush.msra.mxu0 0.0
      %1428 = vmatpush.msra.mxu0 0.0
      %1429 = vmatpush.msra.mxu0 0.0
      %1430 = vmatpush.msra.mxu0 0.0
      %1431 = vmatpush.msra.mxu0 0.0
      %1432 = vmatpush.msra.mxu0 0.0
      %1433 = vmatpush.msra.mxu0 0.0
      %1434 = vmatpush.msra.mxu0 0.0
      %1435 = vmatpush.msra.mxu0 0.0
      %1436 = vmatpush.msra.mxu0 0.0
      %1437 = vmatpush.msra.mxu0 %v1373
      %1438 = vmatmul.f32.gmra.mxu0 %v1375
      %v1439 = vpop.f32.mrf.mxu0
      %v1440 = vadd.f32 0.0, %v1439
      %1441 = vmatmul.f32.gmra.mxu0 %v1378
      %v1442 = vpop.f32.mrf.mxu0
      %v1443 = vadd.f32 0.0, %v1442
      %1444 = vmatmul.f32.gmra.mxu0 %v1381
      %v1445 = vpop.f32.mrf.mxu0
      %v1446 = vadd.f32 0.0, %v1445
      %1447 = vmatmul.f32.gmra.mxu0 %v1384
      %v1448 = vpop.f32.mrf.mxu0
      %v1449 = vadd.f32 0.0, %v1448
      %1450 = vmatmul.f32.gmra.mxu0 %v1387
      %v1451 = vpop.f32.mrf.mxu0
      %v1452 = vadd.f32 0.0, %v1451
      %1453 = vmatmul.f32.gmra.mxu0 %v1390
      %v1454 = vpop.f32.mrf.mxu0
      %v1455 = vadd.f32 0.0, %v1454
      %1456 = vmatmul.f32.gmra.mxu0 %v1393
      %v1457 = vpop.f32.mrf.mxu0
      %v1458 = vadd.f32 0.0, %v1457
      %1459 = vmatmul.f32.gmra.mxu0 %v1396
      %v1460 = vpop.f32.mrf.mxu0
      %v1461 = vadd.f32 0.0, %v1460
      %1462 = vmatmul.f32.gmra.mxu0 %v1399
      %v1463 = vpop.f32.mrf.mxu0
      %v1464 = vadd.f32 0.0, %v1463
      %1465 = vmatmul.f32.gmra.mxu0 %v1402
      %v1466 = vpop.f32.mrf.mxu0
      %v1467 = vadd.f32 0.0, %v1466
      %1468 = vmatmul.f32.gmra.mxu0 %v1405
      %v1469 = vpop.f32.mrf.mxu0
      %v1470 = vadd.f32 0.0, %v1469
      %1471 = vmatmul.f32.gmra.mxu0 %v1408
      %v1472 = vpop.f32.mrf.mxu0
      %v1473 = vadd.f32 0.0, %v1472
      %1474 = vmatmul.f32.gmra.mxu0 %v1411
      %v1475 = vpop.f32.mrf.mxu0
      %v1476 = vadd.f32 0.0, %v1475
      %1477 = vmatmul.f32.gmra.mxu0 %v1414
      %v1478 = vpop.f32.mrf.mxu0
      %v1479 = vadd.f32 0.0, %v1478
      %1480 = vmatmul.f32.gmra.mxu0 %v1417
      %v1481 = vpop.f32.mrf.mxu0
      %v1482 = vadd.f32 0.0, %v1481
      %1483 = vmatmul.f32.gmra.mxu0 %v1420
      %v1484 = vpop.f32.mrf.mxu0
      %v1485 = vadd.f32 0.0, %v1484
      %1486 = vdwg.mxu0
      %v1487 = vadd.f32 %v1338, %v1440
      %v1488 = vadd.f32 %v1339, %v1443
      %v1489 = vadd.f32 %v1340, %v1446
      %v1490 = vadd.f32 %v1341, %v1449
      %v1491 = vadd.f32 %v1342, %v1452
      %v1492 = vadd.f32 %v1343, %v1455
      %v1493 = vadd.f32 %v1344, %v1458
      %v1494 = vadd.f32 %v1345, %v1461
      %v1495 = vadd.f32 %v1346, %v1464
      %v1496 = vadd.f32 %v1347, %v1467
      %v1497 = vadd.f32 %v1348, %v1470
      %v1498 = vadd.f32 %v1349, %v1473
      %v1499 = vadd.f32 %v1350, %v1476
      %v1500 = vadd.f32 %v1351, %v1479
      %v1501 = vadd.f32 %v1352, %v1482
      %v1502 = vadd.f32 %v1353, %v1485
      %v1503 = vld [vmem:[%s2] sm:$0x1]
      %v1505 = vperm.slane %v1503, 0
      %v1507 = vadd.f32 %v1487, %v1505
      %v1508 = vadd.f32 %v1488, %v1505
      %v1509 = vadd.f32 %v1489, %v1505
      %v1510 = vadd.f32 %v1490, %v1505
      %v1511 = vadd.f32 %v1491, %v1505
      %v1512 = vadd.f32 %v1492, %v1505
      %v1513 = vadd.f32 %v1493, %v1505
      %v1514 = vadd.f32 %v1494, %v1505
      %v1515 = vadd.f32 %v1495, %v1505
      %v1516 = vadd.f32 %v1496, %v1505
      %v1517 = vadd.f32 %v1497, %v1505
      %v1518 = vadd.f32 %v1498, %v1505
      %v1519 = vadd.f32 %v1499, %v1505
      %v1520 = vadd.f32 %v1500, %v1505
      %v1521 = vadd.f32 %v1501, %v1505
      %v1522 = vadd.f32 %v1502, %v1505
      %vm1523 = vcmask 31744
      %1524 = vst.msk [vmem:[%s192] sm:$0xff] %vm1523, %v1507
      %1525 = vst.msk [vmem:[%s192 + $0x8] sm:$0xff] %vm1523, %v1508
      %1526 = vst.msk [vmem:[%s192 + $0x10] sm:$0xff] %vm1523, %v1509
      %1527 = vst.msk [vmem:[%s192 + $0x18] sm:$0xff] %vm1523, %v1510
      %1528 = vst.msk [vmem:[%s192 + $0x20] sm:$0xff] %vm1523, %v1511
      %1529 = vst.msk [vmem:[%s192 + $0x28] sm:$0xff] %vm1523, %v1512
      %1530 = vst.msk [vmem:[%s192 + $0x30] sm:$0xff] %vm1523, %v1513
      %1531 = vst.msk [vmem:[%s192 + $0x38] sm:$0xff] %vm1523, %v1514
      %1532 = vst.msk [vmem:[%s192 + $0x40] sm:$0xff] %vm1523, %v1515
      %1533 = vst.msk [vmem:[%s192 + $0x48] sm:$0xff] %vm1523, %v1516
      %1534 = vst.msk [vmem:[%s192 + $0x50] sm:$0xff] %vm1523, %v1517
      %1535 = vst.msk [vmem:[%s192 + $0x58] sm:$0xff] %vm1523, %v1518
      %1536 = vst.msk [vmem:[%s192 + $0x60] sm:$0xff] %vm1523, %v1519
      %1537 = vst.msk [vmem:[%s192 + $0x68] sm:$0xff] %vm1523, %v1520
      %1538 = vst.msk [vmem:[%s192 + $0x70] sm:$0xff] %vm1523, %v1521
      %1539 = vst.msk [vmem:[%s192 + $0x78] sm:$0xff] %vm1523, %v1522
      %s1540 = smul.u32 16, %s19
      %p1541 = scmp.lt.s32.totalorder %s18, 1
      %s1542 = scalar_select %p1541, %s18, 1
      %p1543 = scmp.lt.s32.totalorder %s1540, 47
      %s1544 = scalar_select %p1543, %s1540, 47
      %s1545 = smul.addr %s1542, 48
      %s1546 = sadd.s32 %s1544, %s1545
      %s1547 = smul.addr %s1546, 8
      %s1548 = scalar_lea.vmem %s3, %s1547
      // Predicated region
      $region33: #{expand_forward.5} parent=31 // pred_check
        %p1549 = pneg %p114
      $region34: #{expand_forward.5} parent=31 // pred_check_branch
        %1551 = sbr.rel (%p1549) target = $region36
      $region35: #{expand_forward.5} parent=31 // pred_region
        %s1552 = smul.u32 16, %s19
      $region36: #{expand_forward.5} parent=31 // pred_fallthru
        _
    $region32: #{expand_forward.5} parent=5 // pred_fallthru
      _
    %p1553 = scmp.le.s32.totalorder 2, %s9
    // Predicated region
    $region37: #{expand_forward.5} parent=5 // pred_check
      %p1554 = pneg %p1553
    $region38: #{expand_forward.5} parent=5 // pred_check_branch
      %1556 = sbr.rel (%p1554) target = $region40
    $region39: #{expand_forward.5} parent=5 // pred_region
      %s1557 = ssub.s32 %s9, 2
      // Predicated region
      $region41: #{expand_forward.5} parent=39 // pred_check
        %p1558 = pneg %p120
      $region42: #{expand_forward.5} parent=39 // pred_check_branch
        %1560 = sbr.rel (%p1558) target = $region44
      $region43: #{expand_forward.5} parent=39 // pred_region
        %s1561 = smul.u32 16, %s21
        %p1562 = scmp.lt.s32.totalorder %s20, 1
        %s1563 = scalar_select %p1562, %s20, 1
        %p1564 = scmp.lt.s32.totalorder %s1561, 47
        %s1565 = scalar_select %p1564, %s1561, 47
        %s1566 = smul.addr %s1563, 48
        %s1567 = sadd.s32 %s1565, %s1566
        %s1568 = smul.addr %s1567, 8
        %s1569 = scalar_lea.vmem %s3, %s1568
      $region44: #{expand_forward.5} parent=39 // pred_fallthru
        _
    $region40: #{expand_forward.5} parent=5 // pred_fallthru
      _
  $region6: #{expand_forward.5} parent=0 // loop_footer
    %s13 = sadd.s32 1, %s9
  $region7: #{expand_forward.5} parent=0 // loop_footer_branch
    %8 = sbr.rel target = $region3
  $region8: #{expand_forward.5} parent=0 // loop_exit
    _

// kernel: expand_forward.7
$region0: #{expand_forward.7}
  #allocation0 [shape = 'u32[]', space=smem, size = 0x4, offset = 0x4, fixed_abs, tag = 'smem constant byte address 0x4 - core index']
  #allocation1 [shape = 'u32[72,128]{1,0:T(1,128)}', space=vmem, size = 0x9000, scoped, tag = 'internal scratch']
  %s0 = inlined_call_operand.vmem [shape: f32[2,288,4], index: 0, kind: input, shape index: {}]
  %s1 = inlined_call_operand.vmem [shape: f32[9,4,4], index: 1, kind: input, shape index: {}]
  %s2 = inlined_call_operand.vmem [shape: f32[1,4], index: 2, kind: input, shape index: {}]
  %s3 = inlined_call_operand.vmem [shape: f32[2,256,4], index: 3, kind: output, shape index: {}]
  %s4 = sld [smem:[#allocation0]]
  $region45: #{expand_forward.7} parent=0
    _
  %s6 = ssub.s32 1, %s4
  %s7 = scalar_select 0, %s6, %s4
  loop: start=0, step=1, limit=6
  $region2: #{expand_forward.7} parent=0 // loop_pre_header
    _
  $region3: #{expand_forward.7} parent=0 // loop_header
    %s9 = sphi 0, %s13
    %p10 = scmp.ge.s32.totalorder %s9, 6
    %s16 = sphi 0, %s28
    %s17 = sphi 0, %s24
    %s18 = sphi 0, %s16
    %s19 = sphi 0, %s17
    %s20 = sphi 0, %s18
    %s21 = sphi 0, %s19
    %s31 = sphi 0, %s33
    %s34 = sphi 0, %s31
    %s35 = sphi 0, %s34
    %s51 = sphi 0, %s35
    %s55 = sphi 0, %s55
    %s57 = sphi 0, %s55
    %s58 = sphi 0, %s57
    %s72 = sphi 0, %s58
    %s76 = sphi 0, %s76
    %s78 = sphi 0, %s76
    %s79 = sphi 0, %s78
    %s93 = sphi 0, %s79
    %s101 = sphi 0, %s103
    %s104 = sphi 0, %s101
    %s105 = sphi 0, %s104
    %s121 = sphi 0, %s105
  $region4: #{expand_forward.7} parent=0 // loop_header_branch
    %12 = sbr.rel (%p10) target = $region8
  $region5: #{expand_forward.7} parent=0 // loop_body
    %s14 = ssub.s32 %s9, 1
    %s15 = ssub.s32 %s9, 2
    %s22 = sadd.s32 1, %s17
    %p23 = scmp.ge.s32.totalorder %s22, 2
    %s24 = scalar_select %p23, 0, %s22
    %s25 = sadd.s32 1, %s16
    %s26 = scalar_select %p23, %s25, %s16
    %p27 = scmp.ge.s32.totalorder %s26, 2
    %s28 = scalar_select %p27, 0, %s26
    %s29 = ssub.s32 %s16, %s28
    %p30 = scmp.eq.s32.totalorder %s29, 0
    %s32 = sadd.s32 %s31, 1
    %s33 = scalar_select %p30, %s31, %s32
    %p36 = pneg %p30
    %p37 = scmp.eq.s32.totalorder %s9, 3
    %p38 = por %p36, %p37
    %p39 = scmp.ne.s32.totalorder %s31, %s34
    %p40 = scmp.eq.s32.totalorder %s9, 0
    %p41 = por %p39, %p40
    %p42 = scmp.ne.s32.totalorder %s31, %s34
    %p43 = scmp.eq.s32.totalorder %s14, 3
    %p44 = por %p42, %p43
    %p45 = scmp.ne.s32.totalorder %s34, %s35
    %p46 = scmp.eq.s32.totalorder %s14, 0
    %p47 = por %p45, %p46
    %p48 = scmp.ne.s32.totalorder %s34, %s35
    %p49 = scmp.eq.s32.totalorder %s15, 3
    %p50 = por %p48, %p49
    %p52 = scmp.ne.s32.totalorder %s35, %s51
    %p53 = scmp.eq.s32.totalorder %s15, 0
    %p54 = por %p52, %p53
    %s56 = sadd.s32 %s55, 1
    %p59 = scmp.eq.s32.totalorder %s9, 3
    %p60 = scmp.ne.s32.totalorder %s55, %s57
    %p61 = scmp.eq.s32.totalorder %s9, 0
    %p62 = por %p60, %p61
    %p63 = scmp.ne.s32.totalorder %s55, %s57
    %p64 = scmp.eq.s32.totalorder %s14, 3
    %p65 = por %p63, %p64
    %p66 = scmp.ne.s32.totalorder %s57, %s58
    %p67 = scmp.eq.s32.totalorder %s14, 0
    %p68 = por %p66, %p67
    %p69 = scmp.ne.s32.totalorder %s57, %s58
    %p70 = scmp.eq.s32.totalorder %s15, 3
    %p71 = por %p69, %p70
    %p73 = scmp.ne.s32.totalorder %s58, %s72
    %p74 = scmp.eq.s32.totalorder %s15, 0
    %p75 = por %p73, %p74
    %s77 = sadd.s32 %s76, 1
    %p80 = scmp.eq.s32.totalorder %s9, 3
    %p81 = scmp.ne.s32.totalorder %s76, %s78
    %p82 = scmp.eq.s32.totalorder %s9, 0
    %p83 = por %p81, %p82
    %p84 = scmp.ne.s32.totalorder %s76, %s78
    %p85 = scmp.eq.s32.totalorder %s14, 3
    %p86 = por %p84, %p85
    %p87 = scmp.ne.s32.totalorder %s78, %s79
    %p88 = scmp.eq.s32.totalorder %s14, 0
    %p89 = por %p87, %p88
    %p90 = scmp.ne.s32.totalorder %s78, %s79
    %p91 = scmp.eq.s32.totalorder %s15, 3
    %p92 = por %p90, %p91
    %p94 = scmp.ne.s32.totalorder %s79, %s93
    %p95 = scmp.eq.s32.totalorder %s15, 0
    %p96 = por %p94, %p95
    %s97 = ssub.s32 %s16, %s28
    %s98 = ssub.s32 %s17, %s24
    %s99 = sor.u32 %s97, %s98
    %p100 = scmp.eq.s32.totalorder %s99, 0
    %s102 = sadd.s32 %s101, 1
    %s103 = scalar_select %p100, %s101, %s102
    %p106 = pneg %p100
    %p107 = scmp.eq.s32.totalorder %s9, 3
    %p108 = por %p106, %p107
    %p109 = scmp.ne.s32.totalorder %s101, %s104
    %p110 = scmp.eq.s32.totalorder %s9, 0
    %p111 = por %p109, %p110
    %p112 = scmp.ne.s32.totalorder %s101, %s104
    %p113 = scmp.eq.s32.totalorder %s14, 3
    %p114 = por %p112, %p113
    %p115 = scmp.ne.s32.totalorder %s104, %s105
    %p116 = scmp.eq.s32.totalorder %s14, 0
    %p117 = por %p115, %p116
    %p118 = scmp.ne.s32.totalorder %s104, %s105
    %p119 = scmp.eq.s32.totalorder %s15, 3
    %p120 = por %p118, %p119
    %p122 = scmp.ne.s32.totalorder %s105, %s121
    %p123 = scmp.eq.s32.totalorder %s15, 0
    %p124 = por %p122, %p123
    %p125 = scmp.le.s32.totalorder 1, %s9
    %p126 = scmp.lt.s32.totalorder %s9, 5
    %p127 = pnand %p125, %p126
    %p128 = pneg %p127
    // Predicated region
    $region9: #{expand_forward.7} parent=5 // pred_check
      _
    $region10: #{expand_forward.7} parent=5 // pred_check_branch
      %130 = sbr.rel (%p127) target = $region12
    $region11: #{expand_forward.7} parent=5 // pred_region
      %s131 = ssub.s32 %s9, 1
      // Predicated region
      $region13: #{expand_forward.7} parent=11 // pred_check
        %p132 = pneg %p68
      $region14: #{expand_forward.7} parent=11 // pred_check_branch
        %134 = sbr.rel (%p132) target = $region16
      $region15: #{expand_forward.7} parent=11 // pred_region
        _
      $region16: #{expand_forward.7} parent=11 // pred_fallthru
        _
      // Predicated region
      $region17: #{expand_forward.7} parent=11 // pred_check
        %p135 = pneg %p89
      $region18: #{expand_forward.7} parent=11 // pred_check_branch
        %137 = sbr.rel (%p135) target = $region20
      $region19: #{expand_forward.7} parent=11 // pred_region
        _
      $region20: #{expand_forward.7} parent=11 // pred_fallthru
        _
    $region12: #{expand_forward.7} parent=5 // pred_fallthru
      _
    %p138 = scmp.lt.s32.totalorder %s9, 4
    // Predicated region
    $region21: #{expand_forward.7} parent=5 // pred_check
      %p139 = pneg %p138
    $region22: #{expand_forward.7} parent=5 // pred_check_branch
      %141 = sbr.rel (%p139) target = $region24
    $region23: #{expand_forward.7} parent=5 // pred_region
      // Predicated region
      $region25: #{expand_forward.7} parent=23 // pred_check
        %p142 = pneg %p41
      $region26: #{expand_forward.7} parent=23 // pred_check_branch
        %144 = sbr.rel (%p142) target = $region28
      $region27: #{expand_forward.7} parent=23 // pred_region
        %p145 = scmp.lt.s32.totalorder %s16, 1
        %s146 = scalar_select %p145, %s16, 1
        %s147 = smul.addr %s146, 36
        %s148 = smul.addr %s147, 8
        %s149 = scalar_lea.vmem %s0, %s148
      $region28: #{expand_forward.7} parent=23 // pred_fallthru
        _
    $region24: #{expand_forward.7} parent=5 // pred_fallthru
      _
    %p150 = scmp.le.s32.totalorder 1, %s9
    %p151 = scmp.lt.s32.totalorder %s9, 5
    %p152 = pnand %p150, %p151
    %p153 = pneg %p152
    // Predicated region
    $region29: #{expand_forward.7} parent=5 // pred_check
      _
    $region30: #{expand_forward.7} parent=5 // pred_check_branch
      %155 = sbr.rel (%p152) target = $region32
    $region31: #{expand_forward.7} parent=5 // pred_region
      %s156 = ssub.s32 %s9, 1
      %p157 = scmp.lt.s32.totalorder %s18, 1
      %s158 = scalar_select %p157, %s18, 1
      %s159 = smul.addr %s158, 36
      %s160 = smul.addr %s159, 8
      %s161 = scalar_lea.vmem %s0, %s160
      %p162 = pneg %p47
      %p163 = pneg %p44
      %p164 = pneg %p68
      %p165 = pneg %p65
      %p166 = pneg %p89
      %p167 = pneg %p86
      %p168 = pneg %p117
      %p169 = pneg %p114
      %s170 = smul.u32 16, %s19
      %p171 = scmp.lt.s32.totalorder %s18, 1
      %s172 = scalar_select %p171, %s18, 1
      %p173 = scmp.lt.s32.totalorder %s170, 31
      %s174 = scalar_select %p173, %s170, 31
      %s175 = smul.addr %s172, 32
      %s176 = sadd.s32 %s174, %s175
      %s177 = smul.addr %s176, 8
      %s178 = scalar_lea.vmem %s3, %s177
      %p179 = scmp.lt.s32.totalorder %s18, 1
      %s180 = scalar_select %p179, %s18, 1
      %s181 = smul.addr %s180, 36
      %s182 = smul.addr %s181, 8
      %s183 = scalar_lea.vmem %s0, %s182
      %s184 = smul.u32 16, %s19
      %p185 = scmp.lt.s32.totalorder %s18, 1
      %s186 = scalar_select %p185, %s18, 1
      %p187 = scmp.lt.s32.totalorder %s184, 31
      %s188 = scalar_select %p187, %s184, 31
      %s189 = smul.addr %s186, 32
      %s190 = sadd.s32 %s188, %s189
      %s191 = smul.addr %s190, 8
      %s192 = scalar_lea.vmem %s3, %s191
      %s193 = smul.u32 16, %s19
      %s194 = smul.u32 %s19, 128
      %s195 = scalar_lea.vmem %s183, %s194
      %v196 = vld [vmem:[%s195] sm:$0xff]
      %v197 = vld [vmem:[%s195 + $0x8] sm:$0xff]
      %v198 = vld [vmem:[%s195 + $0x10] sm:$0xff]
      %v199 = vld [vmem:[%s195 + $0x18] sm:$0xff]
      %v200 = vld [vmem:[%s195 + $0x20] sm:$0xff]
      %v201 = vld [vmem:[%s195 + $0x28] sm:$0xff]
      %v202 = vld [vmem:[%s195 + $0x30] sm:$0xff]
      %v203 = vld [vmem:[%s195 + $0x38] sm:$0xff]
      %v204 = vld [vmem:[%s195 + $0x40] sm:$0xff]
      %v205 = vld [vmem:[%s195 + $0x48] sm:$0xff]
      %v206 = vld [vmem:[%s195 + $0x50] sm:$0xff]
      %v207 = vld [vmem:[%s195 + $0x58] sm:$0xff]
      %v208 = vld [vmem:[%s195 + $0x60] sm:$0xff]
      %v209 = vld [vmem:[%s195 + $0x68] sm:$0xff]
      %v210 = vld [vmem:[%s195 + $0x70] sm:$0xff]
      %v211 = vld [vmem:[%s195 + $0x78] sm:$0xff]
      %v212 = vld [vmem:[%s1] sm:$0xf]
      %s213 = sadd.s32 %s194, 1
      %s214 = scalar_lea.vmem %s183, %s213
      %v215 = vld [vmem:[%s214] sm:$0xff]
      %v216 = vld [vmem:[%s214 + $0x8] sm:$0xff]
      %v217 = vld [vmem:[%s214 + $0x10] sm:$0xff]
      %v218 = vld [vmem:[%s214 + $0x18] sm:$0xff]
      %v219 = vld [vmem:[%s214 + $0x20] sm:$0xff]
      %v220 = vld [vmem:[%s214 + $0x28] sm:$0xff]
      %v221 = vld [vmem:[%s214 + $0x30] sm:$0xff]
      %v222 = vld [vmem:[%s214 + $0x38] sm:$0xff]
      %v223 = vld [vmem:[%s214 + $0x40] sm:$0xff]
      %v224 = vld [vmem:[%s214 + $0x48] sm:$0xff]
      %v225 = vld [vmem:[%s214 + $0x50] sm:$0xff]
      %v226 = vld [vmem:[%s214 + $0x58] sm:$0xff]
      %v227 = vld [vmem:[%s214 + $0x60] sm:$0xff]
      %v228 = vld [vmem:[%s214 + $0x68] sm:$0xff]
      %v229 = vld [vmem:[%s214 + $0x70] sm:$0xff]
      %v230 = vld [vmem:[%s214 + $0x78] sm:$0xff]
      %s231 = scalar_lea.vmem %s1, 4
      %v232 = vld [vmem:[%s231] sm:$0xf]
      %vm233 = vcmask 31744
      %v235 = vsel %vm233, %v215, 0
      %v238 = vsel %vm233, %v216, 0
      %v241 = vsel %vm233, %v217, 0
      %v244 = vsel %vm233, %v218, 0
      %v247 = vsel %vm233, %v219, 0
      %v250 = vsel %vm233, %v220, 0
      %v253 = vsel %vm233, %v221, 0
      %v256 = vsel %vm233, %v222, 0
      %v259 = vsel %vm233, %v223, 0
      %v262 = vsel %vm233, %v224, 0
      %v265 = vsel %vm233, %v225, 0
      %v268 = vsel %vm233, %v226, 0
      %v271 = vsel %vm233, %v227, 0
      %v274 = vsel %vm233, %v228, 0
      %v277 = vsel %vm233, %v229, 0
      %v280 = vsel %vm233, %v230, 0
      %vm282 = vcmask 1043456
      %v284 = vsel %vm282, %v232, 0
      %286 = vmatpush.msra.mxu0 0.0
      %287 = vmatpush.msra.mxu0 0.0
      %288 = vmatpush.msra.mxu0 0.0
      %289 = vmatpush.msra.mxu0 0.0
      %290 = vmatpush.msra.mxu0 0.0
      %291 = vmatpush.msra.mxu0 0.0
      %292 = vmatpush.msra.mxu0 0.0
      %293 = vmatpush.msra.mxu0 0.0
      %294 = vmatpush.msra.mxu0 0.0
      %295 = vmatpush.msra.mxu0 0.0
      %296 = vmatpush.msra.mxu0 0.0
      %297 = vmatpush.msra.mxu0 0.0
      %298 = vmatpush.msra.mxu0 0.0
      %299 = vmatpush.msra.mxu0 0.0
      %300 = vmatpush.msra.mxu0 0.0
      %301 = vmatpush.msra.mxu0 %v284
      %302 = vmatmul.f32.gmra.mxu0 %v235
      %v303 = vpop.f32.mrf.mxu0
      %v304 = vadd.f32 0.0, %v303
      %305 = vmatmul.f32.gmra.mxu0 %v238
      %v306 = vpop.f32.mrf.mxu0
      %v307 = vadd.f32 0.0, %v306
      %308 = vmatmul.f32.gmra.mxu0 %v241
      %v309 = vpop.f32.mrf.mxu0
      %v310 = vadd.f32 0.0, %v309
      %311 = vmatmul.f32.gmra.mxu0 %v244
      %v312 = vpop.f32.mrf.mxu0
      %v313 = vadd.f32 0.0, %v312
      %314 = vmatmul.f32.gmra.mxu0 %v247
      %v315 = vpop.f32.mrf.mxu0
      %v316 = vadd.f32 0.0, %v315
      %317 = vmatmul.f32.gmra.mxu0 %v250
      %v318 = vpop.f32.mrf.mxu0
      %v319 = vadd.f32 0.0, %v318
      %320 = vmatmul.f32.gmra.mxu0 %v253
      %v321 = vpop.f32.mrf.mxu0
      %v322 = vadd.f32 0.0, %v321
      %323 = vmatmul.f32.gmra.mxu0 %v256
      %v324 = vpop.f32.mrf.mxu0
      %v325 = vadd.f32 0.0, %v324
      %326 = vmatmul.f32.gmra.mxu0 %v259
      %v327 = vpop.f32.mrf.mxu0
      %v328 = vadd.f32 0.0, %v327
      %329 = vmatmul.f32.gmra.mxu0 %v262
      %v330 = vpop.f32.mrf.mxu0
      %v331 = vadd.f32 0.0, %v330
      %332 = vmatmul.f32.gmra.mxu0 %v265
      %v333 = vpop.f32.mrf.mxu0
      %v334 = vadd.f32 0.0, %v333
      %335 = vmatmul.f32.gmra.mxu0 %v268
      %v336 = vpop.f32.mrf.mxu0
      %v337 = vadd.f32 0.0, %v336
      %338 = vmatmul.f32.gmra.mxu0 %v271
      %v339 = vpop.f32.mrf.mxu0
      %v340 = vadd.f32 0.0, %v339
      %341 = vmatmul.f32.gmra.mxu0 %v274
      %v342 = vpop.f32.mrf.mxu0
      %v343 = vadd.f32 0.0, %v342
      %344 = vmatmul.f32.gmra.mxu0 %v277
      %v345 = vpop.f32.mrf.mxu0
      %v346 = vadd.f32 0.0, %v345
      %347 = vmatmul.f32.gmra.mxu0 %v280
      %v348 = vpop.f32.mrf.mxu0
      %v349 = vadd.f32 0.0, %v348
      %350 = vdwg.mxu0
      %v352 = vsel %vm233, %v196, 0
      %v355 = vsel %vm233, %v197, 0
      %v358 = vsel %vm233, %v198, 0
      %v361 = vsel %vm233, %v199, 0
      %v364 = vsel %vm233, %v200, 0
      %v367 = vsel %vm233, %v201, 0
      %v370 = vsel %vm233, %v202, 0
      %v373 = vsel %vm233, %v203, 0
      %v376 = vsel %vm233, %v204, 0
      %v379 = vsel %vm233, %v205, 0
      %v382 = vsel %vm233, %v206, 0
      %v385 = vsel %vm233, %v207, 0
      %v388 = vsel %vm233, %v208, 0
      %v391 = vsel %vm233, %v209, 0
      %v394 = vsel %vm233, %v210, 0
      %v397 = vsel %vm233, %v211, 0
      %v400 = vsel %vm282, %v212, 0
      %402 = vmatpush.msra.mxu0 0.0
      %403 = vmatpush.msra.mxu0 0.0
      %404 = vmatpush.msra.mxu0 0.0
      %405 = vmatpush.msra.mxu0 0.0
      %406 = vmatpush.msra.mxu0 0.0
      %407 = vmatpush.msra.mxu0 0.0
      %408 = vmatpush.msra.mxu0 0.0
      %409 = vmatpush.msra.mxu0 0.0
      %410 = vmatpush.msra.mxu0 0.0
      %411 = vmatpush.msra.mxu0 0.0
      %412 = vmatpush.msra.mxu0 0.0
      %413 = vmatpush.msra.mxu0 0.0
      %414 = vmatpush.msra.mxu0 0.0
      %415 = vmatpush.msra.mxu0 0.0
      %416 = vmatpush.msra.mxu0 0.0
      %417 = vmatpush.msra.mxu0 %v400
      %418 = vmatmul.f32.gmra.mxu0 %v352
      %v419 = vpop.f32.mrf.mxu0
      %v420 = vadd.f32 %v304, %v419
      %421 = vmatmul.f32.gmra.mxu0 %v355
      %v422 = vpop.f32.mrf.mxu0
      %v423 = vadd.f32 %v307, %v422
      %424 = vmatmul.f32.gmra.mxu0 %v358
      %v425 = vpop.f32.mrf.mxu0
      %v426 = vadd.f32 %v310, %v425
      %427 = vmatmul.f32.gmra.mxu0 %v361
      %v428 = vpop.f32.mrf.mxu0
      %v429 = vadd.f32 %v313, %v428
      %430 = vmatmul.f32.gmra.mxu0 %v364
      %v431 = vpop.f32.mrf.mxu0
      %v432 = vadd.f32 %v316, %v431
      %433 = vmatmul.f32.gmra.mxu0 %v367
      %v434 = vpop.f32.mrf.mxu0
      %v435 = vadd.f32 %v319, %v434
      %436 = vmatmul.f32.gmra.mxu0 %v370
      %v437 = vpop.f32.mrf.mxu0
      %v438 = vadd.f32 %v322, %v437
      %439 = vmatmul.f32.gmra.mxu0 %v373
      %v440 = vpop.f32.mrf.mxu0
      %v441 = vadd.f32 %v325, %v440
      %442 = vmatmul.f32.gmra.mxu0 %v376
      %v443 = vpop.f32.mrf.mxu0
      %v444 = vadd.f32 %v328, %v443
      %445 = vmatmul.f32.gmra.mxu0 %v379
      %v446 = vpop.f32.mrf.mxu0
      %v447 = vadd.f32 %v331, %v446
      %448 = vmatmul.f32.gmra.mxu0 %v382
      %v449 = vpop.f32.mrf.mxu0
      %v450 = vadd.f32 %v334, %v449
      %451 = vmatmul.f32.gmra.mxu0 %v385
      %v452 = vpop.f32.mrf.mxu0
      %v453 = vadd.f32 %v337, %v452
      %454 = vmatmul.f32.gmra.mxu0 %v388
      %v455 = vpop.f32.mrf.mxu0
      %v456 = vadd.f32 %v340, %v455
      %457 = vmatmul.f32.gmra.mxu0 %v391
      %v458 = vpop.f32.mrf.mxu0
      %v459 = vadd.f32 %v343, %v458
      %460 = vmatmul.f32.gmra.mxu0 %v394
      %v461 = vpop.f32.mrf.mxu0
      %v462 = vadd.f32 %v346, %v461
      %463 = vmatmul.f32.gmra.mxu0 %v397
      %v464 = vpop.f32.mrf.mxu0
      %v465 = vadd.f32 %v349, %v464
      %466 = vdwg.mxu0
      %s467 = sadd.s32 %s194, 2
      %s468 = scalar_lea.vmem %s183, %s467
      %v469 = vld [vmem:[%s468] sm:$0xff]
      %v470 = vld [vmem:[%s468 + $0x8] sm:$0xff]
      %v471 = vld [vmem:[%s468 + $0x10] sm:$0xff]
      %v472 = vld [vmem:[%s468 + $0x18] sm:$0xff]
      %v473 = vld [vmem:[%s468 + $0x20] sm:$0xff]
      %v474 = vld [vmem:[%s468 + $0x28] sm:$0xff]
      %v475 = vld [vmem:[%s468 + $0x30] sm:$0xff]
      %v476 = vld [vmem:[%s468 + $0x38] sm:$0xff]
      %v477 = vld [vmem:[%s468 + $0x40] sm:$0xff]
      %v478 = vld [vmem:[%s468 + $0x48] sm:$0xff]
      %v479 = vld [vmem:[%s468 + $0x50] sm:$0xff]
      %v480 = vld [vmem:[%s468 + $0x58] sm:$0xff]
      %v481 = vld [vmem:[%s468 + $0x60] sm:$0xff]
      %v482 = vld [vmem:[%s468 + $0x68] sm:$0xff]
      %v483 = vld [vmem:[%s468 + $0x70] sm:$0xff]
      %v484 = vld [vmem:[%s468 + $0x78] sm:$0xff]
      %s485 = scalar_lea.vmem %s1, 8
      %v486 = vld [vmem:[%s485] sm:$0xf]
      %v488 = vsel %vm233, %v469, 0
      %v491 = vsel %vm233, %v470, 0
      %v494 = vsel %vm233, %v471, 0
      %v497 = vsel %vm233, %v472, 0
      %v500 = vsel %vm233, %v473, 0
      %v503 = vsel %vm233, %v474, 0
      %v506 = vsel %vm233, %v475, 0
      %v509 = vsel %vm233, %v476, 0
      %v512 = vsel %vm233, %v477, 0
      %v515 = vsel %vm233, %v478, 0
      %v518 = vsel %vm233, %v479, 0
      %v521 = vsel %vm233, %v480, 0
      %v524 = vsel %vm233, %v481, 0
      %v527 = vsel %vm233, %v482, 0
      %v530 = vsel %vm233, %v483, 0
      %v533 = vsel %vm233, %v484, 0
      %v536 = vsel %vm282, %v486, 0
      %538 = vmatpush.msra.mxu0 0.0
      %539 = vmatpush.msra.mxu0 0.0
      %540 = vmatpush.msra.mxu0 0.0
      %541 = vmatpush.msra.mxu0 0.0
      %542 = vmatpush.msra.mxu0 0.0
      %543 = vmatpush.msra.mxu0 0.0
      %544 = vmatpush.msra.mxu0 0.0
      %545 = vmatpush.msra.mxu0 0.0
      %546 = vmatpush.msra.mxu0 0.0
      %547 = vmatpush.msra.mxu0 0.0
      %548 = vmatpush.msra.mxu0 0.0
      %549 = vmatpush.msra.mxu0 0.0
      %550 = vmatpush.msra.mxu0 0.0
      %551 = vmatpush.msra.mxu0 0.0
      %552 = vmatpush.msra.mxu0 0.0
      %553 = vmatpush.msra.mxu0 %v536
      %554 = vmatmul.f32.gmra.mxu0 %v488
      %v555 = vpop.f32.mrf.mxu0
      %v556 = vadd.f32 0.0, %v555
      %557 = vmatmul.f32.gmra.mxu0 %v491
      %v558 = vpop.f32.mrf.mxu0
      %v559 = vadd.f32 0.0, %v558
      %560 = vmatmul.f32.gmra.mxu0 %v494
      %v561 = vpop.f32.mrf.mxu0
      %v562 = vadd.f32 0.0, %v561
      %563 = vmatmul.f32.gmra.mxu0 %v497
      %v564 = vpop.f32.mrf.mxu0
      %v565 = vadd.f32 0.0, %v564
      %566 = vmatmul.f32.gmra.mxu0 %v500
      %v567 = vpop.f32.mrf.mxu0
      %v568 = vadd.f32 0.0, %v567
      %569 = vmatmul.f32.gmra.mxu0 %v503
      %v570 = vpop.f32.mrf.mxu0
      %v571 = vadd.f32 0.0, %v570
      %572 = vmatmul.f32.gmra.mxu0 %v506
      %v573 = vpop.f32.mrf.mxu0
      %v574 = vadd.f32 0.0, %v573
      %575 = vmatmul.f32.gmra.mxu0 %v509
      %v576 = vpop.f32.mrf.mxu0
      %v577 = vadd.f32 0.0, %v576
      %578 = vmatmul.f32.gmra.mxu0 %v512
      %v579 = vpop.f32.mrf.mxu0
      %v580 = vadd.f32 0.0, %v579
      %581 = vmatmul.f32.gmra.mxu0 %v515
      %v582 = vpop.f32.mrf.mxu0
      %v583 = vadd.f32 0.0, %v582
      %584 = vmatmul.f32.gmra.mxu0 %v518
      %v585 = vpop.f32.mrf.mxu0
      %v586 = vadd.f32 0.0, %v585
      %587 = vmatmul.f32.gmra.mxu0 %v521
      %v588 = vpop.f32.mrf.mxu0
      %v589 = vadd.f32 0.0, %v588
      %590 = vmatmul.f32.gmra.mxu0 %v524
      %v591 = vpop.f32.mrf.mxu0
      %v592 = vadd.f32 0.0, %v591
      %593 = vmatmul.f32.gmra.mxu0 %v527
      %v594 = vpop.f32.mrf.mxu0
      %v595 = vadd.f32 0.0, %v594
      %596 = vmatmul.f32.gmra.mxu0 %v530
      %v597 = vpop.f32.mrf.mxu0
      %v598 = vadd.f32 0.0, %v597
      %599 = vmatmul.f32.gmra.mxu0 %v533
      %v600 = vpop.f32.mrf.mxu0
      %v601 = vadd.f32 0.0, %v600
      %602 = vdwg.mxu0
      %v603 = vadd.f32 %v420, %v556
      %v604 = vadd.f32 %v423, %v559
      %v605 = vadd.f32 %v426, %v562
      %v606 = vadd.f32 %v429, %v565
      %v607 = vadd.f32 %v432, %v568
      %v608 = vadd.f32 %v435, %v571
      %v609 = vadd.f32 %v438, %v574
      %v610 = vadd.f32 %v441, %v577
      %v611 = vadd.f32 %v444, %v580
      %v612 = vadd.f32 %v447, %v583
      %v613 = vadd.f32 %v450, %v586
      %v614 = vadd.f32 %v453, %v589
      %v615 = vadd.f32 %v456, %v592
      %v616 = vadd.f32 %v459, %v595
      %v617 = vadd.f32 %v462, %v598
      %v618 = vadd.f32 %v465, %v601
      %s619 = sadd.s32 %s194, 14
      %s620 = scalar_lea.vmem %s183, %s619
      %v621 = vld [vmem:[%s620] sm:$0xff]
      %v622 = vld [vmem:[%s620 + $0x8] sm:$0xff]
      %v623 = vld [vmem:[%s620 + $0x10] sm:$0xff]
      %v624 = vld [vmem:[%s620 + $0x18] sm:$0xff]
      %v625 = vld [vmem:[%s620 + $0x20] sm:$0xff]
      %v626 = vld [vmem:[%s620 + $0x28] sm:$0xff]
      %v627 = vld [vmem:[%s620 + $0x30] sm:$0xff]
      %v628 = vld [vmem:[%s620 + $0x38] sm:$0xff]
      %v629 = vld [vmem:[%s620 + $0x40] sm:$0xff]
      %v630 = vld [vmem:[%s620 + $0x48] sm:$0xff]
      %v631 = vld [vmem:[%s620 + $0x50] sm:$0xff]
      %v632 = vld [vmem:[%s620 + $0x58] sm:$0xff]
      %v633 = vld [vmem:[%s620 + $0x60] sm:$0xff]
      %v634 = vld [vmem:[%s620 + $0x68] sm:$0xff]
      %v635 = vld [vmem:[%s620 + $0x70] sm:$0xff]
      %v636 = vld [vmem:[%s620 + $0x78] sm:$0xff]
      %s637 = scalar_lea.vmem %s1, 12
      %v638 = vld [vmem:[%s637] sm:$0xf]
      %v640 = vsel %vm233, %v621, 0
      %v643 = vsel %vm233, %v622, 0
      %v646 = vsel %vm233, %v623, 0
      %v649 = vsel %vm233, %v624, 0
      %v652 = vsel %vm233, %v625, 0
      %v655 = vsel %vm233, %v626, 0
      %v658 = vsel %vm233, %v627, 0
      %v661 = vsel %vm233, %v628, 0
      %v664 = vsel %vm233, %v629, 0
      %v667 = vsel %vm233, %v630, 0
      %v670 = vsel %vm233, %v631, 0
      %v673 = vsel %vm233, %v632, 0
      %v676 = vsel %vm233, %v633, 0
      %v679 = vsel %vm233, %v634, 0
      %v682 = vsel %vm233, %v635, 0
      %v685 = vsel %vm233, %v636, 0
      %v688 = vsel %vm282, %v638, 0
      %690 = vmatpush.msra.mxu0 0.0
      %691 = vmatpush.msra.mxu0 0.0
      %692 = vmatpush.msra.mxu0 0.0
      %693 = vmatpush.msra.mxu0 0.0
      %694 = vmatpush.msra.mxu0 0.0
      %695 = vmatpush.msra.mxu0 0.0
      %696 = vmatpush.msra.mxu0 0.0
      %697 = vmatpush.msra.mxu0 0.0
      %698 = vmatpush.msra.mxu0 0.0
      %699 = vmatpush.msra.mxu0 0.0
      %700 = vmatpush.msra.mxu0 0.0
      %701 = vmatpush.msra.mxu0 0.0
      %702 = vmatpush.msra.mxu0 0.0
      %703 = vmatpush.msra.mxu0 0.0
      %704 = vmatpush.msra.mxu0 0.0
      %705 = vmatpush.msra.mxu0 %v688
      %706 = vmatmul.f32.gmra.mxu0 %v640
      %v707 = vpop.f32.mrf.mxu0
      %v708 = vadd.f32 0.0, %v707
      %709 = vmatmul.f32.gmra.mxu0 %v643
      %v710 = vpop.f32.mrf.mxu0
      %v711 = vadd.f32 0.0, %v710
      %712 = vmatmul.f32.gmra.mxu0 %v646
      %v713 = vpop.f32.mrf.mxu0
      %v714 = vadd.f32 0.0, %v713
      %715 = vmatmul.f32.gmra.mxu0 %v649
      %v716 = vpop.f32.mrf.mxu0
      %v717 = vadd.f32 0.0, %v716
      %718 = vmatmul.f32.gmra.mxu0 %v652
      %v719 = vpop.f32.mrf.mxu0
      %v720 = vadd.f32 0.0, %v719
      %721 = vmatmul.f32.gmra.mxu0 %v655
      %v722 = vpop.f32.mrf.mxu0
      %v723 = vadd.f32 0.0, %v722
      %724 = vmatmul.f32.gmra.mxu0 %v658
      %v725 = vpop.f32.mrf.mxu0
      %v726 = vadd.f32 0.0, %v725
      %727 = vmatmul.f32.gmra.mxu0 %v661
      %v728 = vpop.f32.mrf.mxu0
      %v729 = vadd.f32 0.0, %v728
      %730 = vmatmul.f32.gmra.mxu0 %v664
      %v731 = vpop.f32.mrf.mxu0
      %v732 = vadd.f32 0.0, %v731
      %733 = vmatmul.f32.gmra.mxu0 %v667
      %v734 = vpop.f32.mrf.mxu0
      %v735 = vadd.f32 0.0, %v734
      %736 = vmatmul.f32.gmra.mxu0 %v670
      %v737 = vpop.f32.mrf.mxu0
      %v738 = vadd.f32 0.0, %v737
      %739 = vmatmul.f32.gmra.mxu0 %v673
      %v740 = vpop.f32.mrf.mxu0
      %v741 = vadd.f32 0.0, %v740
      %742 = vmatmul.f32.gmra.mxu0 %v676
      %v743 = vpop.f32.mrf.mxu0
      %v744 = vadd.f32 0.0, %v743
      %745 = vmatmul.f32.gmra.mxu0 %v679
      %v746 = vpop.f32.mrf.mxu0
      %v747 = vadd.f32 0.0, %v746
      %748 = vmatmul.f32.gmra.mxu0 %v682
      %v749 = vpop.f32.mrf.mxu0
      %v750 = vadd.f32 0.0, %v749
      %751 = vmatmul.f32.gmra.mxu0 %v685
      %v752 = vpop.f32.mrf.mxu0
      %v753 = vadd.f32 0.0, %v752
      %754 = vdwg.mxu0
      %v755 = vadd.f32 %v603, %v708
      %v756 = vadd.f32 %v604, %v711
      %v757 = vadd.f32 %v605, %v714
      %v758 = vadd.f32 %v606, %v717
      %v759 = vadd.f32 %v607, %v720
      %v760 = vadd.f32 %v608, %v723
      %v761 = vadd.f32 %v609, %v726
      %v762 = vadd.f32 %v610, %v729
      %v763 = vadd.f32 %v611, %v732
      %v764 = vadd.f32 %v612, %v735
      %v765 = vadd.f32 %v613, %v738
      %v766 = vadd.f32 %v614, %v741
      %v767 = vadd.f32 %v615, %v744
      %v768 = vadd.f32 %v616, %v747
      %v769 = vadd.f32 %v617, %v750
      %v770 = vadd.f32 %v618, %v753
      %s771 = sadd.s32 %s194, 15
      %s772 = scalar_lea.vmem %s183, %s771
      %v773 = vld [vmem:[%s772] sm:$0xff]
      %v774 = vld [vmem:[%s772 + $0x8] sm:$0xff]
      %v775 = vld [vmem:[%s772 + $0x10] sm:$0xff]
      %v776 = vld [vmem:[%s772 + $0x18] sm:$0xff]
      %v777 = vld [vmem:[%s772 + $0x20] sm:$0xff]
      %v778 = vld [vmem:[%s772 + $0x28] sm:$0xff]
      %v779 = vld [vmem:[%s772 + $0x30] sm:$0xff]
      %v780 = vld [vmem:[%s772 + $0x38] sm:$0xff]
      %v781 = vld [vmem:[%s772 + $0x40] sm:$0xff]
      %v782 = vld [vmem:[%s772 + $0x48] sm:$0xff]
      %v783 = vld [vmem:[%s772 + $0x50] sm:$0xff]
      %v784 = vld [vmem:[%s772 + $0x58] sm:$0xff]
      %v785 = vld [vmem:[%s772 + $0x60] sm:$0xff]
      %v786 = vld [vmem:[%s772 + $0x68] sm:$0xff]
      %v787 = vld [vmem:[%s772 + $0x70] sm:$0xff]
      %v788 = vld [vmem:[%s772 + $0x78] sm:$0xff]
      %s789 = scalar_lea.vmem %s1, 16
      %v790 = vld [vmem:[%s789] sm:$0xf]
      %v792 = vsel %vm233, %v773, 0
      %v795 = vsel %vm233, %v774, 0
      %v798 = vsel %vm233, %v775, 0
      %v801 = vsel %vm233, %v776, 0
      %v804 = vsel %vm233, %v777, 0
      %v807 = vsel %vm233, %v778, 0
      %v810 = vsel %vm233, %v779, 0
      %v813 = vsel %vm233, %v780, 0
      %v816 = vsel %vm233, %v781, 0
      %v819 = vsel %vm233, %v782, 0
      %v822 = vsel %vm233, %v783, 0
      %v825 = vsel %vm233, %v784, 0
      %v828 = vsel %vm233, %v785, 0
      %v831 = vsel %vm233, %v786, 0
      %v834 = vsel %vm233, %v787, 0
      %v837 = vsel %vm233, %v788, 0
      %v840 = vsel %vm282, %v790, 0
      %842 = vmatpush.msra.mxu0 0.0
      %843 = vmatpush.msra.mxu0 0.0
      %844 = vmatpush.msra.mxu0 0.0
      %845 = vmatpush.msra.mxu0 0.0
      %846 = vmatpush.msra.mxu0 0.0
      %847 = vmatpush.msra.mxu0 0.0
      %848 = vmatpush.msra.mxu0 0.0
      %849 = vmatpush.msra.mxu0 0.0
      %850 = vmatpush.msra.mxu0 0.0
      %851 = vmatpush.msra.mxu0 0.0
      %852 = vmatpush.msra.mxu0 0.0
      %853 = vmatpush.msra.mxu0 0.0
      %854 = vmatpush.msra.mxu0 0.0
      %855 = vmatpush.msra.mxu0 0.0
      %856 = vmatpush.msra.mxu0 0.0
      %857 = vmatpush.msra.mxu0 %v840
      %858 = vmatmul.f32.gmra.mxu0 %v792
      %v859 = vpop.f32.mrf.mxu0
      %v860 = vadd.f32 0.0, %v859
      %861 = vmatmul.f32.gmra.mxu0 %v795
      %v862 = vpop.f32.mrf.mxu0
      %v863 = vadd.f32 0.0, %v862
      %864 = vmatmul.f32.gmra.mxu0 %v798
      %v865 = vpop.f32.mrf.mxu0
      %v866 = vadd.f32 0.0, %v865
      %867 = vmatmul.f32.gmra.mxu0 %v801
      %v868 = vpop.f32.mrf.mxu0
      %v869 = vadd.f32 0.0, %v868
      %870 = vmatmul.f32.gmra.mxu0 %v804
      %v871 = vpop.f32.mrf.mxu0
      %v872 = vadd.f32 0.0, %v871
      %873 = vmatmul.f32.gmra.mxu0 %v807
      %v874 = vpop.f32.mrf.mxu0
      %v875 = vadd.f32 0.0, %v874
      %876 = vmatmul.f32.gmra.mxu0 %v810
      %v877 = vpop.f32.mrf.mxu0
      %v878 = vadd.f32 0.0, %v877
      %879 = vmatmul.f32.gmra.mxu0 %v813
      %v880 = vpop.f32.mrf.mxu0
      %v881 = vadd.f32 0.0, %v880
      %882 = vmatmul.f32.gmra.mxu0 %v816
      %v883 = vpop.f32.mrf.mxu0
      %v884 = vadd.f32 0.0, %v883
      %885 = vmatmul.f32.gmra.mxu0 %v819
      %v886 = vpop.f32.mrf.mxu0
      %v887 = vadd.f32 0.0, %v886
      %888 = vmatmul.f32.gmra.mxu0 %v822
      %v889 = vpop.f32.mrf.mxu0
      %v890 = vadd.f32 0.0, %v889
      %891 = vmatmul.f32.gmra.mxu0 %v825
      %v892 = vpop.f32.mrf.mxu0
      %v893 = vadd.f32 0.0, %v892
      %894 = vmatmul.f32.gmra.mxu0 %v828
      %v895 = vpop.f32.mrf.mxu0
      %v896 = vadd.f32 0.0, %v895
      %897 = vmatmul.f32.gmra.mxu0 %v831
      %v898 = vpop.f32.mrf.mxu0
      %v899 = vadd.f32 0.0, %v898
      %900 = vmatmul.f32.gmra.mxu0 %v834
      %v901 = vpop.f32.mrf.mxu0
      %v902 = vadd.f32 0.0, %v901
      %903 = vmatmul.f32.gmra.mxu0 %v837
      %v904 = vpop.f32.mrf.mxu0
      %v905 = vadd.f32 0.0, %v904
      %906 = vdwg.mxu0
      %v907 = vadd.f32 %v755, %v860
      %v908 = vadd.f32 %v756, %v863
      %v909 = vadd.f32 %v757, %v866
      %v910 = vadd.f32 %v758, %v869
      %v911 = vadd.f32 %v759, %v872
      %v912 = vadd.f32 %v760, %v875
      %v913 = vadd.f32 %v761, %v878
      %v914 = vadd.f32 %v762, %v881
      %v915 = vadd.f32 %v763, %v884
      %v916 = vadd.f32 %v764, %v887
      %v917 = vadd.f32 %v765, %v890
      %v918 = vadd.f32 %v766, %v893
      %v919 = vadd.f32 %v767, %v896
      %v920 = vadd.f32 %v768, %v899
      %v921 = vadd.f32 %v769, %v902
      %v922 = vadd.f32 %v770, %v905
      %s923 = sadd.s32 %s194, 16
      %s924 = scalar_lea.vmem %s183, %s923
      %v925 = vld [vmem:[%s924] sm:$0xff]
      %v926 = vld [vmem:[%s924 + $0x8] sm:$0xff]
      %v927 = vld [vmem:[%s924 + $0x10] sm:$0xff]
      %v928 = vld [vmem:[%s924 + $0x18] sm:$0xff]
      %v929 = vld [vmem:[%s924 + $0x20] sm:$0xff]
      %v930 = vld [vmem:[%s924 + $0x28] sm:$0xff]
      %v931 = vld [vmem:[%s924 + $0x30] sm:$0xff]
      %v932 = vld [vmem:[%s924 + $0x38] sm:$0xff]
      %v933 = vld [vmem:[%s924 + $0x40] sm:$0xff]
      %v934 = vld [vmem:[%s924 + $0x48] sm:$0xff]
      %v935 = vld [vmem:[%s924 + $0x50] sm:$0xff]
      %v936 = vld [vmem:[%s924 + $0x58] sm:$0xff]
      %v937 = vld [vmem:[%s924 + $0x60] sm:$0xff]
      %v938 = vld [vmem:[%s924 + $0x68] sm:$0xff]
      %v939 = vld [vmem:[%s924 + $0x70] sm:$0xff]
      %v940 = vld [vmem:[%s924 + $0x78] sm:$0xff]
      %s941 = scalar_lea.vmem %s1, 20
      %v942 = vld [vmem:[%s941] sm:$0xf]
      %v944 = vsel %vm233, %v925, 0
      %v947 = vsel %vm233, %v926, 0
      %v950 = vsel %vm233, %v927, 0
      %v953 = vsel %vm233, %v928, 0
      %v956 = vsel %vm233, %v929, 0
      %v959 = vsel %vm233, %v930, 0
      %v962 = vsel %vm233, %v931, 0
      %v965 = vsel %vm233, %v932, 0
      %v968 = vsel %vm233, %v933, 0
      %v971 = vsel %vm233, %v934, 0
      %v974 = vsel %vm233, %v935, 0
      %v977 = vsel %vm233, %v936, 0
      %v980 = vsel %vm233, %v937, 0
      %v983 = vsel %vm233, %v938, 0
      %v986 = vsel %vm233, %v939, 0
      %v989 = vsel %vm233, %v940, 0
      %v992 = vsel %vm282, %v942, 0
      %994 = vmatpush.msra.mxu0 0.0
      %995 = vmatpush.msra.mxu0 0.0
      %996 = vmatpush.msra.mxu0 0.0
      %997 = vmatpush.msra.mxu0 0.0
      %998 = vmatpush.msra.mxu0 0.0
      %999 = vmatpush.msra.mxu0 0.0
      %1000 = vmatpush.msra.mxu0 0.0
      %1001 = vmatpush.msra.mxu0 0.0
      %1002 = vmatpush.msra.mxu0 0.0
      %1003 = vmatpush.msra.mxu0 0.0
      %1004 = vmatpush.msra.mxu0 0.0
      %1005 = vmatpush.msra.mxu0 0.0
      %1006 = vmatpush.msra.mxu0 0.0
      %1007 = vmatpush.msra.mxu0 0.0
      %1008 = vmatpush.msra.mxu0 0.0
      %1009 = vmatpush.msra.mxu0 %v992
      %1010 = vmatmul.f32.gmra.mxu0 %v944
      %v1011 = vpop.f32.mrf.mxu0
      %v1012 = vadd.f32 0.0, %v1011
      %1013 = vmatmul.f32.gmra.mxu0 %v947
      %v1014 = vpop.f32.mrf.mxu0
      %v1015 = vadd.f32 0.0, %v1014
      %1016 = vmatmul.f32.gmra.mxu0 %v950
      %v1017 = vpop.f32.mrf.mxu0
      %v1018 = vadd.f32 0.0, %v1017
      %1019 = vmatmul.f32.gmra.mxu0 %v953
      %v1020 = vpop.f32.mrf.mxu0
      %v1021 = vadd.f32 0.0, %v1020
      %1022 = vmatmul.f32.gmra.mxu0 %v956
      %v1023 = vpop.f32.mrf.mxu0
      %v1024 = vadd.f32 0.0, %v1023
      %1025 = vmatmul.f32.gmra.mxu0 %v959
      %v1026 = vpop.f32.mrf.mxu0
      %v1027 = vadd.f32 0.0, %v1026
      %1028 = vmatmul.f32.gmra.mxu0 %v962
      %v1029 = vpop.f32.mrf.mxu0
      %v1030 = vadd.f32 0.0, %v1029
      %1031 = vmatmul.f32.gmra.mxu0 %v965
      %v1032 = vpop.f32.mrf.mxu0
      %v1033 = vadd.f32 0.0, %v1032
      %1034 = vmatmul.f32.gmra.mxu0 %v968
      %v1035 = vpop.f32.mrf.mxu0
      %v1036 = vadd.f32 0.0, %v1035
      %1037 = vmatmul.f32.gmra.mxu0 %v971
      %v1038 = vpop.f32.mrf.mxu0
      %v1039 = vadd.f32 0.0, %v1038
      %1040 = vmatmul.f32.gmra.mxu0 %v974
      %v1041 = vpop.f32.mrf.mxu0
      %v1042 = vadd.f32 0.0, %v1041
      %1043 = vmatmul.f32.gmra.mxu0 %v977
      %v1044 = vpop.f32.mrf.mxu0
      %v1045 = vadd.f32 0.0, %v1044
      %1046 = vmatmul.f32.gmra.mxu0 %v980
      %v1047 = vpop.f32.mrf.mxu0
      %v1048 = vadd.f32 0.0, %v1047
      %1049 = vmatmul.f32.gmra.mxu0 %v983
      %v1050 = vpop.f32.mrf.mxu0
      %v1051 = vadd.f32 0.0, %v1050
      %1052 = vmatmul.f32.gmra.mxu0 %v986
      %v1053 = vpop.f32.mrf.mxu0
      %v1054 = vadd.f32 0.0, %v1053
      %1055 = vmatmul.f32.gmra.mxu0 %v989
      %v1056 = vpop.f32.mrf.mxu0
      %v1057 = vadd.f32 0.0, %v1056
      %1058 = vdwg.mxu0
      %v1059 = vadd.f32 %v907, %v1012
      %v1060 = vadd.f32 %v908, %v1015
      %v1061 = vadd.f32 %v909, %v1018
      %v1062 = vadd.f32 %v910, %v1021
      %v1063 = vadd.f32 %v911, %v1024
      %v1064 = vadd.f32 %v912, %v1027
      %v1065 = vadd.f32 %v913, %v1030
      %v1066 = vadd.f32 %v914, %v1033
      %v1067 = vadd.f32 %v915, %v1036
      %v1068 = vadd.f32 %v916, %v1039
      %v1069 = vadd.f32 %v917, %v1042
      %v1070 = vadd.f32 %v918, %v1045
      %v1071 = vadd.f32 %v919, %v1048
      %v1072 = vadd.f32 %v920, %v1051
      %v1073 = vadd.f32 %v921, %v1054
      %v1074 = vadd.f32 %v922, %v1057
      %s1075 = sadd.s32 %s194, 28
      %s1076 = scalar_lea.vmem %s183, %s1075
      %v1077 = vld [vmem:[%s1076] sm:$0xff]
      %v1078 = vld [vmem:[%s1076 + $0x8] sm:$0xff]
      %v1079 = vld [vmem:[%s1076 + $0x10] sm:$0xff]
      %v1080 = vld [vmem:[%s1076 + $0x18] sm:$0xff]
      %v1081 = vld [vmem:[%s1076 + $0x20] sm:$0xff]
      %v1082 = vld [vmem:[%s1076 + $0x28] sm:$0xff]
      %v1083 = vld [vmem:[%s1076 + $0x30] sm:$0xff]
      %v1084 = vld [vmem:[%s1076 + $0x38] sm:$0xff]
      %v1085 = vld [vmem:[%s1076 + $0x40] sm:$0xff]
      %v1086 = vld [vmem:[%s1076 + $0x48] sm:$0xff]
      %v1087 = vld [vmem:[%s1076 + $0x50] sm:$0xff]
      %v1088 = vld [vmem:[%s1076 + $0x58] sm:$0xff]
      %v1089 = vld [vmem:[%s1076 + $0x60] sm:$0xff]
      %v1090 = vld [vmem:[%s1076 + $0x68] sm:$0xff]
      %v1091 = vld [vmem:[%s1076 + $0x70] sm:$0xff]
      %v1092 = vld [vmem:[%s1076 + $0x78] sm:$0xff]
      %s1093 = scalar_lea.vmem %s1, 24
      %v1094 = vld [vmem:[%s1093] sm:$0xf]
      %v1096 = vsel %vm233, %v1077, 0
      %v1099 = vsel %vm233, %v1078, 0
      %v1102 = vsel %vm233, %v1079, 0
      %v1105 = vsel %vm233, %v1080, 0
      %v1108 = vsel %vm233, %v1081, 0
      %v1111 = vsel %vm233, %v1082, 0
      %v1114 = vsel %vm233, %v1083, 0
      %v1117 = vsel %vm233, %v1084, 0
      %v1120 = vsel %vm233, %v1085, 0
      %v1123 = vsel %vm233, %v1086, 0
      %v1126 = vsel %vm233, %v1087, 0
      %v1129 = vsel %vm233, %v1088, 0
      %v1132 = vsel %vm233, %v1089, 0
      %v1135 = vsel %vm233, %v1090, 0
      %v1138 = vsel %vm233, %v1091, 0
      %v1141 = vsel %vm233, %v1092, 0
      %v1144 = vsel %vm282, %v1094, 0
      %1146 = vmatpush.msra.mxu0 0.0
      %1147 = vmatpush.msra.mxu0 0.0
      %1148 = vmatpush.msra.mxu0 0.0
      %1149 = vmatpush.msra.mxu0 0.0
      %1150 = vmatpush.msra.mxu0 0.0
      %1151 = vmatpush.msra.mxu0 0.0
      %1152 = vmatpush.msra.mxu0 0.0
      %1153 = vmatpush.msra.mxu0 0.0
      %1154 = vmatpush.msra.mxu0 0.0
      %1155 = vmatpush.msra.mxu0 0.0
      %1156 = vmatpush.msra.mxu0 0.0
      %1157 = vmatpush.msra.mxu0 0.0
      %1158 = vmatpush.msra.mxu0 0.0
      %1159 = vmatpush.msra.mxu0 0.0
      %1160 = vmatpush.msra.mxu0 0.0
      %1161 = vmatpush.msra.mxu0 %v1144
      %1162 = vmatmul.f32.gmra.mxu0 %v1096
      %v1163 = vpop.f32.mrf.mxu0
      %v1164 = vadd.f32 0.0, %v1163
      %1165 = vmatmul.f32.gmra.mxu0 %v1099
      %v1166 = vpop.f32.mrf.mxu0
      %v1167 = vadd.f32 0.0, %v1166
      %1168 = vmatmul.f32.gmra.mxu0 %v1102
      %v1169 = vpop.f32.mrf.mxu0
      %v1170 = vadd.f32 0.0, %v1169
      %1171 = vmatmul.f32.gmra.mxu0 %v1105
      %v1172 = vpop.f32.mrf.mxu0
      %v1173 = vadd.f32 0.0, %v1172
      %1174 = vmatmul.f32.gmra.mxu0 %v1108
      %v1175 = vpop.f32.mrf.mxu0
      %v1176 = vadd.f32 0.0, %v1175
      %1177 = vmatmul.f32.gmra.mxu0 %v1111
      %v1178 = vpop.f32.mrf.mxu0
      %v1179 = vadd.f32 0.0, %v1178
      %1180 = vmatmul.f32.gmra.mxu0 %v1114
      %v1181 = vpop.f32.mrf.mxu0
      %v1182 = vadd.f32 0.0, %v1181
      %1183 = vmatmul.f32.gmra.mxu0 %v1117
      %v1184 = vpop.f32.mrf.mxu0
      %v1185 = vadd.f32 0.0, %v1184
      %1186 = vmatmul.f32.gmra.mxu0 %v1120
      %v1187 = vpop.f32.mrf.mxu0
      %v1188 = vadd.f32 0.0, %v1187
      %1189 = vmatmul.f32.gmra.mxu0 %v1123
      %v1190 = vpop.f32.mrf.mxu0
      %v1191 = vadd.f32 0.0, %v1190
      %1192 = vmatmul.f32.gmra.mxu0 %v1126
      %v1193 = vpop.f32.mrf.mxu0
      %v1194 = vadd.f32 0.0, %v1193
      %1195 = vmatmul.f32.gmra.mxu0 %v1129
      %v1196 = vpop.f32.mrf.mxu0
      %v1197 = vadd.f32 0.0, %v1196
      %1198 = vmatmul.f32.gmra.mxu0 %v1132
      %v1199 = vpop.f32.mrf.mxu0
      %v1200 = vadd.f32 0.0, %v1199
      %1201 = vmatmul.f32.gmra.mxu0 %v1135
      %v1202 = vpop.f32.mrf.mxu0
      %v1203 = vadd.f32 0.0, %v1202
      %1204 = vmatmul.f32.gmra.mxu0 %v1138
      %v1205 = vpop.f32.mrf.mxu0
      %v1206 = vadd.f32 0.0, %v1205
      %1207 = vmatmul.f32.gmra.mxu0 %v1141
      %v1208 = vpop.f32.mrf.mxu0
      %v1209 = vadd.f32 0.0, %v1208
      %1210 = vdwg.mxu0
      %v1211 = vadd.f32 %v1059, %v1164
      %v1212 = vadd.f32 %v1060, %v1167
      %v1213 = vadd.f32 %v1061, %v1170
      %v1214 = vadd.f32 %v1062, %v1173
      %v1215 = vadd.f32 %v1063, %v1176
      %v1216 = vadd.f32 %v1064, %v1179
      %v1217 = vadd.f32 %v1065, %v1182
      %v1218 = vadd.f32 %v1066, %v1185
      %v1219 = vadd.f32 %v1067, %v1188
      %v1220 = vadd.f32 %v1068, %v1191
      %v1221 = vadd.f32 %v1069, %v1194
      %v1222 = vadd.f32 %v1070, %v1197
      %v1223 = vadd.f32 %v1071, %v1200
      %v1224 = vadd.f32 %v1072, %v1203
      %v1225 = vadd.f32 %v1073, %v1206
      %v1226 = vadd.f32 %v1074, %v1209
      %s1227 = sadd.s32 %s194, 29
      %s1228 = scalar_lea.vmem %s183, %s1227
      %v1229 = vld [vmem:[%s1228] sm:$0xff]
      %v1230 = vld [vmem:[%s1228 + $0x8] sm:$0xff]
      %v1231 = vld [vmem:[%s1228 + $0x10] sm:$0xff]
      %v1232 = vld [vmem:[%s1228 + $0x18] sm:$0xff]
      %v1233 = vld [vmem:[%s1228 + $0x20] sm:$0xff]
      %v1234 = vld [vmem:[%s1228 + $0x28] sm:$0xff]
      %v1235 = vld [vmem:[%s1228 + $0x30] sm:$0xff]
      %v1236 = vld [vmem:[%s1228 + $0x38] sm:$0xff]
      %v1237 = vld [vmem:[%s1228 + $0x40] sm:$0xff]
      %v1238 = vld [vmem:[%s1228 + $0x48] sm:$0xff]
      %v1239 = vld [vmem:[%s1228 + $0x50] sm:$0xff]
      %v1240 = vld [vmem:[%s1228 + $0x58] sm:$0xff]
      %v1241 = vld [vmem:[%s1228 + $0x60] sm:$0xff]
      %v1242 = vld [vmem:[%s1228 + $0x68] sm:$0xff]
      %v1243 = vld [vmem:[%s1228 + $0x70] sm:$0xff]
      %v1244 = vld [vmem:[%s1228 + $0x78] sm:$0xff]
      %s1245 = scalar_lea.vmem %s1, 28
      %v1246 = vld [vmem:[%s1245] sm:$0xf]
      %v1248 = vsel %vm233, %v1229, 0
      %v1251 = vsel %vm233, %v1230, 0
      %v1254 = vsel %vm233, %v1231, 0
      %v1257 = vsel %vm233, %v1232, 0
      %v1260 = vsel %vm233, %v1233, 0
      %v1263 = vsel %vm233, %v1234, 0
      %v1266 = vsel %vm233, %v1235, 0
      %v1269 = vsel %vm233, %v1236, 0
      %v1272 = vsel %vm233, %v1237, 0
      %v1275 = vsel %vm233, %v1238, 0
      %v1278 = vsel %vm233, %v1239, 0
      %v1281 = vsel %vm233, %v1240, 0
      %v1284 = vsel %vm233, %v1241, 0
      %v1287 = vsel %vm233, %v1242, 0
      %v1290 = vsel %vm233, %v1243, 0
      %v1293 = vsel %vm233, %v1244, 0
      %v1296 = vsel %vm282, %v1246, 0
      %1298 = vmatpush.msra.mxu0 0.0
      %1299 = vmatpush.msra.mxu0 0.0
      %1300 = vmatpush.msra.mxu0 0.0
      %1301 = vmatpush.msra.mxu0 0.0
      %1302 = vmatpush.msra.mxu0 0.0
      %1303 = vmatpush.msra.mxu0 0.0
      %1304 = vmatpush.msra.mxu0 0.0
      %1305 = vmatpush.msra.mxu0 0.0
      %1306 = vmatpush.msra.mxu0 0.0
      %1307 = vmatpush.msra.mxu0 0.0
      %1308 = vmatpush.msra.mxu0 0.0
      %1309 = vmatpush.msra.mxu0 0.0
      %1310 = vmatpush.msra.mxu0 0.0
      %1311 = vmatpush.msra.mxu0 0.0
      %1312 = vmatpush.msra.mxu0 0.0
      %1313 = vmatpush.msra.mxu0 %v1296
      %1314 = vmatmul.f32.gmra.mxu0 %v1248
      %v1315 = vpop.f32.mrf.mxu0
      %v1316 = vadd.f32 0.0, %v1315
      %1317 = vmatmul.f32.gmra.mxu0 %v1251
      %v1318 = vpop.f32.mrf.mxu0
      %v1319 = vadd.f32 0.0, %v1318
      %1320 = vmatmul.f32.gmra.mxu0 %v1254
      %v1321 = vpop.f32.mrf.mxu0
      %v1322 = vadd.f32 0.0, %v1321
      %1323 = vmatmul.f32.gmra.mxu0 %v1257
      %v1324 = vpop.f32.mrf.mxu0
      %v1325 = vadd.f32 0.0, %v1324
      %1326 = vmatmul.f32.gmra.mxu0 %v1260
      %v1327 = vpop.f32.mrf.mxu0
      %v1328 = vadd.f32 0.0, %v1327
      %1329 = vmatmul.f32.gmra.mxu0 %v1263
      %v1330 = vpop.f32.mrf.mxu0
      %v1331 = vadd.f32 0.0, %v1330
      %1332 = vmatmul.f32.gmra.mxu0 %v1266
      %v1333 = vpop.f32.mrf.mxu0
      %v1334 = vadd.f32 0.0, %v1333
      %1335 = vmatmul.f32.gmra.mxu0 %v1269
      %v1336 = vpop.f32.mrf.mxu0
      %v1337 = vadd.f32 0.0, %v1336
      %1338 = vmatmul.f32.gmra.mxu0 %v1272
      %v1339 = vpop.f32.mrf.mxu0
      %v1340 = vadd.f32 0.0, %v1339
      %1341 = vmatmul.f32.gmra.mxu0 %v1275
      %v1342 = vpop.f32.mrf.mxu0
      %v1343 = vadd.f32 0.0, %v1342
      %1344 = vmatmul.f32.gmra.mxu0 %v1278
      %v1345 = vpop.f32.mrf.mxu0
      %v1346 = vadd.f32 0.0, %v1345
      %1347 = vmatmul.f32.gmra.mxu0 %v1281
      %v1348 = vpop.f32.mrf.mxu0
      %v1349 = vadd.f32 0.0, %v1348
      %1350 = vmatmul.f32.gmra.mxu0 %v1284
      %v1351 = vpop.f32.mrf.mxu0
      %v1352 = vadd.f32 0.0, %v1351
      %1353 = vmatmul.f32.gmra.mxu0 %v1287
      %v1354 = vpop.f32.mrf.mxu0
      %v1355 = vadd.f32 0.0, %v1354
      %1356 = vmatmul.f32.gmra.mxu0 %v1290
      %v1357 = vpop.f32.mrf.mxu0
      %v1358 = vadd.f32 0.0, %v1357
      %1359 = vmatmul.f32.gmra.mxu0 %v1293
      %v1360 = vpop.f32.mrf.mxu0
      %v1361 = vadd.f32 0.0, %v1360
      %1362 = vdwg.mxu0
      %v1363 = vadd.f32 %v1211, %v1316
      %v1364 = vadd.f32 %v1212, %v1319
      %v1365 = vadd.f32 %v1213, %v1322
      %v1366 = vadd.f32 %v1214, %v1325
      %v1367 = vadd.f32 %v1215, %v1328
      %v1368 = vadd.f32 %v1216, %v1331
      %v1369 = vadd.f32 %v1217, %v1334
      %v1370 = vadd.f32 %v1218, %v1337
      %v1371 = vadd.f32 %v1219, %v1340
      %v1372 = vadd.f32 %v1220, %v1343
      %v1373 = vadd.f32 %v1221, %v1346
      %v1374 = vadd.f32 %v1222, %v1349
      %v1375 = vadd.f32 %v1223, %v1352
      %v1376 = vadd.f32 %v1224, %v1355
      %v1377 = vadd.f32 %v1225, %v1358
      %v1378 = vadd.f32 %v1226, %v1361
      %s1379 = sadd.s32 %s194, 30
      %s1380 = scalar_lea.vmem %s183, %s1379
      %v1381 = vld [vmem:[%s1380] sm:$0xff]
      %v1382 = vld [vmem:[%s1380 + $0x8] sm:$0xff]
      %v1383 = vld [vmem:[%s1380 + $0x10] sm:$0xff]
      %v1384 = vld [vmem:[%s1380 + $0x18] sm:$0xff]
      %v1385 = vld [vmem:[%s1380 + $0x20] sm:$0xff]
      %v1386 = vld [vmem:[%s1380 + $0x28] sm:$0xff]
      %v1387 = vld [vmem:[%s1380 + $0x30] sm:$0xff]
      %v1388 = vld [vmem:[%s1380 + $0x38] sm:$0xff]
      %v1389 = vld [vmem:[%s1380 + $0x40] sm:$0xff]
      %v1390 = vld [vmem:[%s1380 + $0x48] sm:$0xff]
      %v1391 = vld [vmem:[%s1380 + $0x50] sm:$0xff]
      %v1392 = vld [vmem:[%s1380 + $0x58] sm:$0xff]
      %v1393 = vld [vmem:[%s1380 + $0x60] sm:$0xff]
      %v1394 = vld [vmem:[%s1380 + $0x68] sm:$0xff]
      %v1395 = vld [vmem:[%s1380 + $0x70] sm:$0xff]
      %v1396 = vld [vmem:[%s1380 + $0x78] sm:$0xff]
      %s1397 = scalar_lea.vmem %s1, 32
      %v1398 = vld [vmem:[%s1397] sm:$0xf]
      %v1400 = vsel %vm233, %v1381, 0
      %v1403 = vsel %vm233, %v1382, 0
      %v1406 = vsel %vm233, %v1383, 0
      %v1409 = vsel %vm233, %v1384, 0
      %v1412 = vsel %vm233, %v1385, 0
      %v1415 = vsel %vm233, %v1386, 0
      %v1418 = vsel %vm233, %v1387, 0
      %v1421 = vsel %vm233, %v1388, 0
      %v1424 = vsel %vm233, %v1389, 0
      %v1427 = vsel %vm233, %v1390, 0
      %v1430 = vsel %vm233, %v1391, 0
      %v1433 = vsel %vm233, %v1392, 0
      %v1436 = vsel %vm233, %v1393, 0
      %v1439 = vsel %vm233, %v1394, 0
      %v1442 = vsel %vm233, %v1395, 0
      %v1445 = vsel %vm233, %v1396, 0
      %v1448 = vsel %vm282, %v1398, 0
      %1450 = vmatpush.msra.mxu0 0.0
      %1451 = vmatpush.msra.mxu0 0.0
      %1452 = vmatpush.msra.mxu0 0.0
      %1453 = vmatpush.msra.mxu0 0.0
      %1454 = vmatpush.msra.mxu0 0.0
      %1455 = vmatpush.msra.mxu0 0.0
      %1456 = vmatpush.msra.mxu0 0.0
      %1457 = vmatpush.msra.mxu0 0.0
      %1458 = vmatpush.msra.mxu0 0.0
      %1459 = vmatpush.msra.mxu0 0.0
      %1460 = vmatpush.msra.mxu0 0.0
      %1461 = vmatpush.msra.mxu0 0.0
      %1462 = vmatpush.msra.mxu0 0.0
      %1463 = vmatpush.msra.mxu0 0.0
      %1464 = vmatpush.msra.mxu0 0.0
      %1465 = vmatpush.msra.mxu0 %v1448
      %1466 = vmatmul.f32.gmra.mxu0 %v1400
      %v1467 = vpop.f32.mrf.mxu0
      %v1468 = vadd.f32 0.0, %v1467
      %1469 = vmatmul.f32.gmra.mxu0 %v1403
      %v1470 = vpop.f32.mrf.mxu0
      %v1471 = vadd.f32 0.0, %v1470
      %1472 = vmatmul.f32.gmra.mxu0 %v1406
      %v1473 = vpop.f32.mrf.mxu0
      %v1474 = vadd.f32 0.0, %v1473
      %1475 = vmatmul.f32.gmra.mxu0 %v1409
      %v1476 = vpop.f32.mrf.mxu0
      %v1477 = vadd.f32 0.0, %v1476
      %1478 = vmatmul.f32.gmra.mxu0 %v1412
      %v1479 = vpop.f32.mrf.mxu0
      %v1480 = vadd.f32 0.0, %v1479
      %1481 = vmatmul.f32.gmra.mxu0 %v1415
      %v1482 = vpop.f32.mrf.mxu0
      %v1483 = vadd.f32 0.0, %v1482
      %1484 = vmatmul.f32.gmra.mxu0 %v1418
      %v1485 = vpop.f32.mrf.mxu0
      %v1486 = vadd.f32 0.0, %v1485
      %1487 = vmatmul.f32.gmra.mxu0 %v1421
      %v1488 = vpop.f32.mrf.mxu0
      %v1489 = vadd.f32 0.0, %v1488
      %1490 = vmatmul.f32.gmra.mxu0 %v1424
      %v1491 = vpop.f32.mrf.mxu0
      %v1492 = vadd.f32 0.0, %v1491
      %1493 = vmatmul.f32.gmra.mxu0 %v1427
      %v1494 = vpop.f32.mrf.mxu0
      %v1495 = vadd.f32 0.0, %v1494
      %1496 = vmatmul.f32.gmra.mxu0 %v1430
      %v1497 = vpop.f32.mrf.mxu0
      %v1498 = vadd.f32 0.0, %v1497
      %1499 = vmatmul.f32.gmra.mxu0 %v1433
      %v1500 = vpop.f32.mrf.mxu0
      %v1501 = vadd.f32 0.0, %v1500
      %1502 = vmatmul.f32.gmra.mxu0 %v1436
      %v1503 = vpop.f32.mrf.mxu0
      %v1504 = vadd.f32 0.0, %v1503
      %1505 = vmatmul.f32.gmra.mxu0 %v1439
      %v1506 = vpop.f32.mrf.mxu0
      %v1507 = vadd.f32 0.0, %v1506
      %1508 = vmatmul.f32.gmra.mxu0 %v1442
      %v1509 = vpop.f32.mrf.mxu0
      %v1510 = vadd.f32 0.0, %v1509
      %1511 = vmatmul.f32.gmra.mxu0 %v1445
      %v1512 = vpop.f32.mrf.mxu0
      %v1513 = vadd.f32 0.0, %v1512
      %1514 = vdwg.mxu0
      %v1515 = vadd.f32 %v1363, %v1468
      %v1516 = vadd.f32 %v1364, %v1471
      %v1517 = vadd.f32 %v1365, %v1474
      %v1518 = vadd.f32 %v1366, %v1477
      %v1519 = vadd.f32 %v1367, %v1480
      %v1520 = vadd.f32 %v1368, %v1483
      %v1521 = vadd.f32 %v1369, %v1486
      %v1522 = vadd.f32 %v1370, %v1489
      %v1523 = vadd.f32 %v1371, %v1492
      %v1524 = vadd.f32 %v1372, %v1495
      %v1525 = vadd.f32 %v1373, %v1498
      %v1526 = vadd.f32 %v1374, %v1501
      %v1527 = vadd.f32 %v1375, %v1504
      %v1528 = vadd.f32 %v1376, %v1507
      %v1529 = vadd.f32 %v1377, %v1510
      %v1530 = vadd.f32 %v1378, %v1513
      %v1531 = vld [vmem:[%s2] sm:$0x1]
      %v1533 = vperm.slane %v1531, 0
      %v1535 = vadd.f32 %v1515, %v1533
      %v1536 = vadd.f32 %v1516, %v1533
      %v1537 = vadd.f32 %v1517, %v1533
      %v1538 = vadd.f32 %v1518, %v1533
      %v1539 = vadd.f32 %v1519, %v1533
      %v1540 = vadd.f32 %v1520, %v1533
      %v1541 = vadd.f32 %v1521, %v1533
      %v1542 = vadd.f32 %v1522, %v1533
      %v1543 = vadd.f32 %v1523, %v1533
      %v1544 = vadd.f32 %v1524, %v1533
      %v1545 = vadd.f32 %v1525, %v1533
      %v1546 = vadd.f32 %v1526, %v1533
      %v1547 = vadd.f32 %v1527, %v1533
      %v1548 = vadd.f32 %v1528, %v1533
      %v1549 = vadd.f32 %v1529, %v1533
      %v1550 = vadd.f32 %v1530, %v1533
      %1551 = vst.msk [vmem:[%s192] sm:$0xff] %vm233, %v1535
      %1552 = vst.msk [vmem:[%s192 + $0x8] sm:$0xff] %vm233, %v1536
      %1553 = vst.msk [vmem:[%s192 + $0x10] sm:$0xff] %vm233, %v1537
      %1554 = vst.msk [vmem:[%s192 + $0x18] sm:$0xff] %vm233, %v1538
      %1555 = vst.msk [vmem:[%s192 + $0x20] sm:$0xff] %vm233, %v1539
      %1556 = vst.msk [vmem:[%s192 + $0x28] sm:$0xff] %vm233, %v1540
      %1557 = vst.msk [vmem:[%s192 + $0x30] sm:$0xff] %vm233, %v1541
      %1558 = vst.msk [vmem:[%s192 + $0x38] sm:$0xff] %vm233, %v1542
      %1559 = vst.msk [vmem:[%s192 + $0x40] sm:$0xff] %vm233, %v1543
      %1560 = vst.msk [vmem:[%s192 + $0x48] sm:$0xff] %vm233, %v1544
      %1561 = vst.msk [vmem:[%s192 + $0x50] sm:$0xff] %vm233, %v1545
      %1562 = vst.msk [vmem:[%s192 + $0x58] sm:$0xff] %vm233, %v1546
      %1563 = vst.msk [vmem:[%s192 + $0x60] sm:$0xff] %vm233, %v1547
      %1564 = vst.msk [vmem:[%s192 + $0x68] sm:$0xff] %vm233, %v1548
      %1565 = vst.msk [vmem:[%s192 + $0x70] sm:$0xff] %vm233, %v1549
      %1566 = vst.msk [vmem:[%s192 + $0x78] sm:$0xff] %vm233, %v1550
      %s1567 = smul.u32 16, %s19
      %p1568 = scmp.lt.s32.totalorder %s18, 1
      %s1569 = scalar_select %p1568, %s18, 1
      %p1570 = scmp.lt.s32.totalorder %s1567, 31
      %s1571 = scalar_select %p1570, %s1567, 31
      %s1572 = smul.addr %s1569, 32
      %s1573 = sadd.s32 %s1571, %s1572
      %s1574 = smul.addr %s1573, 8
      %s1575 = scalar_lea.vmem %s3, %s1574
      // Predicated region
      $region33: #{expand_forward.7} parent=31 // pred_check
        %p1576 = pneg %p114
      $region34: #{expand_forward.7} parent=31 // pred_check_branch
        %1578 = sbr.rel (%p1576) target = $region36
      $region35: #{expand_forward.7} parent=31 // pred_region
        %s1579 = smul.u32 16, %s19
      $region36: #{expand_forward.7} parent=31 // pred_fallthru
        _
    $region32: #{expand_forward.7} parent=5 // pred_fallthru
      _
    %p1580 = scmp.le.s32.totalorder 2, %s9
    // Predicated region
    $region37: #{expand_forward.7} parent=5 // pred_check
      %p1581 = pneg %p1580
    $region38: #{expand_forward.7} parent=5 // pred_check_branch
      %1583 = sbr.rel (%p1581) target = $region40
    $region39: #{expand_forward.7} parent=5 // pred_region
      %s1584 = ssub.s32 %s9, 2
      // Predicated region
      $region41: #{expand_forward.7} parent=39 // pred_check
        %p1585 = pneg %p120
      $region42: #{expand_forward.7} parent=39 // pred_check_branch
        %1587 = sbr.rel (%p1585) target = $region44
      $region43: #{expand_forward.7} parent=39 // pred_region
        %s1588 = smul.u32 16, %s21
        %p1589 = scmp.lt.s32.totalorder %s20, 1
        %s1590 = scalar_select %p1589, %s20, 1
        %p1591 = scmp.lt.s32.totalorder %s1588, 31
        %s1592 = scalar_select %p1591, %s1588, 31
        %s1593 = smul.addr %s1590, 32
        %s1594 = sadd.s32 %s1592, %s1593
        %s1595 = smul.addr %s1594, 8
        %s1596 = scalar_lea.vmem %s3, %s1595
      $region44: #{expand_forward.7} parent=39 // pred_fallthru
        _
    $region40: #{expand_forward.7} parent=5 // pred_fallthru
      _
  $region6: #{expand_forward.7} parent=0 // loop_footer
    %s13 = sadd.s32 1, %s9
  $region7: #{expand_forward.7} parent=0 // loop_footer_branch
    %8 = sbr.rel target = $region3
  $region8: #{expand_forward.7} parent=0 // loop_exit
    _

// kernel: expand_forward.8
$region0: #{expand_forward.8}
  #allocation0 [shape = 'u32[]', space=smem, size = 0x4, offset = 0x4, fixed_abs, tag = 'smem constant byte address 0x4 - core index']
  #allocation1 [shape = 'u32[72,128]{1,0:T(1,128)}', space=vmem, size = 0x9000, scoped, tag = 'internal scratch']
  %s0 = inlined_call_operand.vmem [shape: f32[384,4], index: 0, kind: input, shape index: {}]
  %s1 = inlined_call_operand.vmem [shape: f32[2,4], index: 1, kind: output, shape index: {}]
  %s2 = sld [smem:[#allocation0]]
  $region41: #{expand_forward.8} parent=0
    _
  %s4 = ssub.s32 1, %s2
  %s5 = scalar_select 0, %s4, %s2
  loop: start=0, step=1, limit=5
  $region2: #{expand_forward.8} parent=0 // loop_pre_header
    _
  $region3: #{expand_forward.8} parent=0 // loop_header
    %s7 = sphi 0, %s11
    %p8 = scmp.ge.s32.totalorder %s7, 5
    %s17 = sphi 0, %s19
    %s20 = sphi 0, %s17
    %s21 = sphi 0, %s20
    %s37 = sphi 0, %s21
    %s41 = sphi 0, %s41
    %s43 = sphi 0, %s41
    %s44 = sphi 0, %s43
    %s58 = sphi 0, %s44
  $region4: #{expand_forward.8} parent=0 // loop_header_branch
    %10 = sbr.rel (%p8) target = $region8
  $region5: #{expand_forward.8} parent=0 // loop_body
    %s12 = ssub.s32 %s7, 1
    %s13 = ssub.s32 %s7, 2
    %s14 = sadd.s32 %s7, 1
    %s15 = ssub.s32 %s7, %s14
    %p16 = scmp.eq.s32.totalorder %s15, 0
    %s18 = sadd.s32 %s17, 1
    %s19 = scalar_select %p16, %s17, %s18
    %p22 = pneg %p16
    %p23 = scmp.eq.s32.totalorder %s7, 2
    %p24 = por %p22, %p23
    %p25 = scmp.ne.s32.totalorder %s17, %s20
    %p26 = scmp.eq.s32.totalorder %s7, 0
    %p27 = por %p25, %p26
    %p28 = scmp.ne.s32.totalorder %s17, %s20
    %p29 = scmp.eq.s32.totalorder %s12, 2
    %p30 = por %p28, %p29
    %p31 = scmp.ne.s32.totalorder %s20, %s21
    %p32 = scmp.eq.s32.totalorder %s12, 0
    %p33 = por %p31, %p32
    %p34 = scmp.ne.s32.totalorder %s20, %s21
    %p35 = scmp.eq.s32.totalorder %s13, 2
    %p36 = por %p34, %p35
    %p38 = scmp.ne.s32.totalorder %s21, %s37
    %p39 = scmp.eq.s32.totalorder %s13, 0
    %p40 = por %p38, %p39
    %s42 = sadd.s32 %s41, 1
    %p45 = scmp.eq.s32.totalorder %s7, 2
    %p46 = scmp.ne.s32.totalorder %s41, %s43
    %p47 = scmp.eq.s32.totalorder %s7, 0
    %p48 = por %p46, %p47
    %p49 = scmp.ne.s32.totalorder %s41, %s43
    %p50 = scmp.eq.s32.totalorder %s12, 2
    %p51 = por %p49, %p50
    %p52 = scmp.ne.s32.totalorder %s43, %s44
    %p53 = scmp.eq.s32.totalorder %s12, 0
    %p54 = por %p52, %p53
    %p55 = scmp.ne.s32.totalorder %s43, %s44
    %p56 = scmp.eq.s32.totalorder %s13, 2
    %p57 = por %p55, %p56
    %p59 = scmp.ne.s32.totalorder %s44, %s58
    %p60 = scmp.eq.s32.totalorder %s13, 0
    %p61 = por %p59, %p60
    %p62 = scmp.le.s32.totalorder 1, %s7
    %p63 = scmp.lt.s32.totalorder %s7, 4
    %p64 = pnand %p62, %p63
    %p65 = pneg %p64
    // Predicated region
    $region9: #{expand_forward.8} parent=5 // pred_check
      _
    $region10: #{expand_forward.8} parent=5 // pred_check_branch
      %67 = sbr.rel (%p64) target = $region12
    $region11: #{expand_forward.8} parent=5 // pred_region
      %s68 = ssub.s32 %s7, 1
    $region12: #{expand_forward.8} parent=5 // pred_fallthru
      _
    %p69 = scmp.lt.s32.totalorder %s7, 3
    // Predicated region
    $region13: #{expand_forward.8} parent=5 // pred_check
      %p70 = pneg %p69
    $region14: #{expand_forward.8} parent=5 // pred_check_branch
      %72 = sbr.rel (%p70) target = $region16
    $region15: #{expand_forward.8} parent=5 // pred_region
      // Predicated region
      $region17: #{expand_forward.8} parent=15 // pred_check
        %p73 = pneg %p27
      $region18: #{expand_forward.8} parent=15 // pred_check_branch
        %75 = sbr.rel (%p73) target = $region20
      $region19: #{expand_forward.8} parent=15 // pred_region
        %s76 = smul.u32 16, %s7
        %p77 = scmp.lt.s32.totalorder %s76, 47
        %s78 = scalar_select %p77, %s76, 47
        %s79 = smul.addr %s78, 8
        %s80 = scalar_lea.vmem %s0, %s79
        %s81 = smul.u32 16, %s7
      $region20: #{expand_forward.8} parent=15 // pred_fallthru
        _
    $region16: #{expand_forward.8} parent=5 // pred_fallthru
      _
    %p82 = scmp.le.s32.totalorder 1, %s7
    %p83 = scmp.lt.s32.totalorder %s7, 4
    %p84 = pnand %p82, %p83
    %p85 = pneg %p84
    // Predicated region
    $region21: #{expand_forward.8} parent=5 // pred_check
      _
    $region22: #{expand_forward.8} parent=5 // pred_check_branch
      %87 = sbr.rel (%p84) target = $region24
    $region23: #{expand_forward.8} parent=5 // pred_region
      %s88 = ssub.s32 %s7, 1
      %s89 = smul.u32 16, %s12
      %p90 = scmp.lt.s32.totalorder %s89, 47
      %s91 = scalar_select %p90, %s89, 47
      %s92 = smul.addr %s91, 8
      %s93 = scalar_lea.vmem %s0, %s92
      %p94 = pneg %p33
      %p95 = pneg %p30
      %p96 = pneg %p54
      %p97 = pneg %p51
      %s98 = smul.u32 16, %s12
      %p99 = scmp.lt.s32.totalorder %s98, 47
      %s100 = scalar_select %p99, %s98, 47
      %s101 = smul.addr %s100, 8
      %s102 = scalar_lea.vmem %s0, %s101
      %s103 = smul.u32 16, %s12
      %p104 = scmp.eq.s32.totalorder %s12, 0
      // Predicated region
      $region25: #{expand_forward.8} parent=23 // pred_check
        %p105 = pneg %p104
      $region26: #{expand_forward.8} parent=23 // pred_check_branch
        %107 = sbr.rel (%p105) target = $region28
      $region27: #{expand_forward.8} parent=23 // pred_region
        %vm108 = vcmask 25600
        %109 = vst.msk [vmem:[%s1] sm:$0x3] %vm108, 0.0
      $region28: #{expand_forward.8} parent=23 // pred_fallthru
        _
      %v110 = vld [vmem:[%s102] sm:$0xff]
      %v111 = vld [vmem:[%s102 + $0x8] sm:$0xff]
      %v112 = vld [vmem:[%s102 + $0x10] sm:$0xff]
      %v113 = vld [vmem:[%s102 + $0x18] sm:$0xff]
      %v114 = vld [vmem:[%s102 + $0x20] sm:$0xff]
      %v115 = vld [vmem:[%s102 + $0x28] sm:$0xff]
      %v116 = vld [vmem:[%s102 + $0x30] sm:$0xff]
      %v117 = vld [vmem:[%s102 + $0x38] sm:$0xff]
      %v118 = vld [vmem:[%s102 + $0x40] sm:$0xff]
      %v119 = vld [vmem:[%s102 + $0x48] sm:$0xff]
      %v120 = vld [vmem:[%s102 + $0x50] sm:$0xff]
      %v121 = vld [vmem:[%s102 + $0x58] sm:$0xff]
      %v122 = vld [vmem:[%s102 + $0x60] sm:$0xff]
      %v123 = vld [vmem:[%s102 + $0x68] sm:$0xff]
      %v124 = vld [vmem:[%s102 + $0x70] sm:$0xff]
      %v125 = vld [vmem:[%s102 + $0x78] sm:$0xff]
      %v126 = vld [vmem:[%s1] sm:$0x1]
      %vm127 = vcmask 31744
      %v128 = vsel %vm127, %v110, 0.0
      %v129 = vsel %vm127, %v111, 0.0
      %v130 = vadd.f32 %v128, %v129
      %v131 = vsel %vm127, %v112, 0.0
      %v132 = vadd.f32 %v130, %v131
      %v133 = vsel %vm127, %v113, 0.0
      %v134 = vadd.f32 %v132, %v133
      %v135 = vsel %vm127, %v114, 0.0
      %v136 = vadd.f32 %v134, %v135
      %v137 = vsel %vm127, %v115, 0.0
      %v138 = vadd.f32 %v136, %v137
      %v139 = vsel %vm127, %v116, 0.0
      %v140 = vadd.f32 %v138, %v139
      %v141 = vsel %vm127, %v117, 0.0
      %v142 = vadd.f32 %v140, %v141
      %v143 = vsel %vm127, %v118, 0.0
      %v144 = vadd.f32 %v142, %v143
      %v145 = vsel %vm127, %v119, 0.0
      %v146 = vadd.f32 %v144, %v145
      %v147 = vsel %vm127, %v120, 0.0
      %v148 = vadd.f32 %v146, %v147
      %v149 = vsel %vm127, %v121, 0.0
      %v150 = vadd.f32 %v148, %v149
      %v151 = vsel %vm127, %v122, 0.0
      %v152 = vadd.f32 %v150, %v151
      %v153 = vsel %vm127, %v123, 0.0
      %v154 = vadd.f32 %v152, %v153
      %v155 = vsel %vm127, %v124, 0.0
      %v156 = vadd.f32 %v154, %v155
      %v157 = vsel %vm127, %v125, 0.0
      %v158 = vadd.f32 %v156, %v157
      %v159 = vrot.slane %v158, 4
      %v160 = vadd.f32 %v158, %v159
      %v161 = vrot.slane %v160, 2
      %v162 = vadd.f32 %v160, %v161
      %v163 = vrot.slane %v162, 1
      %v164 = vadd.f32 %v162, %v163
      %v165 = vadd.f32 %v126, %v164
      %vm166 = vcmask 24576
      %167 = vst.msk [vmem:[%s1] sm:$0x1] %vm166, %v165
      %v168 = vld [vmem:[%s1 + $0x1] sm:$0x1]
      %v169 = vmul.f32 %v110, %v110
      %v170 = vmul.f32 %v111, %v111
      %v171 = vmul.f32 %v112, %v112
      %v172 = vmul.f32 %v113, %v113
      %v173 = vmul.f32 %v114, %v114
      %v174 = vmul.f32 %v115, %v115
      %v175 = vmul.f32 %v116, %v116
      %v176 = vmul.f32 %v117, %v117
      %v177 = vmul.f32 %v118, %v118
      %v178 = vmul.f32 %v119, %v119
      %v179 = vmul.f32 %v120, %v120
      %v180 = vmul.f32 %v121, %v121
      %v181 = vmul.f32 %v122, %v122
      %v182 = vmul.f32 %v123, %v123
      %v183 = vmul.f32 %v124, %v124
      %v184 = vmul.f32 %v125, %v125
      %v185 = vsel %vm127, %v169, 0.0
      %v186 = vsel %vm127, %v170, 0.0
      %v187 = vadd.f32 %v185, %v186
      %v188 = vsel %vm127, %v171, 0.0
      %v189 = vadd.f32 %v187, %v188
      %v190 = vsel %vm127, %v172, 0.0
      %v191 = vadd.f32 %v189, %v190
      %v192 = vsel %vm127, %v173, 0.0
      %v193 = vadd.f32 %v191, %v192
      %v194 = vsel %vm127, %v174, 0.0
      %v195 = vadd.f32 %v193, %v194
      %v196 = vsel %vm127, %v175, 0.0
      %v197 = vadd.f32 %v195, %v196
      %v198 = vsel %vm127, %v176, 0.0
      %v199 = vadd.f32 %v197, %v198
      %v200 = vsel %vm127, %v177, 0.0
      %v201 = vadd.f32 %v199, %v200
      %v202 = vsel %vm127, %v178, 0.0
      %v203 = vadd.f32 %v201, %v202
      %v204 = vsel %vm127, %v179, 0.0
      %v205 = vadd.f32 %v203, %v204
      %v206 = vsel %vm127, %v180, 0.0
      %v207 = vadd.f32 %v205, %v206
      %v208 = vsel %vm127, %v181, 0.0
      %v209 = vadd.f32 %v207, %v208
      %v210 = vsel %vm127, %v182, 0.0
      %v211 = vadd.f32 %v209, %v210
      %v212 = vsel %vm127, %v183, 0.0
      %v213 = vadd.f32 %v211, %v212
      %v214 = vsel %vm127, %v184, 0.0
      %v215 = vadd.f32 %v213, %v214
      %v216 = vrot.slane %v215, 4
      %v217 = vadd.f32 %v215, %v216
      %v218 = vrot.slane %v217, 2
      %v219 = vadd.f32 %v217, %v218
      %v220 = vrot.slane %v219, 1
      %v221 = vadd.f32 %v219, %v220
      %v222 = vadd.f32 %v168, %v221
      %223 = vst.msk [vmem:[%s1 + $0x1] sm:$0x1] %vm166, %v222
      // Predicated region
      $region29: #{expand_forward.8} parent=23 // pred_check
        %p224 = pneg %p51
      $region30: #{expand_forward.8} parent=23 // pred_check_branch
        %226 = sbr.rel (%p224) target = $region32
      $region31: #{expand_forward.8} parent=23 // pred_region
        _
      $region32: #{expand_forward.8} parent=23 // pred_fallthru
        _
      // Predicated region
      $region33: #{expand_forward.8} parent=23 // pred_check
        %p227 = pneg %p51
      $region34: #{expand_forward.8} parent=23 // pred_check_branch
        %229 = sbr.rel (%p227) target = $region36
      $region35: #{expand_forward.8} parent=23 // pred_region
        _
      $region36: #{expand_forward.8} parent=23 // pred_fallthru
        _
    $region24: #{expand_forward.8} parent=5 // pred_fallthru
      _
    %p230 = scmp.le.s32.totalorder 2, %s7
    // Predicated region
    $region37: #{expand_forward.8} parent=5 // pred_check
      %p231 = pneg %p230
    $region38: #{expand_forward.8} parent=5 // pred_check_branch
      %233 = sbr.rel (%p231) target = $region40
    $region39: #{expand_forward.8} parent=5 // pred_region
      %s234 = ssub.s32 %s7, 2
    $region40: #{expand_forward.8} parent=5 // pred_fallthru
      _
  $region6: #{expand_forward.8} parent=0 // loop_footer
    %s11 = sadd.s32 1, %s7
  $region7: #{expand_forward.8} parent=0 // loop_footer_branch
    %6 = sbr.rel target = $region3
  $region8: #{expand_forward.8} parent=0 // loop_exit
    _

// kernel: expand_forward.9
$region0: #{expand_forward.9}
  #allocation0 [shape = 'u32[]', space=smem, size = 0x4, offset = 0x4, fixed_abs, tag = 'smem constant byte address 0x4 - core index']
  #allocation1 [shape = 'u32[72,128]{1,0:T(1,128)}', space=vmem, size = 0x9000, scoped, tag = 'internal scratch']
  %s0 = inlined_call_operand.vmem [shape: f32[384,4], index: 0, kind: input, shape index: {}]
  %s1 = inlined_call_operand.vmem [shape: f32[1,4], index: 1, kind: input, shape index: {}]
  %s2 = inlined_call_operand.vmem [shape: f32[1,4], index: 2, kind: input, shape index: {}]
  %s3 = inlined_call_operand.vmem [shape: f32[384,4], index: 3, kind: output, shape index: {}]
  %s4 = sld [smem:[#allocation0]]
  $region45: #{expand_forward.9} parent=0
    _
  %s6 = ssub.s32 1, %s4
  %s7 = scalar_select 0, %s6, %s4
  loop: start=0, step=1, limit=5
  $region2: #{expand_forward.9} parent=0 // loop_pre_header
    _
  $region3: #{expand_forward.9} parent=0 // loop_header
    %s9 = sphi 0, %s13
    %p10 = scmp.ge.s32.totalorder %s9, 5
    %s19 = sphi 0, %s21
    %s22 = sphi 0, %s19
    %s23 = sphi 0, %s22
    %s39 = sphi 0, %s23
    %s43 = sphi 0, %s43
    %s45 = sphi 0, %s43
    %s46 = sphi 0, %s45
    %s60 = sphi 0, %s46
    %s64 = sphi 0, %s64
    %s66 = sphi 0, %s64
    %s67 = sphi 0, %s66
    %s81 = sphi 0, %s67
    %s87 = sphi 0, %s89
    %s90 = sphi 0, %s87
    %s91 = sphi 0, %s90
    %s107 = sphi 0, %s91
  $region4: #{expand_forward.9} parent=0 // loop_header_branch
    %12 = sbr.rel (%p10) target = $region8
  $region5: #{expand_forward.9} parent=0 // loop_body
    %s14 = ssub.s32 %s9, 1
    %s15 = ssub.s32 %s9, 2
    %s16 = sadd.s32 %s9, 1
    %s17 = ssub.s32 %s9, %s16
    %p18 = scmp.eq.s32.totalorder %s17, 0
    %s20 = sadd.s32 %s19, 1
    %s21 = scalar_select %p18, %s19, %s20
    %p24 = pneg %p18
    %p25 = scmp.eq.s32.totalorder %s9, 2
    %p26 = por %p24, %p25
    %p27 = scmp.ne.s32.totalorder %s19, %s22
    %p28 = scmp.eq.s32.totalorder %s9, 0
    %p29 = por %p27, %p28
    %p30 = scmp.ne.s32.totalorder %s19, %s22
    %p31 = scmp.eq.s32.totalorder %s14, 2
    %p32 = por %p30, %p31
    %p33 = scmp.ne.s32.totalorder %s22, %s23
    %p34 = scmp.eq.s32.totalorder %s14, 0
    %p35 = por %p33, %p34
    %p36 = scmp.ne.s32.totalorder %s22, %s23
    %p37 = scmp.eq.s32.totalorder %s15, 2
    %p38 = por %p36, %p37
    %p40 = scmp.ne.s32.totalorder %s23, %s39
    %p41 = scmp.eq.s32.totalorder %s15, 0
    %p42 = por %p40, %p41
    %s44 = sadd.s32 %s43, 1
    %p47 = scmp.eq.s32.totalorder %s9, 2
    %p48 = scmp.ne.s32.totalorder %s43, %s45
    %p49 = scmp.eq.s32.totalorder %s9, 0
    %p50 = por %p48, %p49
    %p51 = scmp.ne.s32.totalorder %s43, %s45
    %p52 = scmp.eq.s32.totalorder %s14, 2
    %p53 = por %p51, %p52
    %p54 = scmp.ne.s32.totalorder %s45, %s46
    %p55 = scmp.eq.s32.totalorder %s14, 0
    %p56 = por %p54, %p55
    %p57 = scmp.ne.s32.totalorder %s45, %s46
    %p58 = scmp.eq.s32.totalorder %s15, 2
    %p59 = por %p57, %p58
    %p61 = scmp.ne.s32.totalorder %s46, %s60
    %p62 = scmp.eq.s32.totalorder %s15, 0
    %p63 = por %p61, %p62
    %s65 = sadd.s32 %s64, 1
    %p68 = scmp.eq.s32.totalorder %s9, 2
    %p69 = scmp.ne.s32.totalorder %s64, %s66
    %p70 = scmp.eq.s32.totalorder %s9, 0
    %p71 = por %p69, %p70
    %p72 = scmp.ne.s32.totalorder %s64, %s66
    %p73 = scmp.eq.s32.totalorder %s14, 2
    %p74 = por %p72, %p73
    %p75 = scmp.ne.s32.totalorder %s66, %s67
    %p76 = scmp.eq.s32.totalorder %s14, 0
    %p77 = por %p75, %p76
    %p78 = scmp.ne.s32.totalorder %s66, %s67
    %p79 = scmp.eq.s32.totalorder %s15, 2
    %p80 = por %p78, %p79
    %p82 = scmp.ne.s32.totalorder %s67, %s81
    %p83 = scmp.eq.s32.totalorder %s15, 0
    %p84 = por %p82, %p83
    %s85 = ssub.s32 %s9, %s16
    %p86 = scmp.eq.s32.totalorder %s85, 0
    %s88 = sadd.s32 %s87, 1
    %s89 = scalar_select %p86, %s87, %s88
    %p92 = pneg %p86
    %p93 = scmp.eq.s32.totalorder %s9, 2
    %p94 = por %p92, %p93
    %p95 = scmp.ne.s32.totalorder %s87, %s90
    %p96 = scmp.eq.s32.totalorder %s9, 0
    %p97 = por %p95, %p96
    %p98 = scmp.ne.s32.totalorder %s87, %s90
    %p99 = scmp.eq.s32.totalorder %s14, 2
    %p100 = por %p98, %p99
    %p101 = scmp.ne.s32.totalorder %s90, %s91
    %p102 = scmp.eq.s32.totalorder %s14, 0
    %p103 = por %p101, %p102
    %p104 = scmp.ne.s32.totalorder %s90, %s91
    %p105 = scmp.eq.s32.totalorder %s15, 2
    %p106 = por %p104, %p105
    %p108 = scmp.ne.s32.totalorder %s91, %s107
    %p109 = scmp.eq.s32.totalorder %s15, 0
    %p110 = por %p108, %p109
    %p111 = scmp.le.s32.totalorder 1, %s9
    %p112 = scmp.lt.s32.totalorder %s9, 4
    %p113 = pnand %p111, %p112
    %p114 = pneg %p113
    // Predicated region
    $region9: #{expand_forward.9} parent=5 // pred_check
      _
    $region10: #{expand_forward.9} parent=5 // pred_check_branch
      %116 = sbr.rel (%p113) target = $region12
    $region11: #{expand_forward.9} parent=5 // pred_region
      %s117 = ssub.s32 %s9, 1
      // Predicated region
      $region13: #{expand_forward.9} parent=11 // pred_check
        %p118 = pneg %p56
      $region14: #{expand_forward.9} parent=11 // pred_check_branch
        %120 = sbr.rel (%p118) target = $region16
      $region15: #{expand_forward.9} parent=11 // pred_region
        _
      $region16: #{expand_forward.9} parent=11 // pred_fallthru
        _
      // Predicated region
      $region17: #{expand_forward.9} parent=11 // pred_check
        %p121 = pneg %p77
      $region18: #{expand_forward.9} parent=11 // pred_check_branch
        %123 = sbr.rel (%p121) target = $region20
      $region19: #{expand_forward.9} parent=11 // pred_region
        _
      $region20: #{expand_forward.9} parent=11 // pred_fallthru
        _
    $region12: #{expand_forward.9} parent=5 // pred_fallthru
      _
    %p124 = scmp.lt.s32.totalorder %s9, 3
    // Predicated region
    $region21: #{expand_forward.9} parent=5 // pred_check
      %p125 = pneg %p124
    $region22: #{expand_forward.9} parent=5 // pred_check_branch
      %127 = sbr.rel (%p125) target = $region24
    $region23: #{expand_forward.9} parent=5 // pred_region
      // Predicated region
      $region25: #{expand_forward.9} parent=23 // pred_check
        %p128 = pneg %p29
      $region26: #{expand_forward.9} parent=23 // pred_check_branch
        %130 = sbr.rel (%p128) target = $region28
      $region27: #{expand_forward.9} parent=23 // pred_region
        %s131 = smul.u32 16, %s9
        %p132 = scmp.lt.s32.totalorder %s131, 47
        %s133 = scalar_select %p132, %s131, 47
        %s134 = smul.addr %s133, 8
        %s135 = scalar_lea.vmem %s0, %s134
        %s136 = smul.u32 16, %s9
      $region28: #{expand_forward.9} parent=23 // pred_fallthru
        _
    $region24: #{expand_forward.9} parent=5 // pred_fallthru
      _
    %p137 = scmp.le.s32.totalorder 1, %s9
    %p138 = scmp.lt.s32.totalorder %s9, 4
    %p139 = pnand %p137, %p138
    %p140 = pneg %p139
    // Predicated region
    $region29: #{expand_forward.9} parent=5 // pred_check
      _
    $region30: #{expand_forward.9} parent=5 // pred_check_branch
      %142 = sbr.rel (%p139) target = $region32
    $region31: #{expand_forward.9} parent=5 // pred_region
      %s143 = ssub.s32 %s9, 1
      %s144 = smul.u32 16, %s14
      %p145 = scmp.lt.s32.totalorder %s144, 47
      %s146 = scalar_select %p145, %s144, 47
      %s147 = smul.addr %s146, 8
      %s148 = scalar_lea.vmem %s0, %s147
      %p149 = pneg %p35
      %p150 = pneg %p32
      %p151 = pneg %p56
      %p152 = pneg %p53
      %p153 = pneg %p77
      %p154 = pneg %p74
      %p155 = pneg %p103
      %p156 = pneg %p100
      %s157 = smul.u32 16, %s14
      %p158 = scmp.lt.s32.totalorder %s157, 47
      %s159 = scalar_select %p158, %s157, 47
      %s160 = smul.addr %s159, 8
      %s161 = scalar_lea.vmem %s3, %s160
      %s162 = smul.u32 16, %s14
      %p163 = scmp.lt.s32.totalorder %s162, 47
      %s164 = scalar_select %p163, %s162, 47
      %s165 = smul.addr %s164, 8
      %s166 = scalar_lea.vmem %s0, %s165
      %s167 = smul.u32 16, %s14
      %s168 = smul.u32 16, %s14
      %p169 = scmp.lt.s32.totalorder %s168, 47
      %s170 = scalar_select %p169, %s168, 47
      %s171 = smul.addr %s170, 8
      %s172 = scalar_lea.vmem %s3, %s171
      %s173 = smul.u32 16, %s14
      %v174 = vld [vmem:[%s166] sm:$0xff]
      %v175 = vld [vmem:[%s166 + $0x8] sm:$0xff]
      %v176 = vld [vmem:[%s166 + $0x10] sm:$0xff]
      %v177 = vld [vmem:[%s166 + $0x18] sm:$0xff]
      %v178 = vld [vmem:[%s166 + $0x20] sm:$0xff]
      %v179 = vld [vmem:[%s166 + $0x28] sm:$0xff]
      %v180 = vld [vmem:[%s166 + $0x30] sm:$0xff]
      %v181 = vld [vmem:[%s166 + $0x38] sm:$0xff]
      %v182 = vld [vmem:[%s166 + $0x40] sm:$0xff]
      %v183 = vld [vmem:[%s166 + $0x48] sm:$0xff]
      %v184 = vld [vmem:[%s166 + $0x50] sm:$0xff]
      %v185 = vld [vmem:[%s166 + $0x58] sm:$0xff]
      %v186 = vld [vmem:[%s166 + $0x60] sm:$0xff]
      %v187 = vld [vmem:[%s166 + $0x68] sm:$0xff]
      %v188 = vld [vmem:[%s166 + $0x70] sm:$0xff]
      %v189 = vld [vmem:[%s166 + $0x78] sm:$0xff]
      %v190 = vld [vmem:[%s1] sm:$0x1]
      %v192 = vperm.slane %v190, 0
      %v194 = vmul.f32 %v174, %v192
      %v195 = vmul.f32 %v175, %v192
      %v196 = vmul.f32 %v176, %v192
      %v197 = vmul.f32 %v177, %v192
      %v198 = vmul.f32 %v178, %v192
      %v199 = vmul.f32 %v179, %v192
      %v200 = vmul.f32 %v180, %v192
      %v201 = vmul.f32 %v181, %v192
      %v202 = vmul.f32 %v182, %v192
      %v203 = vmul.f32 %v183, %v192
      %v204 = vmul.f32 %v184, %v192
      %v205 = vmul.f32 %v185, %v192
      %v206 = vmul.f32 %v186, %v192
      %v207 = vmul.f32 %v187, %v192
      %v208 = vmul.f32 %v188, %v192
      %v209 = vmul.f32 %v189, %v192
      %v210 = vld [vmem:[%s2] sm:$0x1]
      %v212 = vperm.slane %v210, 0
      %v214 = vadd.f32 %v194, %v212
      %v215 = vadd.f32 %v195, %v212
      %v216 = vadd.f32 %v196, %v212
      %v217 = vadd.f32 %v197, %v212
      %v218 = vadd.f32 %v198, %v212
      %v219 = vadd.f32 %v199, %v212
      %v220 = vadd.f32 %v200, %v212
      %v221 = vadd.f32 %v201, %v212
      %v222 = vadd.f32 %v202, %v212
      %v223 = vadd.f32 %v203, %v212
      %v224 = vadd.f32 %v204, %v212
      %v225 = vadd.f32 %v205, %v212
      %v226 = vadd.f32 %v206, %v212
      %v227 = vadd.f32 %v207, %v212
      %v228 = vadd.f32 %v208, %v212
      %v229 = vadd.f32 %v209, %v212
      %v230 = vmax.f32 %v214, 0.0
      %v231 = vmax.f32 %v215, 0.0
      %v232 = vmax.f32 %v216, 0.0
      %v233 = vmax.f32 %v217, 0.0
      %v234 = vmax.f32 %v218, 0.0
      %v235 = vmax.f32 %v219, 0.0
      %v236 = vmax.f32 %v220, 0.0
      %v237 = vmax.f32 %v221, 0.0
      %v238 = vmax.f32 %v222, 0.0
      %v239 = vmax.f32 %v223, 0.0
      %v240 = vmax.f32 %v224, 0.0
      %v241 = vmax.f32 %v225, 0.0
      %v242 = vmax.f32 %v226, 0.0
      %v243 = vmax.f32 %v227, 0.0
      %v244 = vmax.f32 %v228, 0.0
      %v245 = vmax.f32 %v229, 0.0
      %vm246 = vcmask 31744
      %247 = vst.msk [vmem:[%s172] sm:$0xff] %vm246, %v230
      %248 = vst.msk [vmem:[%s172 + $0x8] sm:$0xff] %vm246, %v231
      %249 = vst.msk [vmem:[%s172 + $0x10] sm:$0xff] %vm246, %v232
      %250 = vst.msk [vmem:[%s172 + $0x18] sm:$0xff] %vm246, %v233
      %251 = vst.msk [vmem:[%s172 + $0x20] sm:$0xff] %vm246, %v234
      %252 = vst.msk [vmem:[%s172 + $0x28] sm:$0xff] %vm246, %v235
      %253 = vst.msk [vmem:[%s172 + $0x30] sm:$0xff] %vm246, %v236
      %254 = vst.msk [vmem:[%s172 + $0x38] sm:$0xff] %vm246, %v237
      %255 = vst.msk [vmem:[%s172 + $0x40] sm:$0xff] %vm246, %v238
      %256 = vst.msk [vmem:[%s172 + $0x48] sm:$0xff] %vm246, %v239
      %257 = vst.msk [vmem:[%s172 + $0x50] sm:$0xff] %vm246, %v240
      %258 = vst.msk [vmem:[%s172 + $0x58] sm:$0xff] %vm246, %v241
      %259 = vst.msk [vmem:[%s172 + $0x60] sm:$0xff] %vm246, %v242
      %260 = vst.msk [vmem:[%s172 + $0x68] sm:$0xff] %vm246, %v243
      %261 = vst.msk [vmem:[%s172 + $0x70] sm:$0xff] %vm246, %v244
      %262 = vst.msk [vmem:[%s172 + $0x78] sm:$0xff] %vm246, %v245
      %s263 = smul.u32 16, %s14
      %p264 = scmp.lt.s32.totalorder %s263, 47
      %s265 = scalar_select %p264, %s263, 47
      %s266 = smul.addr %s265, 8
      %s267 = scalar_lea.vmem %s3, %s266
      // Predicated region
      $region33: #{expand_forward.9} parent=31 // pred_check
        %p268 = pneg %p100
      $region34: #{expand_forward.9} parent=31 // pred_check_branch
        %270 = sbr.rel (%p268) target = $region36
      $region35: #{expand_forward.9} parent=31 // pred_region
        %s271 = smul.u32 16, %s14
      $region36: #{expand_forward.9} parent=31 // pred_fallthru
        _
    $region32: #{expand_forward.9} parent=5 // pred_fallthru
      _
    %p272 = scmp.le.s32.totalorder 2, %s9
    // Predicated region
    $region37: #{expand_forward.9} parent=5 // pred_check
      %p273 = pneg %p272
    $region38: #{expand_forward.9} parent=5 // pred_check_branch
      %275 = sbr.rel (%p273) target = $region40
    $region39: #{expand_forward.9} parent=5 // pred_region
      %s276 = ssub.s32 %s9, 2
      // Predicated region
      $region41: #{expand_forward.9} parent=39 // pred_check
        %p277 = pneg %p106
      $region42: #{expand_forward.9} parent=39 // pred_check_branch
        %279 = sbr.rel (%p277) target = $region44
      $region43: #{expand_forward.9} parent=39 // pred_region
        %s280 = smul.u32 16, %s15
        %p281 = scmp.lt.s32.totalorder %s280, 47
        %s282 = scalar_select %p281, %s280, 47
        %s283 = smul.addr %s282, 8
        %s284 = scalar_lea.vmem %s3, %s283
      $region44: #{expand_forward.9} parent=39 // pred_fallthru
        _
    $region40: #{expand_forward.9} parent=5 // pred_fallthru
      _
  $region6: #{expand_forward.9} parent=0 // loop_footer
    %s13 = sadd.s32 1, %s9
  $region7: #{expand_forward.9} parent=0 // loop_footer_branch
    %8 = sbr.rel target = $region3
  $region8: #{expand_forward.9} parent=0 // loop_exit
    _

</llo_original>
